<compile_context>
chip_gen: v5e
topology: v5e:2x2
jax: 0.10.0
libtpu: 0.0.40
codegen_flags: <defaults>
</compile_context>

<pallas_src>
import jax
import jax.numpy as jnp
from jax import lax
from jax.experimental import pallas as pl
from jax.experimental.pallas import tpu as pltpu


def mslstm_kernel(x_ref, wih_ref, whh_ref, b_ref, hw_ref, hb_ref, o_ref,
                  xw_ref, h_ref, c_ref):
    # x_ref  : [rb, tc, D] bf16   fused head*batch rows, natural [RB, T, D] layout
    # wih_ref: [D, 4H] bf16       gate order i,f,g,o ; i/f/o columns pre-scaled by 0.5
    # whh_ref: [H, 4H] bf16       i/f/o columns pre-scaled by 0.5
    # b_ref  : [1, 4H] f32        (b_ih + b_hh), i/f/o entries pre-scaled by 0.5
    # hw_ref : [H, RO_pad] bf16   per-head Linear weights fused along O, zero-padded
    # hb_ref : [1, RO_pad] f32
    # o_ref  : [rb, RO_pad] f32   lane-dense fused output slab
    # scratch: xw_ref [rb, tc, 4H] f32, h_ref/c_ref [rb, H] f32 (carried across T chunks)
    rb, tc, _ = x_ref.shape
    H = whh_ref.shape[0]
    G = 4 * H
    j = pl.program_id(1)

    @pl.when(j == 0)
    def _():
        h_ref[...] = jnp.zeros_like(h_ref)
        c_ref[...] = jnp.zeros_like(c_ref)

    # Hoisted chunk-level input projection (one MXU pass, off the serial h-path),
    # materialized in VMEM scratch so only the current gate tile stays in vregs.
    x_flat = x_ref[...].reshape(rb * tc, x_ref.shape[2])
    xw = jnp.dot(x_flat, wih_ref[...], preferred_element_type=jnp.float32) + b_ref[...]
    xw_ref[...] = xw.reshape(rb, tc, G)

    # Hoisted activation constants (rb == 8 -> one vreg each):
    #   i/f/o columns: sigmoid(z) = 0.5*tanh(z/2) + 0.5  (the /2 is folded into weights)
    #   g columns    : tanh(z)
    col = lax.broadcasted_iota(jnp.int32, (rb, G), 1)
    is_g = (col >= 2 * H) & (col < 3 * H)
    post_scale = jnp.where(is_g, 1.0, 0.5).astype(jnp.float32)
    post_bias = jnp.where(is_g, 0.0, 0.5).astype(jnp.float32)

    whh = whh_ref[...]
    h = h_ref[...]
    c = c_ref[...]
    for t in range(tc):  # short fixed chunk; statically unrolled
        gates = xw_ref[:, t, :] + jnp.dot(h.astype(jnp.bfloat16), whh,
                                          preferred_element_type=jnp.float32)
        act = jnp.tanh(gates) * post_scale + post_bias       # one EUP pass over [rb, 4H]
        i_g = act[:, 0:H]
        f_g = act[:, H:2 * H]
        g_g = act[:, 2 * H:3 * H]
        o_g = act[:, 3 * H:4 * H]
        c = f_g * c + i_g * g_g
        h = o_g * jnp.tanh(c)
    h_ref[...] = h
    c_ref[...] = c

    @pl.when(j == pl.num_programs(1) - 1)
    def _():
        # Fused per-head Linear: one lane-dense [rb, H] x [H, RO_pad] MXU op, one
        # unmasked 128-lane store (wrapper extracts the per-head diagonal blocks).
        o_ref[...] = jnp.dot(h.astype(jnp.bfloat16), hw_ref[...],
                             preferred_element_type=jnp.float32) + hb_ref[...]


def _prepare_kernel_params(params, ro_pad):
    """Fold the sigmoid pre-scale into the weights, fuse/pad head weights, cast to bf16."""
    wih, whh, b, hw, hb = params
    H = whh.shape[0]
    R, _, O = hw.shape
    col = jnp.arange(4 * H)
    scale = jnp.where((col >= 2 * H) & (col < 3 * H), 1.0, 0.5).astype(jnp.float32)
    wih_s = (wih * scale).astype(jnp.bfloat16)       # power-of-two scale: exact in bf16
    whh_s = (whh * scale).astype(jnp.bfloat16)
    b_s = (b * scale).astype(jnp.float32)
    hw_f = jnp.transpose(hw, (1, 0, 2)).reshape(H, R * O)      # columns = r*O + o
    hb_f = hb.reshape(1, R * O)
    hw_f = jnp.pad(hw_f, ((0, 0), (0, ro_pad - R * O))).astype(jnp.bfloat16)
    hb_f = jnp.pad(hb_f, ((0, 0), (0, ro_pad - R * O))).astype(jnp.float32)
    return wih_s, whh_s, b_s, hw_f, hb_f


def mslstm_forward(inputs_list, params, aux=None, *, t_chunk=16, rb_block_max=256):
    """inputs_list: list (len R) of [B, T, D] arrays. Returns list of [B, 1, O] arrays,
    matching the PyTorch module's output list. `aux` is unused (as in the reference)."""
    del aux
    wih, whh, b, hw, hb = params        # [D,4H], [H,4H], [1,4H], [R,H,O], [R,1,O]
    R = len(inputs_list)
    B, T, D = inputs_list[0].shape
    H = whh.shape[0]
    O = hw.shape[-1]
    G = 4 * H
    RB = R * B

    # Lane-dense fused-head output width (multiple of 128).
    RO_pad = max(128, ((R * O + 127) // 128) * 128)
    # Fused-batch rows padded to a sublane-friendly block; rb axis is "parallel".
    rb_block = min(rb_block_max, max(8, ((RB + 7) // 8) * 8))
    RB_pad = ((RB + rb_block - 1) // rb_block) * rb_block
    # Time chunk must divide T; second-minor bf16 block dim wants multiples of 16.
    if T % t_chunk != 0 or (t_chunk % 16 != 0 and t_chunk != T):
        t_chunk = T
    n_rb = RB_pad // rb_block
    n_tc = T // t_chunk

    # Fuse heads onto the batch axis in the natural [RB, T, D] layout (no extra
    # time-major transpose pass over HBM) and cast once to bf16 (MXU operand + half bytes).
    x = jnp.stack(inputs_list, axis=0).reshape(RB, T, D).astype(jnp.bfloat16)
    if RB_pad != RB:
        x = jnp.pad(x, ((0, RB_pad - RB), (0, 0), (0, 0)))

    wih_s, whh_s, b_s, hw_f, hb_f = _prepare_kernel_params(params, RO_pad)

    out = pl.pallas_call(
        mslstm_kernel,
        out_shape=jax.ShapeDtypeStruct((RB_pad, RO_pad), jnp.float32),
        grid_spec=pltpu.PrefetchScalarGridSpec(
            num_scalar_prefetch=0,
            grid=(n_rb, n_tc),
            in_specs=[
                pl.BlockSpec((rb_block, t_chunk, D), lambda i, j: (i, j, 0)),
                pl.BlockSpec((D, G), lambda i, j: (0, 0)),
                pl.BlockSpec((H, G), lambda i, j: (0, 0)),
                pl.BlockSpec((1, G), lambda i, j: (0, 0)),
                pl.BlockSpec((H, RO_pad), lambda i, j: (0, 0)),
                pl.BlockSpec((1, RO_pad), lambda i, j: (0, 0)),
            ],
            out_specs=pl.BlockSpec((rb_block, RO_pad), lambda i, j: (i, 0)),
            scratch_shapes=[
                pltpu.VMEM((rb_block, t_chunk, G), jnp.float32),   # xw chunk
                pltpu.VMEM((rb_block, H), jnp.float32),            # h carry
                pltpu.VMEM((rb_block, H), jnp.float32),            # c carry
            ],
        ),
        compiler_params=pltpu.CompilerParams(
            dimension_semantics=("parallel", "arbitrary")),
    )(x, wih_s, whh_s, b_s, hw_f, hb_f)

    # Extract per-head diagonal blocks: head r -> rows [r*B, (r+1)*B), cols [r*O, (r+1)*O).
    return [out[r * B:(r + 1) * B, r * O:(r + 1) * O][:, None, :] for r in range(R)]


def reference_forward(inputs_list, params, mxu_dtype=None):
    """Pure-JAX reference replicating nn.LSTM + nn.Linear heads.
    mxu_dtype=jnp.bfloat16 emulates the kernel's bf16 matmul operands (f32 accum/state)."""
    wih, whh, b, hw, hb = params
    H = whh.shape[0]
    cast = (lambda a: a) if mxu_dtype is None else (lambda a: a.astype(mxu_dtype))
    preds = []
    for i, xi in enumerate(inputs_list):
        xi = xi.astype(jnp.float32)
        Bs, T, D = xi.shape
        h = jnp.zeros((Bs, H), jnp.float32)
        c = jnp.zeros((Bs, H), jnp.float32)
        xw = jnp.dot(cast(xi.reshape(Bs * T, D)), cast(wih),
                     preferred_element_type=jnp.float32).reshape(Bs, T, 4 * H)
        for t in range(T):
            gates = xw[:, t, :] + jnp.dot(cast(h), cast(whh),
                                          preferred_element_type=jnp.float32) + b
            ig = jax.nn.sigmoid(gates[:, 0:H])
            fg = jax.nn.sigmoid(gates[:, H:2 * H])
            gg = jnp.tanh(gates[:, 2 * H:3 * H])
            og = jax.nn.sigmoid(gates[:, 3 * H:4 * H])
            c = fg * c + ig * gg
            h = og * jnp.tanh(c)
        out = jnp.dot(cast(h), cast(hw[i]), preferred_element_type=jnp.float32) + hb[i]
        preds.append(out[:, None, :])
    return preds


def init_params(key, input_size, hidden_size, out_size, num_repeat):
    """Deterministic init mirroring PyTorch's uniform(-1/sqrt(H), 1/sqrt(H)).
    (Real PyTorch checkpoints must be transposed into these [D,4H]/[H,4H]/[H,O] layouts.)"""
    H = hidden_size
    k = 1.0 / jnp.sqrt(jnp.float32(H))
    ks = jax.random.split(key, 6)
    wih = jax.random.uniform(ks[0], (input_size, 4 * H), jnp.float32, -k, k)
    whh = jax.random.uniform(ks[1], (H, 4 * H), jnp.float32, -k, k)
    b_ih = jax.random.uniform(ks[2], (4 * H,), jnp.float32, -k, k)
    b_hh = jax.random.uniform(ks[3], (4 * H,), jnp.float32, -k, k)
    b = (b_ih + b_hh)[None, :]                               # [1, 4H]
    hw = jax.random.uniform(ks[4], (num_repeat, H, out_size), jnp.float32, -k, k)
    hb = jax.random.uniform(ks[5], (num_repeat, 1, out_size), jnp.float32, -k, k)
    return (wih, whh, b, hw, hb)


if __name__ == "__main__":
    # small config consistent with the module's forward
    num_repeat = 2          # cfg['num_repeat']
    input_size = 8          # mtllstmmodel_cfg['input_size']
    hidden_size = 32        # mtllstmmodel_cfg['hidden_size']
    out_size = 4            # mtllstmmodel_cfg['out_size']
    B, T = 2, 32            # T=32 with t_chunk=16 exercises the chunked h/c carry

    key = jax.random.PRNGKey(0)
    kx, kp = jax.random.split(key)
    inputs = [jax.random.normal(jax.random.fold_in(kx, i), (B, T, input_size),
                                jnp.float32)
              for i in range(num_repeat)]
    # `aux` is unused by the reference forward; pass-through only.
    params = init_params(kp, input_size, hidden_size, out_size, num_repeat)

    preds = mslstm_forward(inputs, params, aux=None, t_chunk=16)
    preds = [jax.block_until_ready(p) for p in preds]

    refs_f32 = reference_forward(inputs, params)
    refs_bf16 = reference_forward(inputs, params, mxu_dtype=jnp.bfloat16)
    for p, r_f32, r_bf16 in zip(preds, refs_f32, refs_bf16):
        assert p.shape == (B, 1, out_size)
        # Tight check vs. a reference that emulates the kernel's bf16 MXU operands
        # (f32 accumulation / state / activations).
        assert jnp.allclose(p, r_bf16, atol=2e-3, rtol=2e-3)
        # Loose sanity check vs. the pure-f32 math of the PyTorch module (bounds the
        # bf16-operand rounding accumulated over the T-step recurrence).
        assert jnp.allclose(p, r_f32, atol=2e-2, rtol=2e-2)

    print("KERNEL_OK")
</pallas_src>

<mosaic_0001>
module attributes {stable_mosaic.version = 11 : i64} {
  func.func @mslstm_kernel(%arg0: i32, %arg1: i32, %arg2: memref<8x16x8xbf16, #tpu.memory_space<vmem>>, %arg3: memref<8x128xbf16, #tpu.memory_space<vmem>>, %arg4: memref<32x128xbf16, #tpu.memory_space<vmem>>, %arg5: memref<1x128xf32, #tpu.memory_space<vmem>>, %arg6: memref<32x128xbf16, #tpu.memory_space<vmem>>, %arg7: memref<1x128xf32, #tpu.memory_space<vmem>>, %arg8: memref<8x128xf32, #tpu.memory_space<vmem>>, %arg9: memref<8x16x128xf32, #tpu.memory_space<vmem>>, %arg10: memref<8x32xf32, #tpu.memory_space<vmem>>, %arg11: memref<8x32xf32, #tpu.memory_space<vmem>>) attributes {dimension_semantics = [#tpu.dimension_semantics<parallel>, #tpu.dimension_semantics<arbitrary>], iteration_bounds = array<i64: 1, 2>, scalar_prefetch = 0 : i64, scratch_operands = 3 : i64, tpu.core_type = #tpu.core_type<tc>, window_params = [{transform_indices = @transform_0, window_bounds = array<i64: 8, 16, 8>}, {pipeline_mode = #tpu.pipeline_mode<synchronous>, transform_indices = @transform_1, window_bounds = array<i64: 8, 128>}, {pipeline_mode = #tpu.pipeline_mode<synchronous>, transform_indices = @transform_2, window_bounds = array<i64: 32, 128>}, {pipeline_mode = #tpu.pipeline_mode<synchronous>, transform_indices = @transform_3, window_bounds = array<i64: 1, 128>}, {pipeline_mode = #tpu.pipeline_mode<synchronous>, transform_indices = @transform_4, window_bounds = array<i64: 32, 128>}, {pipeline_mode = #tpu.pipeline_mode<synchronous>, transform_indices = @transform_5, window_bounds = array<i64: 1, 128>}, {transform_indices = @transform_6, window_bounds = array<i64: 8, 128>}]} {
    %c0_i32 = arith.constant 0 : i32
    %0 = arith.cmpi eq, %arg1, %c0_i32 : i32
    %1 = arith.extui %0 : i1 to i32
    %c0_i32_0 = arith.constant 0 : i32
    %2 = arith.cmpi ne, %1, %c0_i32_0 : i32
    scf.if %2 {
      %cst_74 = arith.constant 0.000000e+00 : f32
      %304 = vector.broadcast %cst_74 : f32 to vector<8x32xf32>
      %c0_75 = arith.constant 0 : index
      %c0_76 = arith.constant 0 : index
      %305 = vector.load %arg10[%c0_75, %c0_76] : memref<8x32xf32, #tpu.memory_space<vmem>>, vector<8x32xf32>
      tpu.vector_store %arg10[%c0_75, %c0_76], %304 {strides = array<i32>} : memref<8x32xf32, #tpu.memory_space<vmem>>, vector<8x32xf32>,
      %cst_77 = arith.constant 0.000000e+00 : f32
      %306 = vector.broadcast %cst_77 : f32 to vector<8x32xf32>
      %c0_78 = arith.constant 0 : index
      %c0_79 = arith.constant 0 : index
      %307 = vector.load %arg11[%c0_78, %c0_79] : memref<8x32xf32, #tpu.memory_space<vmem>>, vector<8x32xf32>
      tpu.vector_store %arg11[%c0_78, %c0_79], %306 {strides = array<i32>} : memref<8x32xf32, #tpu.memory_space<vmem>>, vector<8x32xf32>,
    } else {
    }
    %c0 = arith.constant 0 : index
    %c0_1 = arith.constant 0 : index
    %c0_2 = arith.constant 0 : index
    %3 = vector.load %arg2[%c0, %c0_1, %c0_2] : memref<8x16x8xbf16, #tpu.memory_space<vmem>>, vector<8x16x8xbf16>
    %4 = vector.shape_cast %3 : vector<8x16x8xbf16> to vector<128x8xbf16>
    %c0_3 = arith.constant 0 : index
    %c0_4 = arith.constant 0 : index
    %5 = vector.load %arg3[%c0_3, %c0_4] : memref<8x128xbf16, #tpu.memory_space<vmem>>, vector<8x128xbf16>
    %cst = arith.constant dense<0.000000e+00> : vector<128x128xf32>
    %6 = tpu.matmul %4, %5, %cst {dimension_numbers = #tpu.dot_dimension_numbers<[1], [0], [0], [1], [0, 0, 1, 1], [], []>} : vector<128x8xbf16>, vector<8x128xbf16>, vector<128x128xf32> -> vector<128x128xf32>
    %c0_5 = arith.constant 0 : index
    %c0_6 = arith.constant 0 : index
    %7 = vector.load %arg5[%c0_5, %c0_6] : memref<1x128xf32, #tpu.memory_space<vmem>>, vector<1x128xf32>
    %8 = vector.broadcast %7 : vector<1x128xf32> to vector<128x128xf32>
    %9 = arith.addf %6, %8 : vector<128x128xf32>
    %10 = vector.shape_cast %9 : vector<128x128xf32> to vector<8x16x128xf32>
    %c0_7 = arith.constant 0 : index
    %c0_8 = arith.constant 0 : index
    %c0_9 = arith.constant 0 : index
    %11 = vector.load %arg9[%c0_7, %c0_8, %c0_9] : memref<8x16x128xf32, #tpu.memory_space<vmem>>, vector<8x16x128xf32>
    tpu.vector_store %arg9[%c0_7, %c0_8, %c0_9], %10 {strides = array<i32>} : memref<8x16x128xf32, #tpu.memory_space<vmem>>, vector<8x16x128xf32>,
    %12 = tpu.iota {dimensions = array<i32: 1>} : vector<8x128xi32>
    %c64_i32 = arith.constant 64 : i32
    %13 = vector.broadcast %c64_i32 : i32 to vector<8x128xi32>
    %14 = arith.cmpi sge, %12, %13 : vector<8x128xi32>
    %c96_i32 = arith.constant 96 : i32
    %15 = vector.broadcast %c96_i32 : i32 to vector<8x128xi32>
    %16 = arith.cmpi slt, %12, %15 : vector<8x128xi32>
    %17 = arith.andi %14, %16 : vector<8x128xi1>
    %cst_10 = arith.constant 1.000000e+00 : f32
    %cst_11 = arith.constant 5.000000e-01 : f32
    %18 = vector.broadcast %cst_10 : f32 to vector<8x128xf32>
    %19 = vector.broadcast %cst_11 : f32 to vector<8x128xf32>
    %20 = arith.select %17, %18, %19 : vector<8x128xi1>, vector<8x128xf32>
    %cst_12 = arith.constant 0.000000e+00 : f32
    %cst_13 = arith.constant 5.000000e-01 : f32
    %21 = vector.broadcast %cst_12 : f32 to vector<8x128xf32>
    %22 = vector.broadcast %cst_13 : f32 to vector<8x128xf32>
    %23 = arith.select %17, %21, %22 : vector<8x128xi1>, vector<8x128xf32>
    %c0_14 = arith.constant 0 : index
    %c0_15 = arith.constant 0 : index
    %24 = vector.load %arg4[%c0_14, %c0_15] : memref<32x128xbf16, #tpu.memory_space<vmem>>, vector<32x128xbf16>
    %c0_16 = arith.constant 0 : index
    %c0_17 = arith.constant 0 : index
    %25 = vector.load %arg10[%c0_16, %c0_17] : memref<8x32xf32, #tpu.memory_space<vmem>>, vector<8x32xf32>
    %c0_18 = arith.constant 0 : index
    %c0_19 = arith.constant 0 : index
    %26 = vector.load %arg11[%c0_18, %c0_19] : memref<8x32xf32, #tpu.memory_space<vmem>>, vector<8x32xf32>
    %c0_20 = arith.constant 0 : index
    %c0_21 = arith.constant 0 : index
    %c0_22 = arith.constant 0 : index
    %27 = vector.load %arg9[%c0_20, %c0_21, %c0_22] : memref<8x16x128xf32, #tpu.memory_space<vmem>>, vector<8x1x128xf32>
    %28 = vector.shape_cast %27 : vector<8x1x128xf32> to vector<8x128xf32>
    %29 = arith.truncf %25 : vector<8x32xf32> to vector<8x32xbf16>
    %cst_23 = arith.constant dense<0.000000e+00> : vector<8x128xf32>
    %30 = tpu.matmul %29, %24, %cst_23 {dimension_numbers = #tpu.dot_dimension_numbers<[1], [0], [0], [1], [0, 0, 1, 1], [], []>} : vector<8x32xbf16>, vector<32x128xbf16>, vector<8x128xf32> -> vector<8x128xf32>
    %31 = arith.addf %28, %30 : vector<8x128xf32>
    %32 = math.tanh %31 : vector<8x128xf32>
    %33 = arith.mulf %32, %20 : vector<8x128xf32>
    %34 = arith.addf %33, %23 : vector<8x128xf32>
    %35 = vector.extract_strided_slice %34 {offsets = [0, 0], sizes = [8, 32], strides = [1, 1]} : vector<8x128xf32> to vector<8x32xf32>
    %36 = vector.extract_strided_slice %34 {offsets = [0, 32], sizes = [8, 32], strides = [1, 1]} : vector<8x128xf32> to vector<8x32xf32>
    %37 = vector.extract_strided_slice %34 {offsets = [0, 64], sizes = [8, 32], strides = [1, 1]} : vector<8x128xf32> to vector<8x32xf32>
    %38 = vector.extract_strided_slice %34 {offsets = [0, 96], sizes = [8, 32], strides = [1, 1]} : vector<8x128xf32> to vector<8x32xf32>
    %39 = arith.mulf %36, %26 : vector<8x32xf32>
    %40 = arith.mulf %35, %37 : vector<8x32xf32>
    %41 = arith.addf %39, %40 : vector<8x32xf32>
    %42 = math.tanh %41 : vector<8x32xf32>
    %43 = arith.mulf %38, %42 : vector<8x32xf32>
    %c0_24 = arith.constant 0 : index
    %c1 = arith.constant 1 : index
    %c0_25 = arith.constant 0 : index
    %44 = vector.load %arg9[%c0_24, %c1, %c0_25] : memref<8x16x128xf32, #tpu.memory_space<vmem>>, vector<8x1x128xf32>
    %45 = vector.shape_cast %44 : vector<8x1x128xf32> to vector<8x128xf32>
    %46 = arith.truncf %43 : vector<8x32xf32> to vector<8x32xbf16>
    %cst_26 = arith.constant dense<0.000000e+00> : vector<8x128xf32>
    %47 = tpu.matmul %46, %24, %cst_26 {dimension_numbers = #tpu.dot_dimension_numbers<[1], [0], [0], [1], [0, 0, 1, 1], [], []>} : vector<8x32xbf16>, vector<32x128xbf16>, vector<8x128xf32> -> vector<8x128xf32>
    %48 = arith.addf %45, %47 : vector<8x128xf32>
    %49 = math.tanh %48 : vector<8x128xf32>
    %50 = arith.mulf %49, %20 : vector<8x128xf32>
    %51 = arith.addf %50, %23 : vector<8x128xf32>
    %52 = vector.extract_strided_slice %51 {offsets = [0, 0], sizes = [8, 32], strides = [1, 1]} : vector<8x128xf32> to vector<8x32xf32>
    %53 = vector.extract_strided_slice %51 {offsets = [0, 32], sizes = [8, 32], strides = [1, 1]} : vector<8x128xf32> to vector<8x32xf32>
    %54 = vector.extract_strided_slice %51 {offsets = [0, 64], sizes = [8, 32], strides = [1, 1]} : vector<8x128xf32> to vector<8x32xf32>
    %55 = vector.extract_strided_slice %51 {offsets = [0, 96], sizes = [8, 32], strides = [1, 1]} : vector<8x128xf32> to vector<8x32xf32>
    %56 = arith.mulf %53, %41 : vector<8x32xf32>
    %57 = arith.mulf %52, %54 : vector<8x32xf32>
    %58 = arith.addf %56, %57 : vector<8x32xf32>
    %59 = math.tanh %58 : vector<8x32xf32>
    %60 = arith.mulf %55, %59 : vector<8x32xf32>
    %c0_27 = arith.constant 0 : index
    %c2 = arith.constant 2 : index
    %c0_28 = arith.constant 0 : index
    %61 = vector.load %arg9[%c0_27, %c2, %c0_28] : memref<8x16x128xf32, #tpu.memory_space<vmem>>, vector<8x1x128xf32>
    %62 = vector.shape_cast %61 : vector<8x1x128xf32> to vector<8x128xf32>
    %63 = arith.truncf %60 : vector<8x32xf32> to vector<8x32xbf16>
    %cst_29 = arith.constant dense<0.000000e+00> : vector<8x128xf32>
    %64 = tpu.matmul %63, %24, %cst_29 {dimension_numbers = #tpu.dot_dimension_numbers<[1], [0], [0], [1], [0, 0, 1, 1], [], []>} : vector<8x32xbf16>, vector<32x128xbf16>, vector<8x128xf32> -> vector<8x128xf32>
    %65 = arith.addf %62, %64 : vector<8x128xf32>
    %66 = math.tanh %65 : vector<8x128xf32>
    %67 = arith.mulf %66, %20 : vector<8x128xf32>
    %68 = arith.addf %67, %23 : vector<8x128xf32>
    %69 = vector.extract_strided_slice %68 {offsets = [0, 0], sizes = [8, 32], strides = [1, 1]} : vector<8x128xf32> to vector<8x32xf32>
    %70 = vector.extract_strided_slice %68 {offsets = [0, 32], sizes = [8, 32], strides = [1, 1]} : vector<8x128xf32> to vector<8x32xf32>
    %71 = vector.extract_strided_slice %68 {offsets = [0, 64], sizes = [8, 32], strides = [1, 1]} : vector<8x128xf32> to vector<8x32xf32>
    %72 = vector.extract_strided_slice %68 {offsets = [0, 96], sizes = [8, 32], strides = [1, 1]} : vector<8x128xf32> to vector<8x32xf32>
    %73 = arith.mulf %70, %58 : vector<8x32xf32>
    %74 = arith.mulf %69, %71 : vector<8x32xf32>
    %75 = arith.addf %73, %74 : vector<8x32xf32>
    %76 = math.tanh %75 : vector<8x32xf32>
    %77 = arith.mulf %72, %76 : vector<8x32xf32>
    %c0_30 = arith.constant 0 : index
    %c3 = arith.constant 3 : index
    %c0_31 = arith.constant 0 : index
    %78 = vector.load %arg9[%c0_30, %c3, %c0_31] : memref<8x16x128xf32, #tpu.memory_space<vmem>>, vector<8x1x128xf32>
    %79 = vector.shape_cast %78 : vector<8x1x128xf32> to vector<8x128xf32>
    %80 = arith.truncf %77 : vector<8x32xf32> to vector<8x32xbf16>
    %cst_32 = arith.constant dense<0.000000e+00> : vector<8x128xf32>
    %81 = tpu.matmul %80, %24, %cst_32 {dimension_numbers = #tpu.dot_dimension_numbers<[1], [0], [0], [1], [0, 0, 1, 1], [], []>} : vector<8x32xbf16>, vector<32x128xbf16>, vector<8x128xf32> -> vector<8x128xf32>
    %82 = arith.addf %79, %81 : vector<8x128xf32>
    %83 = math.tanh %82 : vector<8x128xf32>
    %84 = arith.mulf %83, %20 : vector<8x128xf32>
    %85 = arith.addf %84, %23 : vector<8x128xf32>
    %86 = vector.extract_strided_slice %85 {offsets = [0, 0], sizes = [8, 32], strides = [1, 1]} : vector<8x128xf32> to vector<8x32xf32>
    %87 = vector.extract_strided_slice %85 {offsets = [0, 32], sizes = [8, 32], strides = [1, 1]} : vector<8x128xf32> to vector<8x32xf32>
    %88 = vector.extract_strided_slice %85 {offsets = [0, 64], sizes = [8, 32], strides = [1, 1]} : vector<8x128xf32> to vector<8x32xf32>
    %89 = vector.extract_strided_slice %85 {offsets = [0, 96], sizes = [8, 32], strides = [1, 1]} : vector<8x128xf32> to vector<8x32xf32>
    %90 = arith.mulf %87, %75 : vector<8x32xf32>
    %91 = arith.mulf %86, %88 : vector<8x32xf32>
    %92 = arith.addf %90, %91 : vector<8x32xf32>
    %93 = math.tanh %92 : vector<8x32xf32>
    %94 = arith.mulf %89, %93 : vector<8x32xf32>
    %c0_33 = arith.constant 0 : index
    %c4 = arith.constant 4 : index
    %c0_34 = arith.constant 0 : index
    %95 = vector.load %arg9[%c0_33, %c4, %c0_34] : memref<8x16x128xf32, #tpu.memory_space<vmem>>, vector<8x1x128xf32>
    %96 = vector.shape_cast %95 : vector<8x1x128xf32> to vector<8x128xf32>
    %97 = arith.truncf %94 : vector<8x32xf32> to vector<8x32xbf16>
    %cst_35 = arith.constant dense<0.000000e+00> : vector<8x128xf32>
    %98 = tpu.matmul %97, %24, %cst_35 {dimension_numbers = #tpu.dot_dimension_numbers<[1], [0], [0], [1], [0, 0, 1, 1], [], []>} : vector<8x32xbf16>, vector<32x128xbf16>, vector<8x128xf32> -> vector<8x128xf32>
    %99 = arith.addf %96, %98 : vector<8x128xf32>
    %100 = math.tanh %99 : vector<8x128xf32>
    %101 = arith.mulf %100, %20 : vector<8x128xf32>
    %102 = arith.addf %101, %23 : vector<8x128xf32>
    %103 = vector.extract_strided_slice %102 {offsets = [0, 0], sizes = [8, 32], strides = [1, 1]} : vector<8x128xf32> to vector<8x32xf32>
    %104 = vector.extract_strided_slice %102 {offsets = [0, 32], sizes = [8, 32], strides = [1, 1]} : vector<8x128xf32> to vector<8x32xf32>
    %105 = vector.extract_strided_slice %102 {offsets = [0, 64], sizes = [8, 32], strides = [1, 1]} : vector<8x128xf32> to vector<8x32xf32>
    %106 = vector.extract_strided_slice %102 {offsets = [0, 96], sizes = [8, 32], strides = [1, 1]} : vector<8x128xf32> to vector<8x32xf32>
    %107 = arith.mulf %104, %92 : vector<8x32xf32>
    %108 = arith.mulf %103, %105 : vector<8x32xf32>
    %109 = arith.addf %107, %108 : vector<8x32xf32>
    %110 = math.tanh %109 : vector<8x32xf32>
    %111 = arith.mulf %106, %110 : vector<8x32xf32>
    %c0_36 = arith.constant 0 : index
    %c5 = arith.constant 5 : index
    %c0_37 = arith.constant 0 : index
    %112 = vector.load %arg9[%c0_36, %c5, %c0_37] : memref<8x16x128xf32, #tpu.memory_space<vmem>>, vector<8x1x128xf32>
    %113 = vector.shape_cast %112 : vector<8x1x128xf32> to vector<8x128xf32>
    %114 = arith.truncf %111 : vector<8x32xf32> to vector<8x32xbf16>
    %cst_38 = arith.constant dense<0.000000e+00> : vector<8x128xf32>
    %115 = tpu.matmul %114, %24, %cst_38 {dimension_numbers = #tpu.dot_dimension_numbers<[1], [0], [0], [1], [0, 0, 1, 1], [], []>} : vector<8x32xbf16>, vector<32x128xbf16>, vector<8x128xf32> -> vector<8x128xf32>
    %116 = arith.addf %113, %115 : vector<8x128xf32>
    %117 = math.tanh %116 : vector<8x128xf32>
    %118 = arith.mulf %117, %20 : vector<8x128xf32>
    %119 = arith.addf %118, %23 : vector<8x128xf32>
    %120 = vector.extract_strided_slice %119 {offsets = [0, 0], sizes = [8, 32], strides = [1, 1]} : vector<8x128xf32> to vector<8x32xf32>
    %121 = vector.extract_strided_slice %119 {offsets = [0, 32], sizes = [8, 32], strides = [1, 1]} : vector<8x128xf32> to vector<8x32xf32>
    %122 = vector.extract_strided_slice %119 {offsets = [0, 64], sizes = [8, 32], strides = [1, 1]} : vector<8x128xf32> to vector<8x32xf32>
    %123 = vector.extract_strided_slice %119 {offsets = [0, 96], sizes = [8, 32], strides = [1, 1]} : vector<8x128xf32> to vector<8x32xf32>
    %124 = arith.mulf %121, %109 : vector<8x32xf32>
    %125 = arith.mulf %120, %122 : vector<8x32xf32>
    %126 = arith.addf %124, %125 : vector<8x32xf32>
    %127 = math.tanh %126 : vector<8x32xf32>
    %128 = arith.mulf %123, %127 : vector<8x32xf32>
    %c0_39 = arith.constant 0 : index
    %c6 = arith.constant 6 : index
    %c0_40 = arith.constant 0 : index
    %129 = vector.load %arg9[%c0_39, %c6, %c0_40] : memref<8x16x128xf32, #tpu.memory_space<vmem>>, vector<8x1x128xf32>
    %130 = vector.shape_cast %129 : vector<8x1x128xf32> to vector<8x128xf32>
    %131 = arith.truncf %128 : vector<8x32xf32> to vector<8x32xbf16>
    %cst_41 = arith.constant dense<0.000000e+00> : vector<8x128xf32>
    %132 = tpu.matmul %131, %24, %cst_41 {dimension_numbers = #tpu.dot_dimension_numbers<[1], [0], [0], [1], [0, 0, 1, 1], [], []>} : vector<8x32xbf16>, vector<32x128xbf16>, vector<8x128xf32> -> vector<8x128xf32>
    %133 = arith.addf %130, %132 : vector<8x128xf32>
    %134 = math.tanh %133 : vector<8x128xf32>
    %135 = arith.mulf %134, %20 : vector<8x128xf32>
    %136 = arith.addf %135, %23 : vector<8x128xf32>
    %137 = vector.extract_strided_slice %136 {offsets = [0, 0], sizes = [8, 32], strides = [1, 1]} : vector<8x128xf32> to vector<8x32xf32>
    %138 = vector.extract_strided_slice %136 {offsets = [0, 32], sizes = [8, 32], strides = [1, 1]} : vector<8x128xf32> to vector<8x32xf32>
    %139 = vector.extract_strided_slice %136 {offsets = [0, 64], sizes = [8, 32], strides = [1, 1]} : vector<8x128xf32> to vector<8x32xf32>
    %140 = vector.extract_strided_slice %136 {offsets = [0, 96], sizes = [8, 32], strides = [1, 1]} : vector<8x128xf32> to vector<8x32xf32>
    %141 = arith.mulf %138, %126 : vector<8x32xf32>
    %142 = arith.mulf %137, %139 : vector<8x32xf32>
    %143 = arith.addf %141, %142 : vector<8x32xf32>
    %144 = math.tanh %143 : vector<8x32xf32>
    %145 = arith.mulf %140, %144 : vector<8x32xf32>
    %c0_42 = arith.constant 0 : index
    %c7 = arith.constant 7 : index
    %c0_43 = arith.constant 0 : index
    %146 = vector.load %arg9[%c0_42, %c7, %c0_43] : memref<8x16x128xf32, #tpu.memory_space<vmem>>, vector<8x1x128xf32>
    %147 = vector.shape_cast %146 : vector<8x1x128xf32> to vector<8x128xf32>
    %148 = arith.truncf %145 : vector<8x32xf32> to vector<8x32xbf16>
    %cst_44 = arith.constant dense<0.000000e+00> : vector<8x128xf32>
    %149 = tpu.matmul %148, %24, %cst_44 {dimension_numbers = #tpu.dot_dimension_numbers<[1], [0], [0], [1], [0, 0, 1, 1], [], []>} : vector<8x32xbf16>, vector<32x128xbf16>, vector<8x128xf32> -> vector<8x128xf32>
    %150 = arith.addf %147, %149 : vector<8x128xf32>
    %151 = math.tanh %150 : vector<8x128xf32>
    %152 = arith.mulf %151, %20 : vector<8x128xf32>
    %153 = arith.addf %152, %23 : vector<8x128xf32>
    %154 = vector.extract_strided_slice %153 {offsets = [0, 0], sizes = [8, 32], strides = [1, 1]} : vector<8x128xf32> to vector<8x32xf32>
    %155 = vector.extract_strided_slice %153 {offsets = [0, 32], sizes = [8, 32], strides = [1, 1]} : vector<8x128xf32> to vector<8x32xf32>
    %156 = vector.extract_strided_slice %153 {offsets = [0, 64], sizes = [8, 32], strides = [1, 1]} : vector<8x128xf32> to vector<8x32xf32>
    %157 = vector.extract_strided_slice %153 {offsets = [0, 96], sizes = [8, 32], strides = [1, 1]} : vector<8x128xf32> to vector<8x32xf32>
    %158 = arith.mulf %155, %143 : vector<8x32xf32>
    %159 = arith.mulf %154, %156 : vector<8x32xf32>
    %160 = arith.addf %158, %159 : vector<8x32xf32>
    %161 = math.tanh %160 : vector<8x32xf32>
    %162 = arith.mulf %157, %161 : vector<8x32xf32>
    %c0_45 = arith.constant 0 : index
    %c8 = arith.constant 8 : index
    %c0_46 = arith.constant 0 : index
    %163 = vector.load %arg9[%c0_45, %c8, %c0_46] : memref<8x16x128xf32, #tpu.memory_space<vmem>>, vector<8x1x128xf32>
    %164 = vector.shape_cast %163 : vector<8x1x128xf32> to vector<8x128xf32>
    %165 = arith.truncf %162 : vector<8x32xf32> to vector<8x32xbf16>
    %cst_47 = arith.constant dense<0.000000e+00> : vector<8x128xf32>
    %166 = tpu.matmul %165, %24, %cst_47 {dimension_numbers = #tpu.dot_dimension_numbers<[1], [0], [0], [1], [0, 0, 1, 1], [], []>} : vector<8x32xbf16>, vector<32x128xbf16>, vector<8x128xf32> -> vector<8x128xf32>
    %167 = arith.addf %164, %166 : vector<8x128xf32>
    %168 = math.tanh %167 : vector<8x128xf32>
    %169 = arith.mulf %168, %20 : vector<8x128xf32>
    %170 = arith.addf %169, %23 : vector<8x128xf32>
    %171 = vector.extract_strided_slice %170 {offsets = [0, 0], sizes = [8, 32], strides = [1, 1]} : vector<8x128xf32> to vector<8x32xf32>
    %172 = vector.extract_strided_slice %170 {offsets = [0, 32], sizes = [8, 32], strides = [1, 1]} : vector<8x128xf32> to vector<8x32xf32>
    %173 = vector.extract_strided_slice %170 {offsets = [0, 64], sizes = [8, 32], strides = [1, 1]} : vector<8x128xf32> to vector<8x32xf32>
    %174 = vector.extract_strided_slice %170 {offsets = [0, 96], sizes = [8, 32], strides = [1, 1]} : vector<8x128xf32> to vector<8x32xf32>
    %175 = arith.mulf %172, %160 : vector<8x32xf32>
    %176 = arith.mulf %171, %173 : vector<8x32xf32>
    %177 = arith.addf %175, %176 : vector<8x32xf32>
    %178 = math.tanh %177 : vector<8x32xf32>
    %179 = arith.mulf %174, %178 : vector<8x32xf32>
    %c0_48 = arith.constant 0 : index
    %c9 = arith.constant 9 : index
    %c0_49 = arith.constant 0 : index
    %180 = vector.load %arg9[%c0_48, %c9, %c0_49] : memref<8x16x128xf32, #tpu.memory_space<vmem>>, vector<8x1x128xf32>
    %181 = vector.shape_cast %180 : vector<8x1x128xf32> to vector<8x128xf32>
    %182 = arith.truncf %179 : vector<8x32xf32> to vector<8x32xbf16>
    %cst_50 = arith.constant dense<0.000000e+00> : vector<8x128xf32>
    %183 = tpu.matmul %182, %24, %cst_50 {dimension_numbers = #tpu.dot_dimension_numbers<[1], [0], [0], [1], [0, 0, 1, 1], [], []>} : vector<8x32xbf16>, vector<32x128xbf16>, vector<8x128xf32> -> vector<8x128xf32>
    %184 = arith.addf %181, %183 : vector<8x128xf32>
    %185 = math.tanh %184 : vector<8x128xf32>
    %186 = arith.mulf %185, %20 : vector<8x128xf32>
    %187 = arith.addf %186, %23 : vector<8x128xf32>
    %188 = vector.extract_strided_slice %187 {offsets = [0, 0], sizes = [8, 32], strides = [1, 1]} : vector<8x128xf32> to vector<8x32xf32>
    %189 = vector.extract_strided_slice %187 {offsets = [0, 32], sizes = [8, 32], strides = [1, 1]} : vector<8x128xf32> to vector<8x32xf32>
    %190 = vector.extract_strided_slice %187 {offsets = [0, 64], sizes = [8, 32], strides = [1, 1]} : vector<8x128xf32> to vector<8x32xf32>
    %191 = vector.extract_strided_slice %187 {offsets = [0, 96], sizes = [8, 32], strides = [1, 1]} : vector<8x128xf32> to vector<8x32xf32>
    %192 = arith.mulf %189, %177 : vector<8x32xf32>
    %193 = arith.mulf %188, %190 : vector<8x32xf32>
    %194 = arith.addf %192, %193 : vector<8x32xf32>
    %195 = math.tanh %194 : vector<8x32xf32>
    %196 = arith.mulf %191, %195 : vector<8x32xf32>
    %c0_51 = arith.constant 0 : index
    %c10 = arith.constant 10 : index
    %c0_52 = arith.constant 0 : index
    %197 = vector.load %arg9[%c0_51, %c10, %c0_52] : memref<8x16x128xf32, #tpu.memory_space<vmem>>, vector<8x1x128xf32>
    %198 = vector.shape_cast %197 : vector<8x1x128xf32> to vector<8x128xf32>
    %199 = arith.truncf %196 : vector<8x32xf32> to vector<8x32xbf16>
    %cst_53 = arith.constant dense<0.000000e+00> : vector<8x128xf32>
    %200 = tpu.matmul %199, %24, %cst_53 {dimension_numbers = #tpu.dot_dimension_numbers<[1], [0], [0], [1], [0, 0, 1, 1], [], []>} : vector<8x32xbf16>, vector<32x128xbf16>, vector<8x128xf32> -> vector<8x128xf32>
    %201 = arith.addf %198, %200 : vector<8x128xf32>
    %202 = math.tanh %201 : vector<8x128xf32>
    %203 = arith.mulf %202, %20 : vector<8x128xf32>
    %204 = arith.addf %203, %23 : vector<8x128xf32>
    %205 = vector.extract_strided_slice %204 {offsets = [0, 0], sizes = [8, 32], strides = [1, 1]} : vector<8x128xf32> to vector<8x32xf32>
    %206 = vector.extract_strided_slice %204 {offsets = [0, 32], sizes = [8, 32], strides = [1, 1]} : vector<8x128xf32> to vector<8x32xf32>
    %207 = vector.extract_strided_slice %204 {offsets = [0, 64], sizes = [8, 32], strides = [1, 1]} : vector<8x128xf32> to vector<8x32xf32>
    %208 = vector.extract_strided_slice %204 {offsets = [0, 96], sizes = [8, 32], strides = [1, 1]} : vector<8x128xf32> to vector<8x32xf32>
    %209 = arith.mulf %206, %194 : vector<8x32xf32>
    %210 = arith.mulf %205, %207 : vector<8x32xf32>
    %211 = arith.addf %209, %210 : vector<8x32xf32>
    %212 = math.tanh %211 : vector<8x32xf32>
    %213 = arith.mulf %208, %212 : vector<8x32xf32>
    %c0_54 = arith.constant 0 : index
    %c11 = arith.constant 11 : index
    %c0_55 = arith.constant 0 : index
    %214 = vector.load %arg9[%c0_54, %c11, %c0_55] : memref<8x16x128xf32, #tpu.memory_space<vmem>>, vector<8x1x128xf32>
    %215 = vector.shape_cast %214 : vector<8x1x128xf32> to vector<8x128xf32>
    %216 = arith.truncf %213 : vector<8x32xf32> to vector<8x32xbf16>
    %cst_56 = arith.constant dense<0.000000e+00> : vector<8x128xf32>
    %217 = tpu.matmul %216, %24, %cst_56 {dimension_numbers = #tpu.dot_dimension_numbers<[1], [0], [0], [1], [0, 0, 1, 1], [], []>} : vector<8x32xbf16>, vector<32x128xbf16>, vector<8x128xf32> -> vector<8x128xf32>
    %218 = arith.addf %215, %217 : vector<8x128xf32>
    %219 = math.tanh %218 : vector<8x128xf32>
    %220 = arith.mulf %219, %20 : vector<8x128xf32>
    %221 = arith.addf %220, %23 : vector<8x128xf32>
    %222 = vector.extract_strided_slice %221 {offsets = [0, 0], sizes = [8, 32], strides = [1, 1]} : vector<8x128xf32> to vector<8x32xf32>
    %223 = vector.extract_strided_slice %221 {offsets = [0, 32], sizes = [8, 32], strides = [1, 1]} : vector<8x128xf32> to vector<8x32xf32>
    %224 = vector.extract_strided_slice %221 {offsets = [0, 64], sizes = [8, 32], strides = [1, 1]} : vector<8x128xf32> to vector<8x32xf32>
    %225 = vector.extract_strided_slice %221 {offsets = [0, 96], sizes = [8, 32], strides = [1, 1]} : vector<8x128xf32> to vector<8x32xf32>
    %226 = arith.mulf %223, %211 : vector<8x32xf32>
    %227 = arith.mulf %222, %224 : vector<8x32xf32>
    %228 = arith.addf %226, %227 : vector<8x32xf32>
    %229 = math.tanh %228 : vector<8x32xf32>
    %230 = arith.mulf %225, %229 : vector<8x32xf32>
    %c0_57 = arith.constant 0 : index
    %c12 = arith.constant 12 : index
    %c0_58 = arith.constant 0 : index
    %231 = vector.load %arg9[%c0_57, %c12, %c0_58] : memref<8x16x128xf32, #tpu.memory_space<vmem>>, vector<8x1x128xf32>
    %232 = vector.shape_cast %231 : vector<8x1x128xf32> to vector<8x128xf32>
    %233 = arith.truncf %230 : vector<8x32xf32> to vector<8x32xbf16>
    %cst_59 = arith.constant dense<0.000000e+00> : vector<8x128xf32>
    %234 = tpu.matmul %233, %24, %cst_59 {dimension_numbers = #tpu.dot_dimension_numbers<[1], [0], [0], [1], [0, 0, 1, 1], [], []>} : vector<8x32xbf16>, vector<32x128xbf16>, vector<8x128xf32> -> vector<8x128xf32>
    %235 = arith.addf %232, %234 : vector<8x128xf32>
    %236 = math.tanh %235 : vector<8x128xf32>
    %237 = arith.mulf %236, %20 : vector<8x128xf32>
    %238 = arith.addf %237, %23 : vector<8x128xf32>
    %239 = vector.extract_strided_slice %238 {offsets = [0, 0], sizes = [8, 32], strides = [1, 1]} : vector<8x128xf32> to vector<8x32xf32>
    %240 = vector.extract_strided_slice %238 {offsets = [0, 32], sizes = [8, 32], strides = [1, 1]} : vector<8x128xf32> to vector<8x32xf32>
    %241 = vector.extract_strided_slice %238 {offsets = [0, 64], sizes = [8, 32], strides = [1, 1]} : vector<8x128xf32> to vector<8x32xf32>
    %242 = vector.extract_strided_slice %238 {offsets = [0, 96], sizes = [8, 32], strides = [1, 1]} : vector<8x128xf32> to vector<8x32xf32>
    %243 = arith.mulf %240, %228 : vector<8x32xf32>
    %244 = arith.mulf %239, %241 : vector<8x32xf32>
    %245 = arith.addf %243, %244 : vector<8x32xf32>
    %246 = math.tanh %245 : vector<8x32xf32>
    %247 = arith.mulf %242, %246 : vector<8x32xf32>
    %c0_60 = arith.constant 0 : index
    %c13 = arith.constant 13 : index
    %c0_61 = arith.constant 0 : index
    %248 = vector.load %arg9[%c0_60, %c13, %c0_61] : memref<8x16x128xf32, #tpu.memory_space<vmem>>, vector<8x1x128xf32>
    %249 = vector.shape_cast %248 : vector<8x1x128xf32> to vector<8x128xf32>
    %250 = arith.truncf %247 : vector<8x32xf32> to vector<8x32xbf16>
    %cst_62 = arith.constant dense<0.000000e+00> : vector<8x128xf32>
    %251 = tpu.matmul %250, %24, %cst_62 {dimension_numbers = #tpu.dot_dimension_numbers<[1], [0], [0], [1], [0, 0, 1, 1], [], []>} : vector<8x32xbf16>, vector<32x128xbf16>, vector<8x128xf32> -> vector<8x128xf32>
    %252 = arith.addf %249, %251 : vector<8x128xf32>
    %253 = math.tanh %252 : vector<8x128xf32>
    %254 = arith.mulf %253, %20 : vector<8x128xf32>
    %255 = arith.addf %254, %23 : vector<8x128xf32>
    %256 = vector.extract_strided_slice %255 {offsets = [0, 0], sizes = [8, 32], strides = [1, 1]} : vector<8x128xf32> to vector<8x32xf32>
    %257 = vector.extract_strided_slice %255 {offsets = [0, 32], sizes = [8, 32], strides = [1, 1]} : vector<8x128xf32> to vector<8x32xf32>
    %258 = vector.extract_strided_slice %255 {offsets = [0, 64], sizes = [8, 32], strides = [1, 1]} : vector<8x128xf32> to vector<8x32xf32>
    %259 = vector.extract_strided_slice %255 {offsets = [0, 96], sizes = [8, 32], strides = [1, 1]} : vector<8x128xf32> to vector<8x32xf32>
    %260 = arith.mulf %257, %245 : vector<8x32xf32>
    %261 = arith.mulf %256, %258 : vector<8x32xf32>
    %262 = arith.addf %260, %261 : vector<8x32xf32>
    %263 = math.tanh %262 : vector<8x32xf32>
    %264 = arith.mulf %259, %263 : vector<8x32xf32>
    %c0_63 = arith.constant 0 : index
    %c14 = arith.constant 14 : index
    %c0_64 = arith.constant 0 : index
    %265 = vector.load %arg9[%c0_63, %c14, %c0_64] : memref<8x16x128xf32, #tpu.memory_space<vmem>>, vector<8x1x128xf32>
    %266 = vector.shape_cast %265 : vector<8x1x128xf32> to vector<8x128xf32>
    %267 = arith.truncf %264 : vector<8x32xf32> to vector<8x32xbf16>
    %cst_65 = arith.constant dense<0.000000e+00> : vector<8x128xf32>
    %268 = tpu.matmul %267, %24, %cst_65 {dimension_numbers = #tpu.dot_dimension_numbers<[1], [0], [0], [1], [0, 0, 1, 1], [], []>} : vector<8x32xbf16>, vector<32x128xbf16>, vector<8x128xf32> -> vector<8x128xf32>
    %269 = arith.addf %266, %268 : vector<8x128xf32>
    %270 = math.tanh %269 : vector<8x128xf32>
    %271 = arith.mulf %270, %20 : vector<8x128xf32>
    %272 = arith.addf %271, %23 : vector<8x128xf32>
    %273 = vector.extract_strided_slice %272 {offsets = [0, 0], sizes = [8, 32], strides = [1, 1]} : vector<8x128xf32> to vector<8x32xf32>
    %274 = vector.extract_strided_slice %272 {offsets = [0, 32], sizes = [8, 32], strides = [1, 1]} : vector<8x128xf32> to vector<8x32xf32>
    %275 = vector.extract_strided_slice %272 {offsets = [0, 64], sizes = [8, 32], strides = [1, 1]} : vector<8x128xf32> to vector<8x32xf32>
    %276 = vector.extract_strided_slice %272 {offsets = [0, 96], sizes = [8, 32], strides = [1, 1]} : vector<8x128xf32> to vector<8x32xf32>
    %277 = arith.mulf %274, %262 : vector<8x32xf32>
    %278 = arith.mulf %273, %275 : vector<8x32xf32>
    %279 = arith.addf %277, %278 : vector<8x32xf32>
    %280 = math.tanh %279 : vector<8x32xf32>
    %281 = arith.mulf %276, %280 : vector<8x32xf32>
    %c0_66 = arith.constant 0 : index
    %c15 = arith.constant 15 : index
    %c0_67 = arith.constant 0 : index
    %282 = vector.load %arg9[%c0_66, %c15, %c0_67] : memref<8x16x128xf32, #tpu.memory_space<vmem>>, vector<8x1x128xf32>
    %283 = vector.shape_cast %282 : vector<8x1x128xf32> to vector<8x128xf32>
    %284 = arith.truncf %281 : vector<8x32xf32> to vector<8x32xbf16>
    %cst_68 = arith.constant dense<0.000000e+00> : vector<8x128xf32>
    %285 = tpu.matmul %284, %24, %cst_68 {dimension_numbers = #tpu.dot_dimension_numbers<[1], [0], [0], [1], [0, 0, 1, 1], [], []>} : vector<8x32xbf16>, vector<32x128xbf16>, vector<8x128xf32> -> vector<8x128xf32>
    %286 = arith.addf %283, %285 : vector<8x128xf32>
    %287 = math.tanh %286 : vector<8x128xf32>
    %288 = arith.mulf %287, %20 : vector<8x128xf32>
    %289 = arith.addf %288, %23 : vector<8x128xf32>
    %290 = vector.extract_strided_slice %289 {offsets = [0, 0], sizes = [8, 32], strides = [1, 1]} : vector<8x128xf32> to vector<8x32xf32>
    %291 = vector.extract_strided_slice %289 {offsets = [0, 32], sizes = [8, 32], strides = [1, 1]} : vector<8x128xf32> to vector<8x32xf32>
    %292 = vector.extract_strided_slice %289 {offsets = [0, 64], sizes = [8, 32], strides = [1, 1]} : vector<8x128xf32> to vector<8x32xf32>
    %293 = vector.extract_strided_slice %289 {offsets = [0, 96], sizes = [8, 32], strides = [1, 1]} : vector<8x128xf32> to vector<8x32xf32>
    %294 = arith.mulf %291, %279 : vector<8x32xf32>
    %295 = arith.mulf %290, %292 : vector<8x32xf32>
    %296 = arith.addf %294, %295 : vector<8x32xf32>
    %297 = math.tanh %296 : vector<8x32xf32>
    %298 = arith.mulf %293, %297 : vector<8x32xf32>
    %c0_69 = arith.constant 0 : index
    %c0_70 = arith.constant 0 : index
    %299 = vector.load %arg10[%c0_69, %c0_70] : memref<8x32xf32, #tpu.memory_space<vmem>>, vector<8x32xf32>
    tpu.vector_store %arg10[%c0_69, %c0_70], %298 {strides = array<i32>} : memref<8x32xf32, #tpu.memory_space<vmem>>, vector<8x32xf32>,
    %c0_71 = arith.constant 0 : index
    %c0_72 = arith.constant 0 : index
    %300 = vector.load %arg11[%c0_71, %c0_72] : memref<8x32xf32, #tpu.memory_space<vmem>>, vector<8x32xf32>
    tpu.vector_store %arg11[%c0_71, %c0_72], %296 {strides = array<i32>} : memref<8x32xf32, #tpu.memory_space<vmem>>, vector<8x32xf32>,
    %c1_i32 = arith.constant 1 : i32
    %301 = arith.cmpi eq, %arg1, %c1_i32 : i32
    %302 = arith.extui %301 : i1 to i32
    %c0_i32_73 = arith.constant 0 : i32
    %303 = arith.cmpi ne, %302, %c0_i32_73 : i32
    scf.if %303 {
      %304 = arith.truncf %298 : vector<8x32xf32> to vector<8x32xbf16>
      %c0_74 = arith.constant 0 : index
      %c0_75 = arith.constant 0 : index
      %305 = vector.load %arg6[%c0_74, %c0_75] : memref<32x128xbf16, #tpu.memory_space<vmem>>, vector<32x128xbf16>
      %cst_76 = arith.constant dense<0.000000e+00> : vector<8x128xf32>
      %306 = tpu.matmul %304, %305, %cst_76 {dimension_numbers = #tpu.dot_dimension_numbers<[1], [0], [0], [1], [0, 0, 1, 1], [], []>} : vector<8x32xbf16>, vector<32x128xbf16>, vector<8x128xf32> -> vector<8x128xf32>
      %c0_77 = arith.constant 0 : index
      %c0_78 = arith.constant 0 : index
      %307 = vector.load %arg7[%c0_77, %c0_78] : memref<1x128xf32, #tpu.memory_space<vmem>>, vector<1x128xf32>
      %308 = vector.broadcast %307 : vector<1x128xf32> to vector<8x128xf32>
      %309 = arith.addf %306, %308 : vector<8x128xf32>
      %c0_79 = arith.constant 0 : index
      %c0_80 = arith.constant 0 : index
      %310 = vector.load %arg8[%c0_79, %c0_80] : memref<8x128xf32, #tpu.memory_space<vmem>>, vector<8x128xf32>
      tpu.vector_store %arg8[%c0_79, %c0_80], %309 {strides = array<i32>} : memref<8x128xf32, #tpu.memory_space<vmem>>, vector<8x128xf32>,
    } else {
    }
    return
  }
  func.func @transform_0(%arg0: i32, %arg1: i32) -> (i32, i32, i32) {
    %c0_i32 = arith.constant 0 : i32
    %c0_i32_0 = arith.constant 0 : i32
    return %arg0, %arg1, %c0_i32 : i32, i32, i32
  }
  func.func @transform_1(%arg0: i32, %arg1: i32) -> (i32, i32) {
    %c0_i32 = arith.constant 0 : i32
    %c0_i32_0 = arith.constant 0 : i32
    %c0_i32_1 = arith.constant 0 : i32
    return %c0_i32, %c0_i32_0 : i32, i32
  }
  func.func @transform_2(%arg0: i32, %arg1: i32) -> (i32, i32) {
    %c0_i32 = arith.constant 0 : i32
    %c0_i32_0 = arith.constant 0 : i32
    %c0_i32_1 = arith.constant 0 : i32
    return %c0_i32, %c0_i32_0 : i32, i32
  }
  func.func @transform_3(%arg0: i32, %arg1: i32) -> (i32, i32) {
    %c0_i32 = arith.constant 0 : i32
    %c0_i32_0 = arith.constant 0 : i32
    %c0_i32_1 = arith.constant 0 : i32
    return %c0_i32, %c0_i32_0 : i32, i32
  }
  func.func @transform_4(%arg0: i32, %arg1: i32) -> (i32, i32) {
    %c0_i32 = arith.constant 0 : i32
    %c0_i32_0 = arith.constant 0 : i32
    %c0_i32_1 = arith.constant 0 : i32
    return %c0_i32, %c0_i32_0 : i32, i32
  }
  func.func @transform_5(%arg0: i32, %arg1: i32) -> (i32, i32) {
    %c0_i32 = arith.constant 0 : i32
    %c0_i32_0 = arith.constant 0 : i32
    %c0_i32_1 = arith.constant 0 : i32
    return %c0_i32, %c0_i32_0 : i32, i32
  }
  func.func @transform_6(%arg0: i32, %arg1: i32) -> (i32, i32) {
    %c0_i32 = arith.constant 0 : i32
    %c0_i32_0 = arith.constant 0 : i32
    return %arg0, %c0_i32 : i32, i32
  }
}

</mosaic_0001>

<llo_original>
// kernel: tpu_custom_call.1
$region0: #{tpu_custom_call.1}
  #allocation0 [shape = 'u32[]', space=smem, size = 0x4, offset = 0x4, fixed_abs, tag = 'smem constant byte address 0x4 - core index']
  #allocation1 [shape = 'u32[72,128]{1,0:T(1,128)}', space=vmem, size = 0x9000, scoped, tag = 'internal scratch']
  #allocation2 [shape = 'f32[8,16,128]{2,1,0:T(8,128)}', space=vmem, size = 0x10000, scoped, tag = 'scratch operand']
  #allocation3 [shape = 'f32[8,32]{1,0:T(8,128)}', space=vmem, size = 0x1000, scoped, tag = 'scratch operand']
  #allocation4 [shape = 'f32[8,32]{1,0:T(8,128)}', space=vmem, size = 0x1000, scoped, tag = 'scratch operand']
  %s0 = inlined_call_operand.vmem [shape: bf16[8,32,8], index: 0, kind: input, shape index: {}]
  %s1 = inlined_call_operand.vmem [shape: bf16[8,128], index: 1, kind: input, shape index: {}]
  %s2 = inlined_call_operand.vmem [shape: bf16[32,128], index: 2, kind: input, shape index: {}]
  %s3 = inlined_call_operand.vmem [shape: f32[1,128], index: 3, kind: input, shape index: {}]
  %s4 = inlined_call_operand.vmem [shape: bf16[32,128], index: 4, kind: input, shape index: {}]
  %s5 = inlined_call_operand.vmem [shape: f32[1,128], index: 5, kind: input, shape index: {}]
  %s6 = inlined_call_operand.hbm [shape: f32[8,128], index: 6, kind: output, shape index: {}]
  %s7 = sld [smem:[#allocation0]]
  $region106: #{tpu_custom_call.1} parent=0
    _
  %s9 = ssub.s32 1, %s7
  %s10 = scalar_select 0, %s9, %s7
  $region1: #{tpu_custom_call.1} parent=0
    #allocation5 [shape = 'u8[65536]{0}', space=vmem, size = 0x10000, scoped, tag = 'input window, operand 0']
    #allocation6 [shape = 'u8[4096]{0}', space=vmem, size = 0x1000, scoped, tag = 'output window, operand 0, single buffered']
    #allocation7 [shape = 's32[2]{0}', space=sflag, size = 0x8, scoped, tag = 'scoped memory for tpu_custom_call.1']
    %11 = vsyncpa [#allocation7], 0
    loop: start=0, step=1, limit=4
    $region2: #{tpu_custom_call.1} parent=1 // loop_pre_header
      _
    $region3: #{tpu_custom_call.1} parent=1 // loop_header
      %s13 = sphi 0, %s17
      %p14 = scmp.ge.s32.totalorder %s13, 4
      %s20 = sphi 0, %s32
      %s21 = sphi 0, %s28
      %s22 = sphi 0, %s20
      %s23 = sphi 0, %s21
      %s24 = sphi 0, %s22
      %s25 = sphi 0, %s23
      %s37 = sphi 0, %s39
      %s40 = sphi 0, %s37
      %s41 = sphi 0, %s40
      %s57 = sphi 0, %s41
      %s61 = sphi 0, %s61
      %s63 = sphi 0, %s61
      %s64 = sphi 0, %s63
      %s78 = sphi 0, %s64
      %s82 = sphi 0, %s82
      %s84 = sphi 0, %s82
      %s85 = sphi 0, %s84
      %s99 = sphi 0, %s85
      %s103 = sphi 0, %s103
      %s105 = sphi 0, %s103
      %s106 = sphi 0, %s105
      %s120 = sphi 0, %s106
      %s124 = sphi 0, %s124
      %s126 = sphi 0, %s124
      %s127 = sphi 0, %s126
      %s141 = sphi 0, %s127
      %s145 = sphi 0, %s145
      %s147 = sphi 0, %s145
      %s148 = sphi 0, %s147
      %s162 = sphi 0, %s148
      %s168 = sphi 0, %s170
      %s171 = sphi 0, %s168
      %s172 = sphi 0, %s171
      %s188 = sphi 0, %s172
    $region4: #{tpu_custom_call.1} parent=1 // loop_header_branch
      %16 = sbr.rel (%p14) target = $region8
    $region5: #{tpu_custom_call.1} parent=1 // loop_body
      %s18 = ssub.s32 %s13, 1
      %s19 = ssub.s32 %s13, 2
      %s26 = sadd.s32 1, %s21
      %p27 = scmp.ge.s32.totalorder %s26, 2
      %s28 = scalar_select %p27, 0, %s26
      %s29 = sadd.s32 1, %s20
      %s30 = scalar_select %p27, %s29, %s20
      %p31 = scmp.ge.s32.totalorder %s30, 1
      %s32 = scalar_select %p31, 0, %s30
      %s33 = ssub.s32 %s20, %s32
      %s34 = ssub.s32 %s21, %s28
      %s35 = sor.u32 %s33, %s34
      %p36 = scmp.eq.s32.totalorder %s35, 0
      %s38 = sadd.s32 %s37, 1
      %s39 = scalar_select %p36, %s37, %s38
      %p42 = pneg %p36
      %p43 = scmp.eq.s32.totalorder %s13, 1
      %p44 = por %p42, %p43
      %p45 = scmp.ne.s32.totalorder %s37, %s40
      %p46 = scmp.eq.s32.totalorder %s13, 0
      %p47 = por %p45, %p46
      %p48 = scmp.ne.s32.totalorder %s37, %s40
      %p49 = scmp.eq.s32.totalorder %s18, 1
      %p50 = por %p48, %p49
      %p51 = scmp.ne.s32.totalorder %s40, %s41
      %p52 = scmp.eq.s32.totalorder %s18, 0
      %p53 = por %p51, %p52
      %p54 = scmp.ne.s32.totalorder %s40, %s41
      %p55 = scmp.eq.s32.totalorder %s19, 1
      %p56 = por %p54, %p55
      %p58 = scmp.ne.s32.totalorder %s41, %s57
      %p59 = scmp.eq.s32.totalorder %s19, 0
      %p60 = por %p58, %p59
      %s62 = sadd.s32 %s61, 1
      %p65 = scmp.eq.s32.totalorder %s13, 1
      %p66 = scmp.ne.s32.totalorder %s61, %s63
      %p67 = scmp.eq.s32.totalorder %s13, 0
      %p68 = por %p66, %p67
      %p69 = scmp.ne.s32.totalorder %s61, %s63
      %p70 = scmp.eq.s32.totalorder %s18, 1
      %p71 = por %p69, %p70
      %p72 = scmp.ne.s32.totalorder %s63, %s64
      %p73 = scmp.eq.s32.totalorder %s18, 0
      %p74 = por %p72, %p73
      %p75 = scmp.ne.s32.totalorder %s63, %s64
      %p76 = scmp.eq.s32.totalorder %s19, 1
      %p77 = por %p75, %p76
      %p79 = scmp.ne.s32.totalorder %s64, %s78
      %p80 = scmp.eq.s32.totalorder %s19, 0
      %p81 = por %p79, %p80
      %s83 = sadd.s32 %s82, 1
      %p86 = scmp.eq.s32.totalorder %s13, 1
      %p87 = scmp.ne.s32.totalorder %s82, %s84
      %p88 = scmp.eq.s32.totalorder %s13, 0
      %p89 = por %p87, %p88
      %p90 = scmp.ne.s32.totalorder %s82, %s84
      %p91 = scmp.eq.s32.totalorder %s18, 1
      %p92 = por %p90, %p91
      %p93 = scmp.ne.s32.totalorder %s84, %s85
      %p94 = scmp.eq.s32.totalorder %s18, 0
      %p95 = por %p93, %p94
      %p96 = scmp.ne.s32.totalorder %s84, %s85
      %p97 = scmp.eq.s32.totalorder %s19, 1
      %p98 = por %p96, %p97
      %p100 = scmp.ne.s32.totalorder %s85, %s99
      %p101 = scmp.eq.s32.totalorder %s19, 0
      %p102 = por %p100, %p101
      %s104 = sadd.s32 %s103, 1
      %p107 = scmp.eq.s32.totalorder %s13, 1
      %p108 = scmp.ne.s32.totalorder %s103, %s105
      %p109 = scmp.eq.s32.totalorder %s13, 0
      %p110 = por %p108, %p109
      %p111 = scmp.ne.s32.totalorder %s103, %s105
      %p112 = scmp.eq.s32.totalorder %s18, 1
      %p113 = por %p111, %p112
      %p114 = scmp.ne.s32.totalorder %s105, %s106
      %p115 = scmp.eq.s32.totalorder %s18, 0
      %p116 = por %p114, %p115
      %p117 = scmp.ne.s32.totalorder %s105, %s106
      %p118 = scmp.eq.s32.totalorder %s19, 1
      %p119 = por %p117, %p118
      %p121 = scmp.ne.s32.totalorder %s106, %s120
      %p122 = scmp.eq.s32.totalorder %s19, 0
      %p123 = por %p121, %p122
      %s125 = sadd.s32 %s124, 1
      %p128 = scmp.eq.s32.totalorder %s13, 1
      %p129 = scmp.ne.s32.totalorder %s124, %s126
      %p130 = scmp.eq.s32.totalorder %s13, 0
      %p131 = por %p129, %p130
      %p132 = scmp.ne.s32.totalorder %s124, %s126
      %p133 = scmp.eq.s32.totalorder %s18, 1
      %p134 = por %p132, %p133
      %p135 = scmp.ne.s32.totalorder %s126, %s127
      %p136 = scmp.eq.s32.totalorder %s18, 0
      %p137 = por %p135, %p136
      %p138 = scmp.ne.s32.totalorder %s126, %s127
      %p139 = scmp.eq.s32.totalorder %s19, 1
      %p140 = por %p138, %p139
      %p142 = scmp.ne.s32.totalorder %s127, %s141
      %p143 = scmp.eq.s32.totalorder %s19, 0
      %p144 = por %p142, %p143
      %s146 = sadd.s32 %s145, 1
      %p149 = scmp.eq.s32.totalorder %s13, 1
      %p150 = scmp.ne.s32.totalorder %s145, %s147
      %p151 = scmp.eq.s32.totalorder %s13, 0
      %p152 = por %p150, %p151
      %p153 = scmp.ne.s32.totalorder %s145, %s147
      %p154 = scmp.eq.s32.totalorder %s18, 1
      %p155 = por %p153, %p154
      %p156 = scmp.ne.s32.totalorder %s147, %s148
      %p157 = scmp.eq.s32.totalorder %s18, 0
      %p158 = por %p156, %p157
      %p159 = scmp.ne.s32.totalorder %s147, %s148
      %p160 = scmp.eq.s32.totalorder %s19, 1
      %p161 = por %p159, %p160
      %p163 = scmp.ne.s32.totalorder %s148, %s162
      %p164 = scmp.eq.s32.totalorder %s19, 0
      %p165 = por %p163, %p164
      %s166 = ssub.s32 %s20, %s32
      %p167 = scmp.eq.s32.totalorder %s166, 0
      %s169 = sadd.s32 %s168, 1
      %s170 = scalar_select %p167, %s168, %s169
      %p173 = pneg %p167
      %p174 = scmp.eq.s32.totalorder %s13, 1
      %p175 = por %p173, %p174
      %p176 = scmp.ne.s32.totalorder %s168, %s171
      %p177 = scmp.eq.s32.totalorder %s13, 0
      %p178 = por %p176, %p177
      %p179 = scmp.ne.s32.totalorder %s168, %s171
      %p180 = scmp.eq.s32.totalorder %s18, 1
      %p181 = por %p179, %p180
      %p182 = scmp.ne.s32.totalorder %s171, %s172
      %p183 = scmp.eq.s32.totalorder %s18, 0
      %p184 = por %p182, %p183
      %p185 = scmp.ne.s32.totalorder %s171, %s172
      %p186 = scmp.eq.s32.totalorder %s19, 1
      %p187 = por %p185, %p186
      %p189 = scmp.ne.s32.totalorder %s172, %s188
      %p190 = scmp.eq.s32.totalorder %s19, 0
      %p191 = por %p189, %p190
      %p192 = scmp.le.s32.totalorder 1, %s13
      %p193 = scmp.lt.s32.totalorder %s13, 3
      %p194 = pnand %p192, %p193
      %p195 = pneg %p194
      // Predicated region
      $region9: #{tpu_custom_call.1} parent=5 // pred_check
        _
      $region10: #{tpu_custom_call.1} parent=5 // pred_check_branch
        %197 = sbr.rel (%p194) target = $region12
      $region11: #{tpu_custom_call.1} parent=5 // pred_region
        %s198 = ssub.s32 %s13, 1
        // Predicated region
        $region13: #{tpu_custom_call.1} parent=11 // pred_check
          %p199 = pneg %p74
        $region14: #{tpu_custom_call.1} parent=11 // pred_check_branch
          %201 = sbr.rel (%p199) target = $region16
        $region15: #{tpu_custom_call.1} parent=11 // pred_region
          _
        $region16: #{tpu_custom_call.1} parent=11 // pred_fallthru
          _
        // Predicated region
        $region17: #{tpu_custom_call.1} parent=11 // pred_check
          %p202 = pneg %p95
        $region18: #{tpu_custom_call.1} parent=11 // pred_check_branch
          %204 = sbr.rel (%p202) target = $region20
        $region19: #{tpu_custom_call.1} parent=11 // pred_region
          _
        $region20: #{tpu_custom_call.1} parent=11 // pred_fallthru
          _
        // Predicated region
        $region21: #{tpu_custom_call.1} parent=11 // pred_check
          %p205 = pneg %p116
        $region22: #{tpu_custom_call.1} parent=11 // pred_check_branch
          %207 = sbr.rel (%p205) target = $region24
        $region23: #{tpu_custom_call.1} parent=11 // pred_region
          _
        $region24: #{tpu_custom_call.1} parent=11 // pred_fallthru
          _
        // Predicated region
        $region25: #{tpu_custom_call.1} parent=11 // pred_check
          %p208 = pneg %p137
        $region26: #{tpu_custom_call.1} parent=11 // pred_check_branch
          %210 = sbr.rel (%p208) target = $region28
        $region27: #{tpu_custom_call.1} parent=11 // pred_region
          _
        $region28: #{tpu_custom_call.1} parent=11 // pred_fallthru
          _
        // Predicated region
        $region29: #{tpu_custom_call.1} parent=11 // pred_check
          %p211 = pneg %p158
        $region30: #{tpu_custom_call.1} parent=11 // pred_check_branch
          %213 = sbr.rel (%p211) target = $region32
        $region31: #{tpu_custom_call.1} parent=11 // pred_region
          _
        $region32: #{tpu_custom_call.1} parent=11 // pred_fallthru
          _
      $region12: #{tpu_custom_call.1} parent=5 // pred_fallthru
        _
      %p214 = scmp.lt.s32.totalorder %s13, 2
      // Predicated region
      $region33: #{tpu_custom_call.1} parent=5 // pred_check
        %p215 = pneg %p214
      $region34: #{tpu_custom_call.1} parent=5 // pred_check_branch
        %217 = sbr.rel (%p215) target = $region36
      $region35: #{tpu_custom_call.1} parent=5 // pred_region
        // Predicated region
        $region37: #{tpu_custom_call.1} parent=35 // pred_check
          %p218 = pneg %p47
        $region38: #{tpu_custom_call.1} parent=35 // pred_check_branch
          %220 = sbr.rel (%p218) target = $region40
        $region39: #{tpu_custom_call.1} parent=35 // pred_region
          %s221 = sand.u32 %s37, 1
          %s222 = sand.u32 %s37, 1
          %s223 = smul.addr %s222, 64
          %s224 = scalar_lea.vmem [#allocation5], %s223
          %s225 = smul.u32 8, %s20
          %s226 = smul.u32 2, %s21
          %s227 = smul.addr %s225, 4
          %s228 = sadd.s32 %s226, %s227
          %s229 = smul.addr %s228, 4
          %s230 = scalar_lea.vmem %s0, %s229
          // Predicated region
          $region41: #{tpu_custom_call.1} parent=39 // pred_check
            _
          $region42: #{tpu_custom_call.1} parent=39 // pred_check_branch
            %232 = sbr.rel (0) target = $region44
          $region43: #{tpu_custom_call.1} parent=39 // pred_region
            // Predicated region
            $region45: #{tpu_custom_call.1} parent=43 // pred_check
              _
            $region46: #{tpu_custom_call.1} parent=43 // pred_check_branch
              %234 = sbr.rel target = $region48
            $region47: #{tpu_custom_call.1} parent=43 // pred_region
              // Predicated region
              $region60: #{tpu_custom_call.1} parent=47 // pred_check
                _
              $region61: #{tpu_custom_call.1} parent=47 // pred_check_branch
                %280 = sbr.rel (0) target = $region63
              $region62: #{tpu_custom_call.1} parent=47 // pred_region
                loop: start=0, step=1, limit=1
                $region64: #{tpu_custom_call.1} parent=62 // loop_pre_header
                  _
                $region65: #{tpu_custom_call.1} parent=62 // loop_header
                  %s282 = sphi 0, %s286
                  %p283 = scmp.ge.s32.totalorder %s282, 1
                  %s287 = sphi %s230, %s230
                  %s288 = sphi %s224, %s224
                $region66: #{tpu_custom_call.1} parent=62 // loop_header_branch
                  %285 = sbr.rel (%p283) target = $region70
                $region67: #{tpu_custom_call.1} parent=62 // loop_body
                  _
                $region68: #{tpu_custom_call.1} parent=62 // loop_footer
                  %s286 = sadd.s32 1, %s282
                $region69: #{tpu_custom_call.1} parent=62 // loop_footer_branch
                  %281 = sbr.rel target = $region65
                $region70: #{tpu_custom_call.1} parent=62 // loop_exit
                  _
                %s290 = ssub.s32 16, 1
                loop: start=0, step=1, limit=1
                $region71: #{tpu_custom_call.1} parent=62 // loop_pre_header
                  _
                $region72: #{tpu_custom_call.1} parent=62 // loop_header
                  %s292 = sphi 0, %s296
                  %p293 = scmp.ge.s32.totalorder %s292, 1
                  %s297 = sphi %s230, %s230
                  %s298 = sphi %s224, %s224
                $region73: #{tpu_custom_call.1} parent=62 // loop_header_branch
                  %295 = sbr.rel (%p293) target = $region77
                $region74: #{tpu_custom_call.1} parent=62 // loop_body
                  %v299 = vld [vmem:[%s297] sm:%s290]
                  %300 = vst [vmem:[%s298] sm:%s290] %v299
                  %v301 = vld [vmem:[%s297 + $0x4] sm:%s290]
                  %302 = vst [vmem:[%s298 + $0x4] sm:%s290] %v301
                  %v303 = vld [vmem:[%s297 + $0x10] sm:%s290]
                  %304 = vst [vmem:[%s298 + $0x8] sm:%s290] %v303
                  %v305 = vld [vmem:[%s297 + $0x14] sm:%s290]
                  %306 = vst [vmem:[%s298 + $0xc] sm:%s290] %v305
                  %v307 = vld [vmem:[%s297 + $0x20] sm:%s290]
                  %308 = vst [vmem:[%s298 + $0x10] sm:%s290] %v307
                  %v309 = vld [vmem:[%s297 + $0x24] sm:%s290]
                  %310 = vst [vmem:[%s298 + $0x14] sm:%s290] %v309
                  %v311 = vld [vmem:[%s297 + $0x30] sm:%s290]
                  %312 = vst [vmem:[%s298 + $0x18] sm:%s290] %v311
                  %v313 = vld [vmem:[%s297 + $0x34] sm:%s290]
                  %314 = vst [vmem:[%s298 + $0x1c] sm:%s290] %v313
                  %v315 = vld [vmem:[%s297 + $0x40] sm:%s290]
                  %316 = vst [vmem:[%s298 + $0x20] sm:%s290] %v315
                  %v317 = vld [vmem:[%s297 + $0x44] sm:%s290]
                  %318 = vst [vmem:[%s298 + $0x24] sm:%s290] %v317
                  %v319 = vld [vmem:[%s297 + $0x50] sm:%s290]
                  %320 = vst [vmem:[%s298 + $0x28] sm:%s290] %v319
                  %v321 = vld [vmem:[%s297 + $0x54] sm:%s290]
                  %322 = vst [vmem:[%s298 + $0x2c] sm:%s290] %v321
                  %v323 = vld [vmem:[%s297 + $0x60] sm:%s290]
                  %324 = vst [vmem:[%s298 + $0x30] sm:%s290] %v323
                  %v325 = vld [vmem:[%s297 + $0x64] sm:%s290]
                  %326 = vst [vmem:[%s298 + $0x34] sm:%s290] %v325
                  %v327 = vld [vmem:[%s297 + $0x70] sm:%s290]
                  %328 = vst [vmem:[%s298 + $0x38] sm:%s290] %v327
                  %v329 = vld [vmem:[%s297 + $0x74] sm:%s290]
                  %330 = vst [vmem:[%s298 + $0x3c] sm:%s290] %v329
                $region75: #{tpu_custom_call.1} parent=62 // loop_footer
                  %s296 = sadd.s32 1, %s292
                $region76: #{tpu_custom_call.1} parent=62 // loop_footer_branch
                  %291 = sbr.rel target = $region72
                $region77: #{tpu_custom_call.1} parent=62 // loop_exit
                  _
              $region63: #{tpu_custom_call.1} parent=47 // pred_fallthru
                _
            $region48: #{tpu_custom_call.1} parent=43 // pred_fallthru
              _
            // Predicated region
            $region49: #{tpu_custom_call.1} parent=43 // pred_check
              _
            $region50: #{tpu_custom_call.1} parent=43 // pred_check_branch
              %236 = sbr.rel (0) target = $region52
            $region51: #{tpu_custom_call.1} parent=43 // pred_region
              %s238 = ssub.s32 16, 1
              loop: start=0, step=1, limit=1
              $region53: #{tpu_custom_call.1} parent=51 // loop_pre_header
                _
              $region54: #{tpu_custom_call.1} parent=51 // loop_header
                %s240 = sphi 0, %s244
                %p241 = scmp.ge.s32.totalorder %s240, 1
                %s245 = sphi %s230, %s230
                %s246 = sphi %s224, %s224
              $region55: #{tpu_custom_call.1} parent=51 // loop_header_branch
                %243 = sbr.rel (%p241) target = $region59
              $region56: #{tpu_custom_call.1} parent=51 // loop_body
                %v247 = vld [vmem:[%s245] sm:%s238]
                %248 = vst [vmem:[%s246] sm:%s238] %v247
                %v249 = vld [vmem:[%s245 + $0x4] sm:%s238]
                %250 = vst [vmem:[%s246 + $0x4] sm:%s238] %v249
                %v251 = vld [vmem:[%s245 + $0x10] sm:%s238]
                %252 = vst [vmem:[%s246 + $0x8] sm:%s238] %v251
                %v253 = vld [vmem:[%s245 + $0x14] sm:%s238]
                %254 = vst [vmem:[%s246 + $0xc] sm:%s238] %v253
                %v255 = vld [vmem:[%s245 + $0x20] sm:%s238]
                %256 = vst [vmem:[%s246 + $0x10] sm:%s238] %v255
                %v257 = vld [vmem:[%s245 + $0x24] sm:%s238]
                %258 = vst [vmem:[%s246 + $0x14] sm:%s238] %v257
                %v259 = vld [vmem:[%s245 + $0x30] sm:%s238]
                %260 = vst [vmem:[%s246 + $0x18] sm:%s238] %v259
                %v261 = vld [vmem:[%s245 + $0x34] sm:%s238]
                %262 = vst [vmem:[%s246 + $0x1c] sm:%s238] %v261
                %v263 = vld [vmem:[%s245 + $0x40] sm:%s238]
                %264 = vst [vmem:[%s246 + $0x20] sm:%s238] %v263
                %v265 = vld [vmem:[%s245 + $0x44] sm:%s238]
                %266 = vst [vmem:[%s246 + $0x24] sm:%s238] %v265
                %v267 = vld [vmem:[%s245 + $0x50] sm:%s238]
                %268 = vst [vmem:[%s246 + $0x28] sm:%s238] %v267
                %v269 = vld [vmem:[%s245 + $0x54] sm:%s238]
                %270 = vst [vmem:[%s246 + $0x2c] sm:%s238] %v269
                %v271 = vld [vmem:[%s245 + $0x60] sm:%s238]
                %272 = vst [vmem:[%s246 + $0x30] sm:%s238] %v271
                %v273 = vld [vmem:[%s245 + $0x64] sm:%s238]
                %274 = vst [vmem:[%s246 + $0x34] sm:%s238] %v273
                %v275 = vld [vmem:[%s245 + $0x70] sm:%s238]
                %276 = vst [vmem:[%s246 + $0x38] sm:%s238] %v275
                %v277 = vld [vmem:[%s245 + $0x74] sm:%s238]
                %278 = vst [vmem:[%s246 + $0x3c] sm:%s238] %v277
              $region57: #{tpu_custom_call.1} parent=51 // loop_footer
                %s244 = sadd.s32 1, %s240
              $region58: #{tpu_custom_call.1} parent=51 // loop_footer_branch
                %239 = sbr.rel target = $region54
              $region59: #{tpu_custom_call.1} parent=51 // loop_exit
                _
            $region52: #{tpu_custom_call.1} parent=43 // pred_fallthru
              _
          $region44: #{tpu_custom_call.1} parent=39 // pred_fallthru
            _
          %331 = vnop
        $region40: #{tpu_custom_call.1} parent=35 // pred_fallthru
          _
      $region36: #{tpu_custom_call.1} parent=5 // pred_fallthru
        _
      %p332 = scmp.le.s32.totalorder 1, %s13
      %p333 = scmp.lt.s32.totalorder %s13, 3
      %p334 = pnand %p332, %p333
      %p335 = pneg %p334
      // Predicated region
      $region78: #{tpu_custom_call.1} parent=5 // pred_check
        _
      $region79: #{tpu_custom_call.1} parent=5 // pred_check_branch
        %337 = sbr.rel (%p334) target = $region81
      $region80: #{tpu_custom_call.1} parent=5 // pred_region
        %s338 = ssub.s32 %s13, 1
        %s339 = sand.u32 %s40, 1
        %s340 = sand.u32 %s40, 1
        %s341 = smul.addr %s340, 64
        %s342 = scalar_lea.vmem [#allocation5], %s341
        // Predicated region
        $region82: #{tpu_custom_call.1} parent=80 // pred_check
          %p343 = pneg %p53
        $region83: #{tpu_custom_call.1} parent=80 // pred_check_branch
          %345 = sbr.rel (%p343) target = $region85
        $region84: #{tpu_custom_call.1} parent=80 // pred_region
          _
        $region85: #{tpu_custom_call.1} parent=80 // pred_fallthru
          _
        %s346 = sand.u32 %s40, 1
        %s347 = sand.u32 %s40, 1
        %s348 = smul.addr %s347, 64
        %s349 = scalar_lea.vmem [#allocation5], %s348
        %p350 = pneg %p53
        %p351 = pneg %p50
        %p352 = pneg %p74
        %p353 = pneg %p71
        %p354 = pneg %p95
        %p355 = pneg %p92
        %p356 = pneg %p116
        %p357 = pneg %p113
        %p358 = pneg %p137
        %p359 = pneg %p134
        %p360 = pneg %p158
        %p361 = pneg %p155
        %p362 = pneg %p184
        %p363 = pneg %p181
        %s364 = smul.u32 8, %s22
        %s365 = smul.u32 2, %s23
        %p367 = scmp.eq.s32.totalorder %s23, 0
        // Predicated region
        $region86: #{tpu_custom_call.1} parent=80 // pred_check
          %p368 = pneg %p367
        $region87: #{tpu_custom_call.1} parent=80 // pred_check_branch
          %370 = sbr.rel (%p368) target = $region89
        $region88: #{tpu_custom_call.1} parent=80 // pred_region
          %vm371 = vcmask 261120
          %372 = vst.msk [vmem:[#allocation3] sm:$0xff] %vm371, 0.0
          %373 = vst.msk [vmem:[#allocation4] sm:$0xff] %vm371, 0.0
        $region89: #{tpu_custom_call.1} parent=80 // pred_fallthru
          _
        %v374 = vld [vmem:[%s342] sm:$0xf]
        %v375 = vld [vmem:[%s342 + $0x4] sm:$0xf]
        %v376 = vld [vmem:[%s342 + $0x8] sm:$0xf]
        %v377 = vld [vmem:[%s342 + $0xc] sm:$0xf]
        %v378 = vld [vmem:[%s342 + $0x10] sm:$0xf]
        %v379 = vld [vmem:[%s342 + $0x14] sm:$0xf]
        %v380 = vld [vmem:[%s342 + $0x18] sm:$0xf]
        %v381 = vld [vmem:[%s342 + $0x1c] sm:$0xf]
        %v382 = vld [vmem:[%s342 + $0x20] sm:$0xf]
        %v383 = vld [vmem:[%s342 + $0x24] sm:$0xf]
        %v384 = vld [vmem:[%s342 + $0x28] sm:$0xf]
        %v385 = vld [vmem:[%s342 + $0x2c] sm:$0xf]
        %v386 = vld [vmem:[%s342 + $0x30] sm:$0xf]
        %v387 = vld [vmem:[%s342 + $0x34] sm:$0xf]
        %v388 = vld [vmem:[%s342 + $0x38] sm:$0xf]
        %v389 = vld [vmem:[%s342 + $0x3c] sm:$0xf]
        %v390 = vld [vmem:[%s1] sm:$0xf]
        %v391 = vld [vmem:[%s3] sm:$0x1]
        %v393 = vperm.slane %v391, 0
        %v411 = vunpack.c.l.b16 %v374
        %v412 = vunpack.c.l.b16 %v375
        %v413 = vunpack.c.l.b16 %v376
        %v414 = vunpack.c.l.b16 %v377
        %v415 = vunpack.c.l.b16 %v378
        %v416 = vunpack.c.l.b16 %v379
        %v417 = vunpack.c.l.b16 %v380
        %v418 = vunpack.c.l.b16 %v381
        %v419 = vunpack.c.l.b16 %v382
        %v420 = vunpack.c.l.b16 %v383
        %v421 = vunpack.c.l.b16 %v384
        %v422 = vunpack.c.l.b16 %v385
        %v423 = vunpack.c.l.b16 %v386
        %v424 = vunpack.c.l.b16 %v387
        %v425 = vunpack.c.l.b16 %v388
        %v426 = vunpack.c.l.b16 %v389
        %v427 = vpack.c.b16 %v412, %v411
        %v428 = vpack.c.b16 %v414, %v413
        %v429 = vpack.c.b16 %v416, %v415
        %v430 = vpack.c.b16 %v418, %v417
        %v431 = vpack.c.b16 %v420, %v419
        %v432 = vpack.c.b16 %v422, %v421
        %v433 = vpack.c.b16 %v424, %v423
        %v434 = vpack.c.b16 %v426, %v425
        %vm435 = vcmask 64512
        %v437 = vsel %vm435, %v427, 0
        %v440 = vsel %vm435, %v428, 0
        %v443 = vsel %vm435, %v429, 0
        %v446 = vsel %vm435, %v430, 0
        %v449 = vsel %vm435, %v431, 0
        %v452 = vsel %vm435, %v432, 0
        %v455 = vsel %vm435, %v433, 0
        %v458 = vsel %vm435, %v434, 0
        %vm460 = vcmask 1043456
        %v462 = vsel %vm460, %v390, 0
        %464 = vmatpush.bf16.msra.mxu0 0
        %465 = vmatpush.bf16.msra.mxu0 0
        %466 = vmatpush.bf16.msra.mxu0 0
        %467 = vmatpush.bf16.msra.mxu0 0
        %468 = vmatpush.bf16.msra.mxu0 0
        %469 = vmatpush.bf16.msra.mxu0 0
        %470 = vmatpush.bf16.msra.mxu0 0
        %471 = vmatpush.bf16.msra.mxu0 %v462
        %472 = vmatmul.bf16.gmra.mxu0 %v437
        %v473 = vpop.f32.mrf.mxu0
        %v474 = vadd.f32 %v393, %v473
        %v475 = vpop.f32.mrf.mxu0
        %v476 = vadd.f32 %v393, %v475
        %477 = vmatmul.bf16.gmra.mxu0 %v440
        %v478 = vpop.f32.mrf.mxu0
        %v479 = vadd.f32 %v393, %v478
        %v480 = vpop.f32.mrf.mxu0
        %v481 = vadd.f32 %v393, %v480
        %482 = vmatmul.bf16.gmra.mxu0 %v443
        %v483 = vpop.f32.mrf.mxu0
        %v484 = vadd.f32 %v393, %v483
        %v485 = vpop.f32.mrf.mxu0
        %v486 = vadd.f32 %v393, %v485
        %487 = vmatmul.bf16.gmra.mxu0 %v446
        %v488 = vpop.f32.mrf.mxu0
        %v489 = vadd.f32 %v393, %v488
        %v490 = vpop.f32.mrf.mxu0
        %v491 = vadd.f32 %v393, %v490
        %492 = vmatmul.bf16.gmra.mxu0 %v449
        %v493 = vpop.f32.mrf.mxu0
        %v494 = vadd.f32 %v393, %v493
        %v495 = vpop.f32.mrf.mxu0
        %v496 = vadd.f32 %v393, %v495
        %497 = vmatmul.bf16.gmra.mxu0 %v452
        %v498 = vpop.f32.mrf.mxu0
        %v499 = vadd.f32 %v393, %v498
        %v500 = vpop.f32.mrf.mxu0
        %v501 = vadd.f32 %v393, %v500
        %502 = vmatmul.bf16.gmra.mxu0 %v455
        %v503 = vpop.f32.mrf.mxu0
        %v504 = vadd.f32 %v393, %v503
        %v505 = vpop.f32.mrf.mxu0
        %v506 = vadd.f32 %v393, %v505
        %507 = vmatmul.bf16.gmra.mxu0 %v458
        %v508 = vpop.f32.mrf.mxu0
        %v509 = vadd.f32 %v393, %v508
        %v510 = vpop.f32.mrf.mxu0
        %v511 = vadd.f32 %v393, %v510
        %512 = vdwg.mxu0
        %513 = vst [vmem:[#allocation2] sm:$0xff] %v474
        %514 = vst [vmem:[#allocation2 + $0x8] sm:$0xff] %v476
        %515 = vst [vmem:[#allocation2 + $0x10] sm:$0xff] %v479
        %516 = vst [vmem:[#allocation2 + $0x18] sm:$0xff] %v481
        %517 = vst [vmem:[#allocation2 + $0x20] sm:$0xff] %v484
        %518 = vst [vmem:[#allocation2 + $0x28] sm:$0xff] %v486
        %519 = vst [vmem:[#allocation2 + $0x30] sm:$0xff] %v489
        %520 = vst [vmem:[#allocation2 + $0x38] sm:$0xff] %v491
        %521 = vst [vmem:[#allocation2 + $0x40] sm:$0xff] %v494
        %522 = vst [vmem:[#allocation2 + $0x48] sm:$0xff] %v496
        %523 = vst [vmem:[#allocation2 + $0x50] sm:$0xff] %v499
        %524 = vst [vmem:[#allocation2 + $0x58] sm:$0xff] %v501
        %525 = vst [vmem:[#allocation2 + $0x60] sm:$0xff] %v504
        %526 = vst [vmem:[#allocation2 + $0x68] sm:$0xff] %v506
        %527 = vst [vmem:[#allocation2 + $0x70] sm:$0xff] %v509
        %528 = vst [vmem:[#allocation2 + $0x78] sm:$0xff] %v511
        %v529 = vlaneseq
        %v530 = vand.u32 %v529, 127
        %vm531 = vcmp.ge.s32.totalorder %v530, 64
        %vm532 = vcmp.lt.s32.totalorder %v530, 96
        %vm533 = vmand %vm531, %vm532
        %v534 = vsel %vm533, 1.0, 0.5
        %v535 = vsel %vm533, 0.0, 0.5
        %v536 = vld [vmem:[%s2] sm:$0xf]
        %v537 = vld [vmem:[%s2 + $0x4] sm:$0xf]
        %v538 = vld [vmem:[%s2 + $0x8] sm:$0xf]
        %v539 = vld [vmem:[%s2 + $0xc] sm:$0xf]
        %v540 = vld [vmem:[#allocation3] sm:$0xff]
        %v541 = vld [vmem:[#allocation4] sm:$0xff]
        %v542 = vld [vmem:[#allocation2] sm:$0x1]
        %v543 = vld [vmem:[#allocation2 + $0x10] sm:$0x1]
        %v544 = vld [vmem:[#allocation2 + $0x20] sm:$0x1]
        %v545 = vld [vmem:[#allocation2 + $0x30] sm:$0x1]
        %v546 = vld [vmem:[#allocation2 + $0x40] sm:$0x1]
        %v547 = vld [vmem:[#allocation2 + $0x50] sm:$0x1]
        %v548 = vld [vmem:[#allocation2 + $0x60] sm:$0x1]
        %v549 = vld [vmem:[#allocation2 + $0x70] sm:$0x1]
        %v550 = vpack.c.bf16 %v540, %v540
        %v555 = vunpack.c.l.b16 %v536
        %v556 = vunpack.c.l.b16 %v537
        %v557 = vunpack.c.l.b16 %v538
        %v558 = vunpack.c.l.b16 %v539
        %v559 = vpack.c.b16 %v556, %v555
        %v560 = vpack.c.b16 %v558, %v557
        %vm563 = vcmask 261120
        %v565 = vsel %vm563, %v550, 0
        %567 = vmatpush.bf16.msra.mxu0 0
        %568 = vmatpush.bf16.msra.mxu0 0
        %569 = vmatpush.bf16.msra.mxu0 0
        %570 = vmatpush.bf16.msra.mxu0 0
        %571 = vmatpush.bf16.msra.mxu0 0
        %572 = vmatpush.bf16.msra.mxu0 0
        %573 = vmatpush.bf16.msra.mxu0 %v560
        %574 = vmatpush.bf16.msra.mxu0 %v559
        %575 = vmatmul.bf16.gmra.mxu0 %v565
        %v576 = vpop.f32.mrf.mxu0
        %v577 = vadd.f32 0.0, %v576
        %v578 = vpop.f32.mrf.mxu0
        %579 = vdwg.mxu0
        %v581 = vrot.slane %v577, 1
        %v582 = vrot.slane %v577, 2
        %v583 = vrot.slane %v577, 3
        %v584 = vrot.slane %v577, 4
        %v585 = vrot.slane %v577, 5
        %v586 = vrot.slane %v577, 6
        %v587 = vrot.slane %v577, 7
        %v596 = vadd.f32 %v542, %v577
        %v597 = vadd.f32 %v543, %v581
        %v598 = vadd.f32 %v544, %v582
        %v599 = vadd.f32 %v545, %v583
        %v600 = vadd.f32 %v546, %v584
        %v601 = vadd.f32 %v547, %v585
        %v602 = vadd.f32 %v548, %v586
        %v603 = vadd.f32 %v549, %v587
        %v604 = vtanh.pop %v596
        %v605 = vtanh.pop %v597
        %v606 = vtanh.pop %v598
        %v607 = vtanh.pop %v599
        %v608 = vtanh.pop %v600
        %v609 = vtanh.pop %v601
        %v610 = vtanh.pop %v602
        %v611 = vtanh.pop %v603
        %v612 = vmul.f32 %v604, %v534
        %v613 = vmul.f32 %v605, %v534
        %v614 = vmul.f32 %v606, %v534
        %v615 = vmul.f32 %v607, %v534
        %v616 = vmul.f32 %v608, %v534
        %v617 = vmul.f32 %v609, %v534
        %v618 = vmul.f32 %v610, %v534
        %v619 = vmul.f32 %v611, %v534
        %v620 = vadd.f32 %v612, %v535
        %v621 = vadd.f32 %v613, %v535
        %v622 = vadd.f32 %v614, %v535
        %v623 = vadd.f32 %v615, %v535
        %v624 = vadd.f32 %v616, %v535
        %v625 = vadd.f32 %v617, %v535
        %v626 = vadd.f32 %v618, %v535
        %v627 = vadd.f32 %v619, %v535
        %v629 = vrot.slane %v541, 1
        %v630 = vrot.slane %v541, 2
        %v631 = vrot.slane %v541, 3
        %v632 = vrot.slane %v541, 4
        %v633 = vrot.slane %v541, 5
        %v634 = vrot.slane %v541, 6
        %v635 = vrot.slane %v541, 7
        %636 = vrot.lane.b32.xlu0 %v541, 32
        %v637 = vpop.permute.xlu0 %636
        %638 = vrot.lane.b32.xlu0 %v629, 32
        %v639 = vpop.permute.xlu0 %638
        %640 = vrot.lane.b32.xlu0 %v630, 32
        %v641 = vpop.permute.xlu0 %640
        %642 = vrot.lane.b32.xlu0 %v631, 32
        %v643 = vpop.permute.xlu0 %642
        %644 = vrot.lane.b32.xlu0 %v632, 32
        %v645 = vpop.permute.xlu0 %644
        %646 = vrot.lane.b32.xlu0 %v633, 32
        %v647 = vpop.permute.xlu0 %646
        %648 = vrot.lane.b32.xlu0 %v634, 32
        %v649 = vpop.permute.xlu0 %648
        %650 = vrot.lane.b32.xlu0 %v635, 32
        %v651 = vpop.permute.xlu0 %650
        %v660 = vmul.f32 %v620, %v637
        %v661 = vmul.f32 %v621, %v639
        %v662 = vmul.f32 %v622, %v641
        %v663 = vmul.f32 %v623, %v643
        %v664 = vmul.f32 %v624, %v645
        %v665 = vmul.f32 %v625, %v647
        %v666 = vmul.f32 %v626, %v649
        %v667 = vmul.f32 %v627, %v651
        %676 = vrot.lane.b32.xlu0 %v620, 64
        %v677 = vpop.permute.xlu0 %676
        %678 = vrot.lane.b32.xlu0 %v621, 64
        %v679 = vpop.permute.xlu0 %678
        %680 = vrot.lane.b32.xlu0 %v622, 64
        %v681 = vpop.permute.xlu0 %680
        %682 = vrot.lane.b32.xlu0 %v623, 64
        %v683 = vpop.permute.xlu0 %682
        %684 = vrot.lane.b32.xlu0 %v624, 64
        %v685 = vpop.permute.xlu0 %684
        %686 = vrot.lane.b32.xlu0 %v625, 64
        %v687 = vpop.permute.xlu0 %686
        %688 = vrot.lane.b32.xlu0 %v626, 64
        %v689 = vpop.permute.xlu0 %688
        %690 = vrot.lane.b32.xlu0 %v627, 64
        %v691 = vpop.permute.xlu0 %690
        %v700 = vmul.f32 %v620, %v677
        %v701 = vmul.f32 %v621, %v679
        %v702 = vmul.f32 %v622, %v681
        %v703 = vmul.f32 %v623, %v683
        %v704 = vmul.f32 %v624, %v685
        %v705 = vmul.f32 %v625, %v687
        %v706 = vmul.f32 %v626, %v689
        %v707 = vmul.f32 %v627, %v691
        %716 = vrot.lane.b32.xlu0 %v700, 32
        %v717 = vpop.permute.xlu0 %716
        %718 = vrot.lane.b32.xlu0 %v701, 32
        %v719 = vpop.permute.xlu0 %718
        %720 = vrot.lane.b32.xlu0 %v702, 32
        %v721 = vpop.permute.xlu0 %720
        %722 = vrot.lane.b32.xlu0 %v703, 32
        %v723 = vpop.permute.xlu0 %722
        %724 = vrot.lane.b32.xlu0 %v704, 32
        %v725 = vpop.permute.xlu0 %724
        %726 = vrot.lane.b32.xlu0 %v705, 32
        %v727 = vpop.permute.xlu0 %726
        %728 = vrot.lane.b32.xlu0 %v706, 32
        %v729 = vpop.permute.xlu0 %728
        %730 = vrot.lane.b32.xlu0 %v707, 32
        %v731 = vpop.permute.xlu0 %730
        %v740 = vadd.f32 %v660, %v717
        %v741 = vadd.f32 %v661, %v719
        %v742 = vadd.f32 %v662, %v721
        %v743 = vadd.f32 %v663, %v723
        %v744 = vadd.f32 %v664, %v725
        %v745 = vadd.f32 %v665, %v727
        %v746 = vadd.f32 %v666, %v729
        %v747 = vadd.f32 %v667, %v731
        %v748 = vtanh.pop %v740
        %v749 = vtanh.pop %v741
        %v750 = vtanh.pop %v742
        %v751 = vtanh.pop %v743
        %v752 = vtanh.pop %v744
        %v753 = vtanh.pop %v745
        %v754 = vtanh.pop %v746
        %v755 = vtanh.pop %v747
        %764 = vrot.lane.b32.xlu0 %v748, 64
        %v765 = vpop.permute.xlu0 %764
        %766 = vrot.lane.b32.xlu0 %v749, 64
        %v767 = vpop.permute.xlu0 %766
        %768 = vrot.lane.b32.xlu0 %v750, 64
        %v769 = vpop.permute.xlu0 %768
        %770 = vrot.lane.b32.xlu0 %v751, 64
        %v771 = vpop.permute.xlu0 %770
        %772 = vrot.lane.b32.xlu0 %v752, 64
        %v773 = vpop.permute.xlu0 %772
        %774 = vrot.lane.b32.xlu0 %v753, 64
        %v775 = vpop.permute.xlu0 %774
        %776 = vrot.lane.b32.xlu0 %v754, 64
        %v777 = vpop.permute.xlu0 %776
        %778 = vrot.lane.b32.xlu0 %v755, 64
        %v779 = vpop.permute.xlu0 %778
        %v788 = vmul.f32 %v620, %v765
        %v789 = vmul.f32 %v621, %v767
        %v790 = vmul.f32 %v622, %v769
        %v791 = vmul.f32 %v623, %v771
        %v792 = vmul.f32 %v624, %v773
        %v793 = vmul.f32 %v625, %v775
        %v794 = vmul.f32 %v626, %v777
        %v795 = vmul.f32 %v627, %v779
        %v796 = vld [vmem:[#allocation2 + $0x1] sm:$0x1]
        %v797 = vld [vmem:[#allocation2 + $0x11] sm:$0x1]
        %v798 = vld [vmem:[#allocation2 + $0x21] sm:$0x1]
        %v799 = vld [vmem:[#allocation2 + $0x31] sm:$0x1]
        %v800 = vld [vmem:[#allocation2 + $0x41] sm:$0x1]
        %v801 = vld [vmem:[#allocation2 + $0x51] sm:$0x1]
        %v802 = vld [vmem:[#allocation2 + $0x61] sm:$0x1]
        %v803 = vld [vmem:[#allocation2 + $0x71] sm:$0x1]
        %v804 = vpack.c.bf16 %v788, %v788
        %v805 = vpack.c.bf16 %v789, %v789
        %v806 = vpack.c.bf16 %v790, %v790
        %v807 = vpack.c.bf16 %v791, %v791
        %v808 = vpack.c.bf16 %v792, %v792
        %v809 = vpack.c.bf16 %v793, %v793
        %v810 = vpack.c.bf16 %v794, %v794
        %v811 = vpack.c.bf16 %v795, %v795
        %v820 = vunpack.c.l.b16 %v804
        %v821 = vunpack.c.l.b16 %v805
        %v822 = vunpack.c.l.b16 %v806
        %v823 = vunpack.c.l.b16 %v807
        %v824 = vunpack.c.l.b16 %v808
        %v825 = vunpack.c.l.b16 %v809
        %v826 = vunpack.c.l.b16 %v810
        %v827 = vunpack.c.l.b16 %v811
        %v828 = vrot.slane %v821, 7
        %vm829 = vcmask 1041409
        %v830 = vsel %vm829, %v828, %v820
        %v831 = vrot.slane %v822, 6
        %vm832 = vcmask 1042434
        %v833 = vsel %vm832, %v831, %v830
        %v834 = vrot.slane %v823, 5
        %vm835 = vcmask 1043459
        %v836 = vsel %vm835, %v834, %v833
        %v837 = vrot.slane %v824, 4
        %vm838 = vcmask 1044484
        %v839 = vsel %vm838, %v837, %v836
        %v840 = vrot.slane %v825, 3
        %vm841 = vcmask 1045509
        %v842 = vsel %vm841, %v840, %v839
        %v843 = vrot.slane %v826, 2
        %vm844 = vcmask 1046534
        %v845 = vsel %vm844, %v843, %v842
        %v846 = vrot.slane %v827, 1
        %vm847 = vcmask 1047559
        %v848 = vsel %vm847, %v846, %v845
        %v849 = vpack.c.b16 %v848, %v848
        %850 = vrot.lane.b32.xlu0 %v849, 32
        %v851 = vpop.permute.xlu0 %850
        %v853 = vsel %vm563, %v851, 0
        %855 = vmatpush.bf16.msra.mxu0 0
        %856 = vmatpush.bf16.msra.mxu0 0
        %857 = vmatpush.bf16.msra.mxu0 0
        %858 = vmatpush.bf16.msra.mxu0 0
        %859 = vmatpush.bf16.msra.mxu0 0
        %860 = vmatpush.bf16.msra.mxu0 0
        %861 = vmatpush.bf16.msra.mxu0 %v560
        %862 = vmatpush.bf16.msra.mxu0 %v559
        %863 = vmatmul.bf16.gmra.mxu0 %v853
        %v864 = vpop.f32.mrf.mxu0
        %v865 = vadd.f32 0.0, %v864
        %v866 = vpop.f32.mrf.mxu0
        %867 = vdwg.mxu0
        %v869 = vrot.slane %v865, 1
        %v870 = vrot.slane %v865, 2
        %v871 = vrot.slane %v865, 3
        %v872 = vrot.slane %v865, 4
        %v873 = vrot.slane %v865, 5
        %v874 = vrot.slane %v865, 6
        %v875 = vrot.slane %v865, 7
        %v884 = vadd.f32 %v796, %v865
        %v885 = vadd.f32 %v797, %v869
        %v886 = vadd.f32 %v798, %v870
        %v887 = vadd.f32 %v799, %v871
        %v888 = vadd.f32 %v800, %v872
        %v889 = vadd.f32 %v801, %v873
        %v890 = vadd.f32 %v802, %v874
        %v891 = vadd.f32 %v803, %v875
        %v892 = vtanh.pop %v884
        %v893 = vtanh.pop %v885
        %v894 = vtanh.pop %v886
        %v895 = vtanh.pop %v887
        %v896 = vtanh.pop %v888
        %v897 = vtanh.pop %v889
        %v898 = vtanh.pop %v890
        %v899 = vtanh.pop %v891
        %v900 = vmul.f32 %v892, %v534
        %v901 = vmul.f32 %v893, %v534
        %v902 = vmul.f32 %v894, %v534
        %v903 = vmul.f32 %v895, %v534
        %v904 = vmul.f32 %v896, %v534
        %v905 = vmul.f32 %v897, %v534
        %v906 = vmul.f32 %v898, %v534
        %v907 = vmul.f32 %v899, %v534
        %v908 = vadd.f32 %v900, %v535
        %v909 = vadd.f32 %v901, %v535
        %v910 = vadd.f32 %v902, %v535
        %v911 = vadd.f32 %v903, %v535
        %v912 = vadd.f32 %v904, %v535
        %v913 = vadd.f32 %v905, %v535
        %v914 = vadd.f32 %v906, %v535
        %v915 = vadd.f32 %v907, %v535
        %v916 = vmul.f32 %v908, %v740
        %v917 = vmul.f32 %v909, %v741
        %v918 = vmul.f32 %v910, %v742
        %v919 = vmul.f32 %v911, %v743
        %v920 = vmul.f32 %v912, %v744
        %v921 = vmul.f32 %v913, %v745
        %v922 = vmul.f32 %v914, %v746
        %v923 = vmul.f32 %v915, %v747
        %932 = vrot.lane.b32.xlu0 %v908, 64
        %v933 = vpop.permute.xlu0 %932
        %934 = vrot.lane.b32.xlu0 %v909, 64
        %v935 = vpop.permute.xlu0 %934
        %936 = vrot.lane.b32.xlu0 %v910, 64
        %v937 = vpop.permute.xlu0 %936
        %938 = vrot.lane.b32.xlu0 %v911, 64
        %v939 = vpop.permute.xlu0 %938
        %940 = vrot.lane.b32.xlu0 %v912, 64
        %v941 = vpop.permute.xlu0 %940
        %942 = vrot.lane.b32.xlu0 %v913, 64
        %v943 = vpop.permute.xlu0 %942
        %944 = vrot.lane.b32.xlu0 %v914, 64
        %v945 = vpop.permute.xlu0 %944
        %946 = vrot.lane.b32.xlu0 %v915, 64
        %v947 = vpop.permute.xlu0 %946
        %v956 = vmul.f32 %v908, %v933
        %v957 = vmul.f32 %v909, %v935
        %v958 = vmul.f32 %v910, %v937
        %v959 = vmul.f32 %v911, %v939
        %v960 = vmul.f32 %v912, %v941
        %v961 = vmul.f32 %v913, %v943
        %v962 = vmul.f32 %v914, %v945
        %v963 = vmul.f32 %v915, %v947
        %972 = vrot.lane.b32.xlu0 %v956, 32
        %v973 = vpop.permute.xlu0 %972
        %974 = vrot.lane.b32.xlu0 %v957, 32
        %v975 = vpop.permute.xlu0 %974
        %976 = vrot.lane.b32.xlu0 %v958, 32
        %v977 = vpop.permute.xlu0 %976
        %978 = vrot.lane.b32.xlu0 %v959, 32
        %v979 = vpop.permute.xlu0 %978
        %980 = vrot.lane.b32.xlu0 %v960, 32
        %v981 = vpop.permute.xlu0 %980
        %982 = vrot.lane.b32.xlu0 %v961, 32
        %v983 = vpop.permute.xlu0 %982
        %984 = vrot.lane.b32.xlu0 %v962, 32
        %v985 = vpop.permute.xlu0 %984
        %986 = vrot.lane.b32.xlu0 %v963, 32
        %v987 = vpop.permute.xlu0 %986
        %v996 = vadd.f32 %v916, %v973
        %v997 = vadd.f32 %v917, %v975
        %v998 = vadd.f32 %v918, %v977
        %v999 = vadd.f32 %v919, %v979
        %v1000 = vadd.f32 %v920, %v981
        %v1001 = vadd.f32 %v921, %v983
        %v1002 = vadd.f32 %v922, %v985
        %v1003 = vadd.f32 %v923, %v987
        %v1004 = vtanh.pop %v996
        %v1005 = vtanh.pop %v997
        %v1006 = vtanh.pop %v998
        %v1007 = vtanh.pop %v999
        %v1008 = vtanh.pop %v1000
        %v1009 = vtanh.pop %v1001
        %v1010 = vtanh.pop %v1002
        %v1011 = vtanh.pop %v1003
        %1020 = vrot.lane.b32.xlu0 %v1004, 64
        %v1021 = vpop.permute.xlu0 %1020
        %1022 = vrot.lane.b32.xlu0 %v1005, 64
        %v1023 = vpop.permute.xlu0 %1022
        %1024 = vrot.lane.b32.xlu0 %v1006, 64
        %v1025 = vpop.permute.xlu0 %1024
        %1026 = vrot.lane.b32.xlu0 %v1007, 64
        %v1027 = vpop.permute.xlu0 %1026
        %1028 = vrot.lane.b32.xlu0 %v1008, 64
        %v1029 = vpop.permute.xlu0 %1028
        %1030 = vrot.lane.b32.xlu0 %v1009, 64
        %v1031 = vpop.permute.xlu0 %1030
        %1032 = vrot.lane.b32.xlu0 %v1010, 64
        %v1033 = vpop.permute.xlu0 %1032
        %1034 = vrot.lane.b32.xlu0 %v1011, 64
        %v1035 = vpop.permute.xlu0 %1034
        %v1044 = vmul.f32 %v908, %v1021
        %v1045 = vmul.f32 %v909, %v1023
        %v1046 = vmul.f32 %v910, %v1025
        %v1047 = vmul.f32 %v911, %v1027
        %v1048 = vmul.f32 %v912, %v1029
        %v1049 = vmul.f32 %v913, %v1031
        %v1050 = vmul.f32 %v914, %v1033
        %v1051 = vmul.f32 %v915, %v1035
        %v1052 = vld [vmem:[#allocation2 + $0x2] sm:$0x1]
        %v1053 = vld [vmem:[#allocation2 + $0x12] sm:$0x1]
        %v1054 = vld [vmem:[#allocation2 + $0x22] sm:$0x1]
        %v1055 = vld [vmem:[#allocation2 + $0x32] sm:$0x1]
        %v1056 = vld [vmem:[#allocation2 + $0x42] sm:$0x1]
        %v1057 = vld [vmem:[#allocation2 + $0x52] sm:$0x1]
        %v1058 = vld [vmem:[#allocation2 + $0x62] sm:$0x1]
        %v1059 = vld [vmem:[#allocation2 + $0x72] sm:$0x1]
        %v1060 = vpack.c.bf16 %v1044, %v1044
        %v1061 = vpack.c.bf16 %v1045, %v1045
        %v1062 = vpack.c.bf16 %v1046, %v1046
        %v1063 = vpack.c.bf16 %v1047, %v1047
        %v1064 = vpack.c.bf16 %v1048, %v1048
        %v1065 = vpack.c.bf16 %v1049, %v1049
        %v1066 = vpack.c.bf16 %v1050, %v1050
        %v1067 = vpack.c.bf16 %v1051, %v1051
        %v1076 = vunpack.c.l.b16 %v1060
        %v1077 = vunpack.c.l.b16 %v1061
        %v1078 = vunpack.c.l.b16 %v1062
        %v1079 = vunpack.c.l.b16 %v1063
        %v1080 = vunpack.c.l.b16 %v1064
        %v1081 = vunpack.c.l.b16 %v1065
        %v1082 = vunpack.c.l.b16 %v1066
        %v1083 = vunpack.c.l.b16 %v1067
        %v1084 = vrot.slane %v1077, 7
        %v1085 = vsel %vm829, %v1084, %v1076
        %v1086 = vrot.slane %v1078, 6
        %v1087 = vsel %vm832, %v1086, %v1085
        %v1088 = vrot.slane %v1079, 5
        %v1089 = vsel %vm835, %v1088, %v1087
        %v1090 = vrot.slane %v1080, 4
        %v1091 = vsel %vm838, %v1090, %v1089
        %v1092 = vrot.slane %v1081, 3
        %v1093 = vsel %vm841, %v1092, %v1091
        %v1094 = vrot.slane %v1082, 2
        %v1095 = vsel %vm844, %v1094, %v1093
        %v1096 = vrot.slane %v1083, 1
        %v1097 = vsel %vm847, %v1096, %v1095
        %v1098 = vpack.c.b16 %v1097, %v1097
        %1099 = vrot.lane.b32.xlu0 %v1098, 32
        %v1100 = vpop.permute.xlu0 %1099
        %v1102 = vsel %vm563, %v1100, 0
        %1104 = vmatpush.bf16.msra.mxu0 0
        %1105 = vmatpush.bf16.msra.mxu0 0
        %1106 = vmatpush.bf16.msra.mxu0 0
        %1107 = vmatpush.bf16.msra.mxu0 0
        %1108 = vmatpush.bf16.msra.mxu0 0
        %1109 = vmatpush.bf16.msra.mxu0 0
        %1110 = vmatpush.bf16.msra.mxu0 %v560
        %1111 = vmatpush.bf16.msra.mxu0 %v559
        %1112 = vmatmul.bf16.gmra.mxu0 %v1102
        %v1113 = vpop.f32.mrf.mxu0
        %v1114 = vadd.f32 0.0, %v1113
        %v1115 = vpop.f32.mrf.mxu0
        %1116 = vdwg.mxu0
        %v1118 = vrot.slane %v1114, 1
        %v1119 = vrot.slane %v1114, 2
        %v1120 = vrot.slane %v1114, 3
        %v1121 = vrot.slane %v1114, 4
        %v1122 = vrot.slane %v1114, 5
        %v1123 = vrot.slane %v1114, 6
        %v1124 = vrot.slane %v1114, 7
        %v1133 = vadd.f32 %v1052, %v1114
        %v1134 = vadd.f32 %v1053, %v1118
        %v1135 = vadd.f32 %v1054, %v1119
        %v1136 = vadd.f32 %v1055, %v1120
        %v1137 = vadd.f32 %v1056, %v1121
        %v1138 = vadd.f32 %v1057, %v1122
        %v1139 = vadd.f32 %v1058, %v1123
        %v1140 = vadd.f32 %v1059, %v1124
        %v1141 = vtanh.pop %v1133
        %v1142 = vtanh.pop %v1134
        %v1143 = vtanh.pop %v1135
        %v1144 = vtanh.pop %v1136
        %v1145 = vtanh.pop %v1137
        %v1146 = vtanh.pop %v1138
        %v1147 = vtanh.pop %v1139
        %v1148 = vtanh.pop %v1140
        %v1149 = vmul.f32 %v1141, %v534
        %v1150 = vmul.f32 %v1142, %v534
        %v1151 = vmul.f32 %v1143, %v534
        %v1152 = vmul.f32 %v1144, %v534
        %v1153 = vmul.f32 %v1145, %v534
        %v1154 = vmul.f32 %v1146, %v534
        %v1155 = vmul.f32 %v1147, %v534
        %v1156 = vmul.f32 %v1148, %v534
        %v1157 = vadd.f32 %v1149, %v535
        %v1158 = vadd.f32 %v1150, %v535
        %v1159 = vadd.f32 %v1151, %v535
        %v1160 = vadd.f32 %v1152, %v535
        %v1161 = vadd.f32 %v1153, %v535
        %v1162 = vadd.f32 %v1154, %v535
        %v1163 = vadd.f32 %v1155, %v535
        %v1164 = vadd.f32 %v1156, %v535
        %v1165 = vmul.f32 %v1157, %v996
        %v1166 = vmul.f32 %v1158, %v997
        %v1167 = vmul.f32 %v1159, %v998
        %v1168 = vmul.f32 %v1160, %v999
        %v1169 = vmul.f32 %v1161, %v1000
        %v1170 = vmul.f32 %v1162, %v1001
        %v1171 = vmul.f32 %v1163, %v1002
        %v1172 = vmul.f32 %v1164, %v1003
        %1181 = vrot.lane.b32.xlu0 %v1157, 64
        %v1182 = vpop.permute.xlu0 %1181
        %1183 = vrot.lane.b32.xlu0 %v1158, 64
        %v1184 = vpop.permute.xlu0 %1183
        %1185 = vrot.lane.b32.xlu0 %v1159, 64
        %v1186 = vpop.permute.xlu0 %1185
        %1187 = vrot.lane.b32.xlu0 %v1160, 64
        %v1188 = vpop.permute.xlu0 %1187
        %1189 = vrot.lane.b32.xlu0 %v1161, 64
        %v1190 = vpop.permute.xlu0 %1189
        %1191 = vrot.lane.b32.xlu0 %v1162, 64
        %v1192 = vpop.permute.xlu0 %1191
        %1193 = vrot.lane.b32.xlu0 %v1163, 64
        %v1194 = vpop.permute.xlu0 %1193
        %1195 = vrot.lane.b32.xlu0 %v1164, 64
        %v1196 = vpop.permute.xlu0 %1195
        %v1205 = vmul.f32 %v1157, %v1182
        %v1206 = vmul.f32 %v1158, %v1184
        %v1207 = vmul.f32 %v1159, %v1186
        %v1208 = vmul.f32 %v1160, %v1188
        %v1209 = vmul.f32 %v1161, %v1190
        %v1210 = vmul.f32 %v1162, %v1192
        %v1211 = vmul.f32 %v1163, %v1194
        %v1212 = vmul.f32 %v1164, %v1196
        %1221 = vrot.lane.b32.xlu0 %v1205, 32
        %v1222 = vpop.permute.xlu0 %1221
        %1223 = vrot.lane.b32.xlu0 %v1206, 32
        %v1224 = vpop.permute.xlu0 %1223
        %1225 = vrot.lane.b32.xlu0 %v1207, 32
        %v1226 = vpop.permute.xlu0 %1225
        %1227 = vrot.lane.b32.xlu0 %v1208, 32
        %v1228 = vpop.permute.xlu0 %1227
        %1229 = vrot.lane.b32.xlu0 %v1209, 32
        %v1230 = vpop.permute.xlu0 %1229
        %1231 = vrot.lane.b32.xlu0 %v1210, 32
        %v1232 = vpop.permute.xlu0 %1231
        %1233 = vrot.lane.b32.xlu0 %v1211, 32
        %v1234 = vpop.permute.xlu0 %1233
        %1235 = vrot.lane.b32.xlu0 %v1212, 32
        %v1236 = vpop.permute.xlu0 %1235
        %v1245 = vadd.f32 %v1165, %v1222
        %v1246 = vadd.f32 %v1166, %v1224
        %v1247 = vadd.f32 %v1167, %v1226
        %v1248 = vadd.f32 %v1168, %v1228
        %v1249 = vadd.f32 %v1169, %v1230
        %v1250 = vadd.f32 %v1170, %v1232
        %v1251 = vadd.f32 %v1171, %v1234
        %v1252 = vadd.f32 %v1172, %v1236
        %v1253 = vtanh.pop %v1245
        %v1254 = vtanh.pop %v1246
        %v1255 = vtanh.pop %v1247
        %v1256 = vtanh.pop %v1248
        %v1257 = vtanh.pop %v1249
        %v1258 = vtanh.pop %v1250
        %v1259 = vtanh.pop %v1251
        %v1260 = vtanh.pop %v1252
        %1269 = vrot.lane.b32.xlu0 %v1253, 64
        %v1270 = vpop.permute.xlu0 %1269
        %1271 = vrot.lane.b32.xlu0 %v1254, 64
        %v1272 = vpop.permute.xlu0 %1271
        %1273 = vrot.lane.b32.xlu0 %v1255, 64
        %v1274 = vpop.permute.xlu0 %1273
        %1275 = vrot.lane.b32.xlu0 %v1256, 64
        %v1276 = vpop.permute.xlu0 %1275
        %1277 = vrot.lane.b32.xlu0 %v1257, 64
        %v1278 = vpop.permute.xlu0 %1277
        %1279 = vrot.lane.b32.xlu0 %v1258, 64
        %v1280 = vpop.permute.xlu0 %1279
        %1281 = vrot.lane.b32.xlu0 %v1259, 64
        %v1282 = vpop.permute.xlu0 %1281
        %1283 = vrot.lane.b32.xlu0 %v1260, 64
        %v1284 = vpop.permute.xlu0 %1283
        %v1293 = vmul.f32 %v1157, %v1270
        %v1294 = vmul.f32 %v1158, %v1272
        %v1295 = vmul.f32 %v1159, %v1274
        %v1296 = vmul.f32 %v1160, %v1276
        %v1297 = vmul.f32 %v1161, %v1278
        %v1298 = vmul.f32 %v1162, %v1280
        %v1299 = vmul.f32 %v1163, %v1282
        %v1300 = vmul.f32 %v1164, %v1284
        %v1301 = vld [vmem:[#allocation2 + $0x3] sm:$0x1]
        %v1302 = vld [vmem:[#allocation2 + $0x13] sm:$0x1]
        %v1303 = vld [vmem:[#allocation2 + $0x23] sm:$0x1]
        %v1304 = vld [vmem:[#allocation2 + $0x33] sm:$0x1]
        %v1305 = vld [vmem:[#allocation2 + $0x43] sm:$0x1]
        %v1306 = vld [vmem:[#allocation2 + $0x53] sm:$0x1]
        %v1307 = vld [vmem:[#allocation2 + $0x63] sm:$0x1]
        %v1308 = vld [vmem:[#allocation2 + $0x73] sm:$0x1]
        %v1309 = vpack.c.bf16 %v1293, %v1293
        %v1310 = vpack.c.bf16 %v1294, %v1294
        %v1311 = vpack.c.bf16 %v1295, %v1295
        %v1312 = vpack.c.bf16 %v1296, %v1296
        %v1313 = vpack.c.bf16 %v1297, %v1297
        %v1314 = vpack.c.bf16 %v1298, %v1298
        %v1315 = vpack.c.bf16 %v1299, %v1299
        %v1316 = vpack.c.bf16 %v1300, %v1300
        %v1325 = vunpack.c.l.b16 %v1309
        %v1326 = vunpack.c.l.b16 %v1310
        %v1327 = vunpack.c.l.b16 %v1311
        %v1328 = vunpack.c.l.b16 %v1312
        %v1329 = vunpack.c.l.b16 %v1313
        %v1330 = vunpack.c.l.b16 %v1314
        %v1331 = vunpack.c.l.b16 %v1315
        %v1332 = vunpack.c.l.b16 %v1316
        %v1333 = vrot.slane %v1326, 7
        %v1334 = vsel %vm829, %v1333, %v1325
        %v1335 = vrot.slane %v1327, 6
        %v1336 = vsel %vm832, %v1335, %v1334
        %v1337 = vrot.slane %v1328, 5
        %v1338 = vsel %vm835, %v1337, %v1336
        %v1339 = vrot.slane %v1329, 4
        %v1340 = vsel %vm838, %v1339, %v1338
        %v1341 = vrot.slane %v1330, 3
        %v1342 = vsel %vm841, %v1341, %v1340
        %v1343 = vrot.slane %v1331, 2
        %v1344 = vsel %vm844, %v1343, %v1342
        %v1345 = vrot.slane %v1332, 1
        %v1346 = vsel %vm847, %v1345, %v1344
        %v1347 = vpack.c.b16 %v1346, %v1346
        %1348 = vrot.lane.b32.xlu0 %v1347, 32
        %v1349 = vpop.permute.xlu0 %1348
        %v1351 = vsel %vm563, %v1349, 0
        %1353 = vmatpush.bf16.msra.mxu0 0
        %1354 = vmatpush.bf16.msra.mxu0 0
        %1355 = vmatpush.bf16.msra.mxu0 0
        %1356 = vmatpush.bf16.msra.mxu0 0
        %1357 = vmatpush.bf16.msra.mxu0 0
        %1358 = vmatpush.bf16.msra.mxu0 0
        %1359 = vmatpush.bf16.msra.mxu0 %v560
        %1360 = vmatpush.bf16.msra.mxu0 %v559
        %1361 = vmatmul.bf16.gmra.mxu0 %v1351
        %v1362 = vpop.f32.mrf.mxu0
        %v1363 = vadd.f32 0.0, %v1362
        %v1364 = vpop.f32.mrf.mxu0
        %1365 = vdwg.mxu0
        %v1367 = vrot.slane %v1363, 1
        %v1368 = vrot.slane %v1363, 2
        %v1369 = vrot.slane %v1363, 3
        %v1370 = vrot.slane %v1363, 4
        %v1371 = vrot.slane %v1363, 5
        %v1372 = vrot.slane %v1363, 6
        %v1373 = vrot.slane %v1363, 7
        %v1382 = vadd.f32 %v1301, %v1363
        %v1383 = vadd.f32 %v1302, %v1367
        %v1384 = vadd.f32 %v1303, %v1368
        %v1385 = vadd.f32 %v1304, %v1369
        %v1386 = vadd.f32 %v1305, %v1370
        %v1387 = vadd.f32 %v1306, %v1371
        %v1388 = vadd.f32 %v1307, %v1372
        %v1389 = vadd.f32 %v1308, %v1373
        %v1390 = vtanh.pop %v1382
        %v1391 = vtanh.pop %v1383
        %v1392 = vtanh.pop %v1384
        %v1393 = vtanh.pop %v1385
        %v1394 = vtanh.pop %v1386
        %v1395 = vtanh.pop %v1387
        %v1396 = vtanh.pop %v1388
        %v1397 = vtanh.pop %v1389
        %v1398 = vmul.f32 %v1390, %v534
        %v1399 = vmul.f32 %v1391, %v534
        %v1400 = vmul.f32 %v1392, %v534
        %v1401 = vmul.f32 %v1393, %v534
        %v1402 = vmul.f32 %v1394, %v534
        %v1403 = vmul.f32 %v1395, %v534
        %v1404 = vmul.f32 %v1396, %v534
        %v1405 = vmul.f32 %v1397, %v534
        %v1406 = vadd.f32 %v1398, %v535
        %v1407 = vadd.f32 %v1399, %v535
        %v1408 = vadd.f32 %v1400, %v535
        %v1409 = vadd.f32 %v1401, %v535
        %v1410 = vadd.f32 %v1402, %v535
        %v1411 = vadd.f32 %v1403, %v535
        %v1412 = vadd.f32 %v1404, %v535
        %v1413 = vadd.f32 %v1405, %v535
        %v1414 = vmul.f32 %v1406, %v1245
        %v1415 = vmul.f32 %v1407, %v1246
        %v1416 = vmul.f32 %v1408, %v1247
        %v1417 = vmul.f32 %v1409, %v1248
        %v1418 = vmul.f32 %v1410, %v1249
        %v1419 = vmul.f32 %v1411, %v1250
        %v1420 = vmul.f32 %v1412, %v1251
        %v1421 = vmul.f32 %v1413, %v1252
        %1430 = vrot.lane.b32.xlu0 %v1406, 64
        %v1431 = vpop.permute.xlu0 %1430
        %1432 = vrot.lane.b32.xlu0 %v1407, 64
        %v1433 = vpop.permute.xlu0 %1432
        %1434 = vrot.lane.b32.xlu0 %v1408, 64
        %v1435 = vpop.permute.xlu0 %1434
        %1436 = vrot.lane.b32.xlu0 %v1409, 64
        %v1437 = vpop.permute.xlu0 %1436
        %1438 = vrot.lane.b32.xlu0 %v1410, 64
        %v1439 = vpop.permute.xlu0 %1438
        %1440 = vrot.lane.b32.xlu0 %v1411, 64
        %v1441 = vpop.permute.xlu0 %1440
        %1442 = vrot.lane.b32.xlu0 %v1412, 64
        %v1443 = vpop.permute.xlu0 %1442
        %1444 = vrot.lane.b32.xlu0 %v1413, 64
        %v1445 = vpop.permute.xlu0 %1444
        %v1454 = vmul.f32 %v1406, %v1431
        %v1455 = vmul.f32 %v1407, %v1433
        %v1456 = vmul.f32 %v1408, %v1435
        %v1457 = vmul.f32 %v1409, %v1437
        %v1458 = vmul.f32 %v1410, %v1439
        %v1459 = vmul.f32 %v1411, %v1441
        %v1460 = vmul.f32 %v1412, %v1443
        %v1461 = vmul.f32 %v1413, %v1445
        %1470 = vrot.lane.b32.xlu0 %v1454, 32
        %v1471 = vpop.permute.xlu0 %1470
        %1472 = vrot.lane.b32.xlu0 %v1455, 32
        %v1473 = vpop.permute.xlu0 %1472
        %1474 = vrot.lane.b32.xlu0 %v1456, 32
        %v1475 = vpop.permute.xlu0 %1474
        %1476 = vrot.lane.b32.xlu0 %v1457, 32
        %v1477 = vpop.permute.xlu0 %1476
        %1478 = vrot.lane.b32.xlu0 %v1458, 32
        %v1479 = vpop.permute.xlu0 %1478
        %1480 = vrot.lane.b32.xlu0 %v1459, 32
        %v1481 = vpop.permute.xlu0 %1480
        %1482 = vrot.lane.b32.xlu0 %v1460, 32
        %v1483 = vpop.permute.xlu0 %1482
        %1484 = vrot.lane.b32.xlu0 %v1461, 32
        %v1485 = vpop.permute.xlu0 %1484
        %v1494 = vadd.f32 %v1414, %v1471
        %v1495 = vadd.f32 %v1415, %v1473
        %v1496 = vadd.f32 %v1416, %v1475
        %v1497 = vadd.f32 %v1417, %v1477
        %v1498 = vadd.f32 %v1418, %v1479
        %v1499 = vadd.f32 %v1419, %v1481
        %v1500 = vadd.f32 %v1420, %v1483
        %v1501 = vadd.f32 %v1421, %v1485
        %v1502 = vtanh.pop %v1494
        %v1503 = vtanh.pop %v1495
        %v1504 = vtanh.pop %v1496
        %v1505 = vtanh.pop %v1497
        %v1506 = vtanh.pop %v1498
        %v1507 = vtanh.pop %v1499
        %v1508 = vtanh.pop %v1500
        %v1509 = vtanh.pop %v1501
        %1518 = vrot.lane.b32.xlu0 %v1502, 64
        %v1519 = vpop.permute.xlu0 %1518
        %1520 = vrot.lane.b32.xlu0 %v1503, 64
        %v1521 = vpop.permute.xlu0 %1520
        %1522 = vrot.lane.b32.xlu0 %v1504, 64
        %v1523 = vpop.permute.xlu0 %1522
        %1524 = vrot.lane.b32.xlu0 %v1505, 64
        %v1525 = vpop.permute.xlu0 %1524
        %1526 = vrot.lane.b32.xlu0 %v1506, 64
        %v1527 = vpop.permute.xlu0 %1526
        %1528 = vrot.lane.b32.xlu0 %v1507, 64
        %v1529 = vpop.permute.xlu0 %1528
        %1530 = vrot.lane.b32.xlu0 %v1508, 64
        %v1531 = vpop.permute.xlu0 %1530
        %1532 = vrot.lane.b32.xlu0 %v1509, 64
        %v1533 = vpop.permute.xlu0 %1532
        %v1542 = vmul.f32 %v1406, %v1519
        %v1543 = vmul.f32 %v1407, %v1521
        %v1544 = vmul.f32 %v1408, %v1523
        %v1545 = vmul.f32 %v1409, %v1525
        %v1546 = vmul.f32 %v1410, %v1527
        %v1547 = vmul.f32 %v1411, %v1529
        %v1548 = vmul.f32 %v1412, %v1531
        %v1549 = vmul.f32 %v1413, %v1533
        %v1550 = vld [vmem:[#allocation2 + $0x4] sm:$0x1]
        %v1551 = vld [vmem:[#allocation2 + $0x14] sm:$0x1]
        %v1552 = vld [vmem:[#allocation2 + $0x24] sm:$0x1]
        %v1553 = vld [vmem:[#allocation2 + $0x34] sm:$0x1]
        %v1554 = vld [vmem:[#allocation2 + $0x44] sm:$0x1]
        %v1555 = vld [vmem:[#allocation2 + $0x54] sm:$0x1]
        %v1556 = vld [vmem:[#allocation2 + $0x64] sm:$0x1]
        %v1557 = vld [vmem:[#allocation2 + $0x74] sm:$0x1]
        %v1558 = vpack.c.bf16 %v1542, %v1542
        %v1559 = vpack.c.bf16 %v1543, %v1543
        %v1560 = vpack.c.bf16 %v1544, %v1544
        %v1561 = vpack.c.bf16 %v1545, %v1545
        %v1562 = vpack.c.bf16 %v1546, %v1546
        %v1563 = vpack.c.bf16 %v1547, %v1547
        %v1564 = vpack.c.bf16 %v1548, %v1548
        %v1565 = vpack.c.bf16 %v1549, %v1549
        %v1574 = vunpack.c.l.b16 %v1558
        %v1575 = vunpack.c.l.b16 %v1559
        %v1576 = vunpack.c.l.b16 %v1560
        %v1577 = vunpack.c.l.b16 %v1561
        %v1578 = vunpack.c.l.b16 %v1562
        %v1579 = vunpack.c.l.b16 %v1563
        %v1580 = vunpack.c.l.b16 %v1564
        %v1581 = vunpack.c.l.b16 %v1565
        %v1582 = vrot.slane %v1575, 7
        %v1583 = vsel %vm829, %v1582, %v1574
        %v1584 = vrot.slane %v1576, 6
        %v1585 = vsel %vm832, %v1584, %v1583
        %v1586 = vrot.slane %v1577, 5
        %v1587 = vsel %vm835, %v1586, %v1585
        %v1588 = vrot.slane %v1578, 4
        %v1589 = vsel %vm838, %v1588, %v1587
        %v1590 = vrot.slane %v1579, 3
        %v1591 = vsel %vm841, %v1590, %v1589
        %v1592 = vrot.slane %v1580, 2
        %v1593 = vsel %vm844, %v1592, %v1591
        %v1594 = vrot.slane %v1581, 1
        %v1595 = vsel %vm847, %v1594, %v1593
        %v1596 = vpack.c.b16 %v1595, %v1595
        %1597 = vrot.lane.b32.xlu0 %v1596, 32
        %v1598 = vpop.permute.xlu0 %1597
        %v1600 = vsel %vm563, %v1598, 0
        %1602 = vmatpush.bf16.msra.mxu0 0
        %1603 = vmatpush.bf16.msra.mxu0 0
        %1604 = vmatpush.bf16.msra.mxu0 0
        %1605 = vmatpush.bf16.msra.mxu0 0
        %1606 = vmatpush.bf16.msra.mxu0 0
        %1607 = vmatpush.bf16.msra.mxu0 0
        %1608 = vmatpush.bf16.msra.mxu0 %v560
        %1609 = vmatpush.bf16.msra.mxu0 %v559
        %1610 = vmatmul.bf16.gmra.mxu0 %v1600
        %v1611 = vpop.f32.mrf.mxu0
        %v1612 = vadd.f32 0.0, %v1611
        %v1613 = vpop.f32.mrf.mxu0
        %1614 = vdwg.mxu0
        %v1616 = vrot.slane %v1612, 1
        %v1617 = vrot.slane %v1612, 2
        %v1618 = vrot.slane %v1612, 3
        %v1619 = vrot.slane %v1612, 4
        %v1620 = vrot.slane %v1612, 5
        %v1621 = vrot.slane %v1612, 6
        %v1622 = vrot.slane %v1612, 7
        %v1631 = vadd.f32 %v1550, %v1612
        %v1632 = vadd.f32 %v1551, %v1616
        %v1633 = vadd.f32 %v1552, %v1617
        %v1634 = vadd.f32 %v1553, %v1618
        %v1635 = vadd.f32 %v1554, %v1619
        %v1636 = vadd.f32 %v1555, %v1620
        %v1637 = vadd.f32 %v1556, %v1621
        %v1638 = vadd.f32 %v1557, %v1622
        %v1639 = vtanh.pop %v1631
        %v1640 = vtanh.pop %v1632
        %v1641 = vtanh.pop %v1633
        %v1642 = vtanh.pop %v1634
        %v1643 = vtanh.pop %v1635
        %v1644 = vtanh.pop %v1636
        %v1645 = vtanh.pop %v1637
        %v1646 = vtanh.pop %v1638
        %v1647 = vmul.f32 %v1639, %v534
        %v1648 = vmul.f32 %v1640, %v534
        %v1649 = vmul.f32 %v1641, %v534
        %v1650 = vmul.f32 %v1642, %v534
        %v1651 = vmul.f32 %v1643, %v534
        %v1652 = vmul.f32 %v1644, %v534
        %v1653 = vmul.f32 %v1645, %v534
        %v1654 = vmul.f32 %v1646, %v534
        %v1655 = vadd.f32 %v1647, %v535
        %v1656 = vadd.f32 %v1648, %v535
        %v1657 = vadd.f32 %v1649, %v535
        %v1658 = vadd.f32 %v1650, %v535
        %v1659 = vadd.f32 %v1651, %v535
        %v1660 = vadd.f32 %v1652, %v535
        %v1661 = vadd.f32 %v1653, %v535
        %v1662 = vadd.f32 %v1654, %v535
        %v1663 = vmul.f32 %v1655, %v1494
        %v1664 = vmul.f32 %v1656, %v1495
        %v1665 = vmul.f32 %v1657, %v1496
        %v1666 = vmul.f32 %v1658, %v1497
        %v1667 = vmul.f32 %v1659, %v1498
        %v1668 = vmul.f32 %v1660, %v1499
        %v1669 = vmul.f32 %v1661, %v1500
        %v1670 = vmul.f32 %v1662, %v1501
        %1679 = vrot.lane.b32.xlu0 %v1655, 64
        %v1680 = vpop.permute.xlu0 %1679
        %1681 = vrot.lane.b32.xlu0 %v1656, 64
        %v1682 = vpop.permute.xlu0 %1681
        %1683 = vrot.lane.b32.xlu0 %v1657, 64
        %v1684 = vpop.permute.xlu0 %1683
        %1685 = vrot.lane.b32.xlu0 %v1658, 64
        %v1686 = vpop.permute.xlu0 %1685
        %1687 = vrot.lane.b32.xlu0 %v1659, 64
        %v1688 = vpop.permute.xlu0 %1687
        %1689 = vrot.lane.b32.xlu0 %v1660, 64
        %v1690 = vpop.permute.xlu0 %1689
        %1691 = vrot.lane.b32.xlu0 %v1661, 64
        %v1692 = vpop.permute.xlu0 %1691
        %1693 = vrot.lane.b32.xlu0 %v1662, 64
        %v1694 = vpop.permute.xlu0 %1693
        %v1703 = vmul.f32 %v1655, %v1680
        %v1704 = vmul.f32 %v1656, %v1682
        %v1705 = vmul.f32 %v1657, %v1684
        %v1706 = vmul.f32 %v1658, %v1686
        %v1707 = vmul.f32 %v1659, %v1688
        %v1708 = vmul.f32 %v1660, %v1690
        %v1709 = vmul.f32 %v1661, %v1692
        %v1710 = vmul.f32 %v1662, %v1694
        %1719 = vrot.lane.b32.xlu0 %v1703, 32
        %v1720 = vpop.permute.xlu0 %1719
        %1721 = vrot.lane.b32.xlu0 %v1704, 32
        %v1722 = vpop.permute.xlu0 %1721
        %1723 = vrot.lane.b32.xlu0 %v1705, 32
        %v1724 = vpop.permute.xlu0 %1723
        %1725 = vrot.lane.b32.xlu0 %v1706, 32
        %v1726 = vpop.permute.xlu0 %1725
        %1727 = vrot.lane.b32.xlu0 %v1707, 32
        %v1728 = vpop.permute.xlu0 %1727
        %1729 = vrot.lane.b32.xlu0 %v1708, 32
        %v1730 = vpop.permute.xlu0 %1729
        %1731 = vrot.lane.b32.xlu0 %v1709, 32
        %v1732 = vpop.permute.xlu0 %1731
        %1733 = vrot.lane.b32.xlu0 %v1710, 32
        %v1734 = vpop.permute.xlu0 %1733
        %v1743 = vadd.f32 %v1663, %v1720
        %v1744 = vadd.f32 %v1664, %v1722
        %v1745 = vadd.f32 %v1665, %v1724
        %v1746 = vadd.f32 %v1666, %v1726
        %v1747 = vadd.f32 %v1667, %v1728
        %v1748 = vadd.f32 %v1668, %v1730
        %v1749 = vadd.f32 %v1669, %v1732
        %v1750 = vadd.f32 %v1670, %v1734
        %v1751 = vtanh.pop %v1743
        %v1752 = vtanh.pop %v1744
        %v1753 = vtanh.pop %v1745
        %v1754 = vtanh.pop %v1746
        %v1755 = vtanh.pop %v1747
        %v1756 = vtanh.pop %v1748
        %v1757 = vtanh.pop %v1749
        %v1758 = vtanh.pop %v1750
        %1767 = vrot.lane.b32.xlu0 %v1751, 64
        %v1768 = vpop.permute.xlu0 %1767
        %1769 = vrot.lane.b32.xlu0 %v1752, 64
        %v1770 = vpop.permute.xlu0 %1769
        %1771 = vrot.lane.b32.xlu0 %v1753, 64
        %v1772 = vpop.permute.xlu0 %1771
        %1773 = vrot.lane.b32.xlu0 %v1754, 64
        %v1774 = vpop.permute.xlu0 %1773
        %1775 = vrot.lane.b32.xlu0 %v1755, 64
        %v1776 = vpop.permute.xlu0 %1775
        %1777 = vrot.lane.b32.xlu0 %v1756, 64
        %v1778 = vpop.permute.xlu0 %1777
        %1779 = vrot.lane.b32.xlu0 %v1757, 64
        %v1780 = vpop.permute.xlu0 %1779
        %1781 = vrot.lane.b32.xlu0 %v1758, 64
        %v1782 = vpop.permute.xlu0 %1781
        %v1791 = vmul.f32 %v1655, %v1768
        %v1792 = vmul.f32 %v1656, %v1770
        %v1793 = vmul.f32 %v1657, %v1772
        %v1794 = vmul.f32 %v1658, %v1774
        %v1795 = vmul.f32 %v1659, %v1776
        %v1796 = vmul.f32 %v1660, %v1778
        %v1797 = vmul.f32 %v1661, %v1780
        %v1798 = vmul.f32 %v1662, %v1782
        %v1799 = vld [vmem:[#allocation2 + $0x5] sm:$0x1]
        %v1800 = vld [vmem:[#allocation2 + $0x15] sm:$0x1]
        %v1801 = vld [vmem:[#allocation2 + $0x25] sm:$0x1]
        %v1802 = vld [vmem:[#allocation2 + $0x35] sm:$0x1]
        %v1803 = vld [vmem:[#allocation2 + $0x45] sm:$0x1]
        %v1804 = vld [vmem:[#allocation2 + $0x55] sm:$0x1]
        %v1805 = vld [vmem:[#allocation2 + $0x65] sm:$0x1]
        %v1806 = vld [vmem:[#allocation2 + $0x75] sm:$0x1]
        %v1807 = vpack.c.bf16 %v1791, %v1791
        %v1808 = vpack.c.bf16 %v1792, %v1792
        %v1809 = vpack.c.bf16 %v1793, %v1793
        %v1810 = vpack.c.bf16 %v1794, %v1794
        %v1811 = vpack.c.bf16 %v1795, %v1795
        %v1812 = vpack.c.bf16 %v1796, %v1796
        %v1813 = vpack.c.bf16 %v1797, %v1797
        %v1814 = vpack.c.bf16 %v1798, %v1798
        %v1823 = vunpack.c.l.b16 %v1807
        %v1824 = vunpack.c.l.b16 %v1808
        %v1825 = vunpack.c.l.b16 %v1809
        %v1826 = vunpack.c.l.b16 %v1810
        %v1827 = vunpack.c.l.b16 %v1811
        %v1828 = vunpack.c.l.b16 %v1812
        %v1829 = vunpack.c.l.b16 %v1813
        %v1830 = vunpack.c.l.b16 %v1814
        %v1831 = vrot.slane %v1824, 7
        %v1832 = vsel %vm829, %v1831, %v1823
        %v1833 = vrot.slane %v1825, 6
        %v1834 = vsel %vm832, %v1833, %v1832
        %v1835 = vrot.slane %v1826, 5
        %v1836 = vsel %vm835, %v1835, %v1834
        %v1837 = vrot.slane %v1827, 4
        %v1838 = vsel %vm838, %v1837, %v1836
        %v1839 = vrot.slane %v1828, 3
        %v1840 = vsel %vm841, %v1839, %v1838
        %v1841 = vrot.slane %v1829, 2
        %v1842 = vsel %vm844, %v1841, %v1840
        %v1843 = vrot.slane %v1830, 1
        %v1844 = vsel %vm847, %v1843, %v1842
        %v1845 = vpack.c.b16 %v1844, %v1844
        %1846 = vrot.lane.b32.xlu0 %v1845, 32
        %v1847 = vpop.permute.xlu0 %1846
        %v1849 = vsel %vm563, %v1847, 0
        %1851 = vmatpush.bf16.msra.mxu0 0
        %1852 = vmatpush.bf16.msra.mxu0 0
        %1853 = vmatpush.bf16.msra.mxu0 0
        %1854 = vmatpush.bf16.msra.mxu0 0
        %1855 = vmatpush.bf16.msra.mxu0 0
        %1856 = vmatpush.bf16.msra.mxu0 0
        %1857 = vmatpush.bf16.msra.mxu0 %v560
        %1858 = vmatpush.bf16.msra.mxu0 %v559
        %1859 = vmatmul.bf16.gmra.mxu0 %v1849
        %v1860 = vpop.f32.mrf.mxu0
        %v1861 = vadd.f32 0.0, %v1860
        %v1862 = vpop.f32.mrf.mxu0
        %1863 = vdwg.mxu0
        %v1865 = vrot.slane %v1861, 1
        %v1866 = vrot.slane %v1861, 2
        %v1867 = vrot.slane %v1861, 3
        %v1868 = vrot.slane %v1861, 4
        %v1869 = vrot.slane %v1861, 5
        %v1870 = vrot.slane %v1861, 6
        %v1871 = vrot.slane %v1861, 7
        %v1880 = vadd.f32 %v1799, %v1861
        %v1881 = vadd.f32 %v1800, %v1865
        %v1882 = vadd.f32 %v1801, %v1866
        %v1883 = vadd.f32 %v1802, %v1867
        %v1884 = vadd.f32 %v1803, %v1868
        %v1885 = vadd.f32 %v1804, %v1869
        %v1886 = vadd.f32 %v1805, %v1870
        %v1887 = vadd.f32 %v1806, %v1871
        %v1888 = vtanh.pop %v1880
        %v1889 = vtanh.pop %v1881
        %v1890 = vtanh.pop %v1882
        %v1891 = vtanh.pop %v1883
        %v1892 = vtanh.pop %v1884
        %v1893 = vtanh.pop %v1885
        %v1894 = vtanh.pop %v1886
        %v1895 = vtanh.pop %v1887
        %v1896 = vmul.f32 %v1888, %v534
        %v1897 = vmul.f32 %v1889, %v534
        %v1898 = vmul.f32 %v1890, %v534
        %v1899 = vmul.f32 %v1891, %v534
        %v1900 = vmul.f32 %v1892, %v534
        %v1901 = vmul.f32 %v1893, %v534
        %v1902 = vmul.f32 %v1894, %v534
        %v1903 = vmul.f32 %v1895, %v534
        %v1904 = vadd.f32 %v1896, %v535
        %v1905 = vadd.f32 %v1897, %v535
        %v1906 = vadd.f32 %v1898, %v535
        %v1907 = vadd.f32 %v1899, %v535
        %v1908 = vadd.f32 %v1900, %v535
        %v1909 = vadd.f32 %v1901, %v535
        %v1910 = vadd.f32 %v1902, %v535
        %v1911 = vadd.f32 %v1903, %v535
        %v1912 = vmul.f32 %v1904, %v1743
        %v1913 = vmul.f32 %v1905, %v1744
        %v1914 = vmul.f32 %v1906, %v1745
        %v1915 = vmul.f32 %v1907, %v1746
        %v1916 = vmul.f32 %v1908, %v1747
        %v1917 = vmul.f32 %v1909, %v1748
        %v1918 = vmul.f32 %v1910, %v1749
        %v1919 = vmul.f32 %v1911, %v1750
        %1928 = vrot.lane.b32.xlu0 %v1904, 64
        %v1929 = vpop.permute.xlu0 %1928
        %1930 = vrot.lane.b32.xlu0 %v1905, 64
        %v1931 = vpop.permute.xlu0 %1930
        %1932 = vrot.lane.b32.xlu0 %v1906, 64
        %v1933 = vpop.permute.xlu0 %1932
        %1934 = vrot.lane.b32.xlu0 %v1907, 64
        %v1935 = vpop.permute.xlu0 %1934
        %1936 = vrot.lane.b32.xlu0 %v1908, 64
        %v1937 = vpop.permute.xlu0 %1936
        %1938 = vrot.lane.b32.xlu0 %v1909, 64
        %v1939 = vpop.permute.xlu0 %1938
        %1940 = vrot.lane.b32.xlu0 %v1910, 64
        %v1941 = vpop.permute.xlu0 %1940
        %1942 = vrot.lane.b32.xlu0 %v1911, 64
        %v1943 = vpop.permute.xlu0 %1942
        %v1952 = vmul.f32 %v1904, %v1929
        %v1953 = vmul.f32 %v1905, %v1931
        %v1954 = vmul.f32 %v1906, %v1933
        %v1955 = vmul.f32 %v1907, %v1935
        %v1956 = vmul.f32 %v1908, %v1937
        %v1957 = vmul.f32 %v1909, %v1939
        %v1958 = vmul.f32 %v1910, %v1941
        %v1959 = vmul.f32 %v1911, %v1943
        %1968 = vrot.lane.b32.xlu0 %v1952, 32
        %v1969 = vpop.permute.xlu0 %1968
        %1970 = vrot.lane.b32.xlu0 %v1953, 32
        %v1971 = vpop.permute.xlu0 %1970
        %1972 = vrot.lane.b32.xlu0 %v1954, 32
        %v1973 = vpop.permute.xlu0 %1972
        %1974 = vrot.lane.b32.xlu0 %v1955, 32
        %v1975 = vpop.permute.xlu0 %1974
        %1976 = vrot.lane.b32.xlu0 %v1956, 32
        %v1977 = vpop.permute.xlu0 %1976
        %1978 = vrot.lane.b32.xlu0 %v1957, 32
        %v1979 = vpop.permute.xlu0 %1978
        %1980 = vrot.lane.b32.xlu0 %v1958, 32
        %v1981 = vpop.permute.xlu0 %1980
        %1982 = vrot.lane.b32.xlu0 %v1959, 32
        %v1983 = vpop.permute.xlu0 %1982
        %v1992 = vadd.f32 %v1912, %v1969
        %v1993 = vadd.f32 %v1913, %v1971
        %v1994 = vadd.f32 %v1914, %v1973
        %v1995 = vadd.f32 %v1915, %v1975
        %v1996 = vadd.f32 %v1916, %v1977
        %v1997 = vadd.f32 %v1917, %v1979
        %v1998 = vadd.f32 %v1918, %v1981
        %v1999 = vadd.f32 %v1919, %v1983
        %v2000 = vtanh.pop %v1992
        %v2001 = vtanh.pop %v1993
        %v2002 = vtanh.pop %v1994
        %v2003 = vtanh.pop %v1995
        %v2004 = vtanh.pop %v1996
        %v2005 = vtanh.pop %v1997
        %v2006 = vtanh.pop %v1998
        %v2007 = vtanh.pop %v1999
        %2016 = vrot.lane.b32.xlu0 %v2000, 64
        %v2017 = vpop.permute.xlu0 %2016
        %2018 = vrot.lane.b32.xlu0 %v2001, 64
        %v2019 = vpop.permute.xlu0 %2018
        %2020 = vrot.lane.b32.xlu0 %v2002, 64
        %v2021 = vpop.permute.xlu0 %2020
        %2022 = vrot.lane.b32.xlu0 %v2003, 64
        %v2023 = vpop.permute.xlu0 %2022
        %2024 = vrot.lane.b32.xlu0 %v2004, 64
        %v2025 = vpop.permute.xlu0 %2024
        %2026 = vrot.lane.b32.xlu0 %v2005, 64
        %v2027 = vpop.permute.xlu0 %2026
        %2028 = vrot.lane.b32.xlu0 %v2006, 64
        %v2029 = vpop.permute.xlu0 %2028
        %2030 = vrot.lane.b32.xlu0 %v2007, 64
        %v2031 = vpop.permute.xlu0 %2030
        %v2040 = vmul.f32 %v1904, %v2017
        %v2041 = vmul.f32 %v1905, %v2019
        %v2042 = vmul.f32 %v1906, %v2021
        %v2043 = vmul.f32 %v1907, %v2023
        %v2044 = vmul.f32 %v1908, %v2025
        %v2045 = vmul.f32 %v1909, %v2027
        %v2046 = vmul.f32 %v1910, %v2029
        %v2047 = vmul.f32 %v1911, %v2031
        %v2048 = vld [vmem:[#allocation2 + $0x6] sm:$0x1]
        %v2049 = vld [vmem:[#allocation2 + $0x16] sm:$0x1]
        %v2050 = vld [vmem:[#allocation2 + $0x26] sm:$0x1]
        %v2051 = vld [vmem:[#allocation2 + $0x36] sm:$0x1]
        %v2052 = vld [vmem:[#allocation2 + $0x46] sm:$0x1]
        %v2053 = vld [vmem:[#allocation2 + $0x56] sm:$0x1]
        %v2054 = vld [vmem:[#allocation2 + $0x66] sm:$0x1]
        %v2055 = vld [vmem:[#allocation2 + $0x76] sm:$0x1]
        %v2056 = vpack.c.bf16 %v2040, %v2040
        %v2057 = vpack.c.bf16 %v2041, %v2041
        %v2058 = vpack.c.bf16 %v2042, %v2042
        %v2059 = vpack.c.bf16 %v2043, %v2043
        %v2060 = vpack.c.bf16 %v2044, %v2044
        %v2061 = vpack.c.bf16 %v2045, %v2045
        %v2062 = vpack.c.bf16 %v2046, %v2046
        %v2063 = vpack.c.bf16 %v2047, %v2047
        %v2072 = vunpack.c.l.b16 %v2056
        %v2073 = vunpack.c.l.b16 %v2057
        %v2074 = vunpack.c.l.b16 %v2058
        %v2075 = vunpack.c.l.b16 %v2059
        %v2076 = vunpack.c.l.b16 %v2060
        %v2077 = vunpack.c.l.b16 %v2061
        %v2078 = vunpack.c.l.b16 %v2062
        %v2079 = vunpack.c.l.b16 %v2063
        %v2080 = vrot.slane %v2073, 7
        %v2081 = vsel %vm829, %v2080, %v2072
        %v2082 = vrot.slane %v2074, 6
        %v2083 = vsel %vm832, %v2082, %v2081
        %v2084 = vrot.slane %v2075, 5
        %v2085 = vsel %vm835, %v2084, %v2083
        %v2086 = vrot.slane %v2076, 4
        %v2087 = vsel %vm838, %v2086, %v2085
        %v2088 = vrot.slane %v2077, 3
        %v2089 = vsel %vm841, %v2088, %v2087
        %v2090 = vrot.slane %v2078, 2
        %v2091 = vsel %vm844, %v2090, %v2089
        %v2092 = vrot.slane %v2079, 1
        %v2093 = vsel %vm847, %v2092, %v2091
        %v2094 = vpack.c.b16 %v2093, %v2093
        %2095 = vrot.lane.b32.xlu0 %v2094, 32
        %v2096 = vpop.permute.xlu0 %2095
        %v2098 = vsel %vm563, %v2096, 0
        %2100 = vmatpush.bf16.msra.mxu0 0
        %2101 = vmatpush.bf16.msra.mxu0 0
        %2102 = vmatpush.bf16.msra.mxu0 0
        %2103 = vmatpush.bf16.msra.mxu0 0
        %2104 = vmatpush.bf16.msra.mxu0 0
        %2105 = vmatpush.bf16.msra.mxu0 0
        %2106 = vmatpush.bf16.msra.mxu0 %v560
        %2107 = vmatpush.bf16.msra.mxu0 %v559
        %2108 = vmatmul.bf16.gmra.mxu0 %v2098
        %v2109 = vpop.f32.mrf.mxu0
        %v2110 = vadd.f32 0.0, %v2109
        %v2111 = vpop.f32.mrf.mxu0
        %2112 = vdwg.mxu0
        %v2114 = vrot.slane %v2110, 1
        %v2115 = vrot.slane %v2110, 2
        %v2116 = vrot.slane %v2110, 3
        %v2117 = vrot.slane %v2110, 4
        %v2118 = vrot.slane %v2110, 5
        %v2119 = vrot.slane %v2110, 6
        %v2120 = vrot.slane %v2110, 7
        %v2129 = vadd.f32 %v2048, %v2110
        %v2130 = vadd.f32 %v2049, %v2114
        %v2131 = vadd.f32 %v2050, %v2115
        %v2132 = vadd.f32 %v2051, %v2116
        %v2133 = vadd.f32 %v2052, %v2117
        %v2134 = vadd.f32 %v2053, %v2118
        %v2135 = vadd.f32 %v2054, %v2119
        %v2136 = vadd.f32 %v2055, %v2120
        %v2137 = vtanh.pop %v2129
        %v2138 = vtanh.pop %v2130
        %v2139 = vtanh.pop %v2131
        %v2140 = vtanh.pop %v2132
        %v2141 = vtanh.pop %v2133
        %v2142 = vtanh.pop %v2134
        %v2143 = vtanh.pop %v2135
        %v2144 = vtanh.pop %v2136
        %v2145 = vmul.f32 %v2137, %v534
        %v2146 = vmul.f32 %v2138, %v534
        %v2147 = vmul.f32 %v2139, %v534
        %v2148 = vmul.f32 %v2140, %v534
        %v2149 = vmul.f32 %v2141, %v534
        %v2150 = vmul.f32 %v2142, %v534
        %v2151 = vmul.f32 %v2143, %v534
        %v2152 = vmul.f32 %v2144, %v534
        %v2153 = vadd.f32 %v2145, %v535
        %v2154 = vadd.f32 %v2146, %v535
        %v2155 = vadd.f32 %v2147, %v535
        %v2156 = vadd.f32 %v2148, %v535
        %v2157 = vadd.f32 %v2149, %v535
        %v2158 = vadd.f32 %v2150, %v535
        %v2159 = vadd.f32 %v2151, %v535
        %v2160 = vadd.f32 %v2152, %v535
        %v2161 = vmul.f32 %v2153, %v1992
        %v2162 = vmul.f32 %v2154, %v1993
        %v2163 = vmul.f32 %v2155, %v1994
        %v2164 = vmul.f32 %v2156, %v1995
        %v2165 = vmul.f32 %v2157, %v1996
        %v2166 = vmul.f32 %v2158, %v1997
        %v2167 = vmul.f32 %v2159, %v1998
        %v2168 = vmul.f32 %v2160, %v1999
        %2177 = vrot.lane.b32.xlu0 %v2153, 64
        %v2178 = vpop.permute.xlu0 %2177
        %2179 = vrot.lane.b32.xlu0 %v2154, 64
        %v2180 = vpop.permute.xlu0 %2179
        %2181 = vrot.lane.b32.xlu0 %v2155, 64
        %v2182 = vpop.permute.xlu0 %2181
        %2183 = vrot.lane.b32.xlu0 %v2156, 64
        %v2184 = vpop.permute.xlu0 %2183
        %2185 = vrot.lane.b32.xlu0 %v2157, 64
        %v2186 = vpop.permute.xlu0 %2185
        %2187 = vrot.lane.b32.xlu0 %v2158, 64
        %v2188 = vpop.permute.xlu0 %2187
        %2189 = vrot.lane.b32.xlu0 %v2159, 64
        %v2190 = vpop.permute.xlu0 %2189
        %2191 = vrot.lane.b32.xlu0 %v2160, 64
        %v2192 = vpop.permute.xlu0 %2191
        %v2201 = vmul.f32 %v2153, %v2178
        %v2202 = vmul.f32 %v2154, %v2180
        %v2203 = vmul.f32 %v2155, %v2182
        %v2204 = vmul.f32 %v2156, %v2184
        %v2205 = vmul.f32 %v2157, %v2186
        %v2206 = vmul.f32 %v2158, %v2188
        %v2207 = vmul.f32 %v2159, %v2190
        %v2208 = vmul.f32 %v2160, %v2192
        %2217 = vrot.lane.b32.xlu0 %v2201, 32
        %v2218 = vpop.permute.xlu0 %2217
        %2219 = vrot.lane.b32.xlu0 %v2202, 32
        %v2220 = vpop.permute.xlu0 %2219
        %2221 = vrot.lane.b32.xlu0 %v2203, 32
        %v2222 = vpop.permute.xlu0 %2221
        %2223 = vrot.lane.b32.xlu0 %v2204, 32
        %v2224 = vpop.permute.xlu0 %2223
        %2225 = vrot.lane.b32.xlu0 %v2205, 32
        %v2226 = vpop.permute.xlu0 %2225
        %2227 = vrot.lane.b32.xlu0 %v2206, 32
        %v2228 = vpop.permute.xlu0 %2227
        %2229 = vrot.lane.b32.xlu0 %v2207, 32
        %v2230 = vpop.permute.xlu0 %2229
        %2231 = vrot.lane.b32.xlu0 %v2208, 32
        %v2232 = vpop.permute.xlu0 %2231
        %v2241 = vadd.f32 %v2161, %v2218
        %v2242 = vadd.f32 %v2162, %v2220
        %v2243 = vadd.f32 %v2163, %v2222
        %v2244 = vadd.f32 %v2164, %v2224
        %v2245 = vadd.f32 %v2165, %v2226
        %v2246 = vadd.f32 %v2166, %v2228
        %v2247 = vadd.f32 %v2167, %v2230
        %v2248 = vadd.f32 %v2168, %v2232
        %v2249 = vtanh.pop %v2241
        %v2250 = vtanh.pop %v2242
        %v2251 = vtanh.pop %v2243
        %v2252 = vtanh.pop %v2244
        %v2253 = vtanh.pop %v2245
        %v2254 = vtanh.pop %v2246
        %v2255 = vtanh.pop %v2247
        %v2256 = vtanh.pop %v2248
        %2265 = vrot.lane.b32.xlu0 %v2249, 64
        %v2266 = vpop.permute.xlu0 %2265
        %2267 = vrot.lane.b32.xlu0 %v2250, 64
        %v2268 = vpop.permute.xlu0 %2267
        %2269 = vrot.lane.b32.xlu0 %v2251, 64
        %v2270 = vpop.permute.xlu0 %2269
        %2271 = vrot.lane.b32.xlu0 %v2252, 64
        %v2272 = vpop.permute.xlu0 %2271
        %2273 = vrot.lane.b32.xlu0 %v2253, 64
        %v2274 = vpop.permute.xlu0 %2273
        %2275 = vrot.lane.b32.xlu0 %v2254, 64
        %v2276 = vpop.permute.xlu0 %2275
        %2277 = vrot.lane.b32.xlu0 %v2255, 64
        %v2278 = vpop.permute.xlu0 %2277
        %2279 = vrot.lane.b32.xlu0 %v2256, 64
        %v2280 = vpop.permute.xlu0 %2279
        %v2289 = vmul.f32 %v2153, %v2266
        %v2290 = vmul.f32 %v2154, %v2268
        %v2291 = vmul.f32 %v2155, %v2270
        %v2292 = vmul.f32 %v2156, %v2272
        %v2293 = vmul.f32 %v2157, %v2274
        %v2294 = vmul.f32 %v2158, %v2276
        %v2295 = vmul.f32 %v2159, %v2278
        %v2296 = vmul.f32 %v2160, %v2280
        %v2297 = vld [vmem:[#allocation2 + $0x7] sm:$0x1]
        %v2298 = vld [vmem:[#allocation2 + $0x17] sm:$0x1]
        %v2299 = vld [vmem:[#allocation2 + $0x27] sm:$0x1]
        %v2300 = vld [vmem:[#allocation2 + $0x37] sm:$0x1]
        %v2301 = vld [vmem:[#allocation2 + $0x47] sm:$0x1]
        %v2302 = vld [vmem:[#allocation2 + $0x57] sm:$0x1]
        %v2303 = vld [vmem:[#allocation2 + $0x67] sm:$0x1]
        %v2304 = vld [vmem:[#allocation2 + $0x77] sm:$0x1]
        %v2305 = vpack.c.bf16 %v2289, %v2289
        %v2306 = vpack.c.bf16 %v2290, %v2290
        %v2307 = vpack.c.bf16 %v2291, %v2291
        %v2308 = vpack.c.bf16 %v2292, %v2292
        %v2309 = vpack.c.bf16 %v2293, %v2293
        %v2310 = vpack.c.bf16 %v2294, %v2294
        %v2311 = vpack.c.bf16 %v2295, %v2295
        %v2312 = vpack.c.bf16 %v2296, %v2296
        %v2321 = vunpack.c.l.b16 %v2305
        %v2322 = vunpack.c.l.b16 %v2306
        %v2323 = vunpack.c.l.b16 %v2307
        %v2324 = vunpack.c.l.b16 %v2308
        %v2325 = vunpack.c.l.b16 %v2309
        %v2326 = vunpack.c.l.b16 %v2310
        %v2327 = vunpack.c.l.b16 %v2311
        %v2328 = vunpack.c.l.b16 %v2312
        %v2329 = vrot.slane %v2322, 7
        %v2330 = vsel %vm829, %v2329, %v2321
        %v2331 = vrot.slane %v2323, 6
        %v2332 = vsel %vm832, %v2331, %v2330
        %v2333 = vrot.slane %v2324, 5
        %v2334 = vsel %vm835, %v2333, %v2332
        %v2335 = vrot.slane %v2325, 4
        %v2336 = vsel %vm838, %v2335, %v2334
        %v2337 = vrot.slane %v2326, 3
        %v2338 = vsel %vm841, %v2337, %v2336
        %v2339 = vrot.slane %v2327, 2
        %v2340 = vsel %vm844, %v2339, %v2338
        %v2341 = vrot.slane %v2328, 1
        %v2342 = vsel %vm847, %v2341, %v2340
        %v2343 = vpack.c.b16 %v2342, %v2342
        %2344 = vrot.lane.b32.xlu0 %v2343, 32
        %v2345 = vpop.permute.xlu0 %2344
        %v2347 = vsel %vm563, %v2345, 0
        %2349 = vmatpush.bf16.msra.mxu0 0
        %2350 = vmatpush.bf16.msra.mxu0 0
        %2351 = vmatpush.bf16.msra.mxu0 0
        %2352 = vmatpush.bf16.msra.mxu0 0
        %2353 = vmatpush.bf16.msra.mxu0 0
        %2354 = vmatpush.bf16.msra.mxu0 0
        %2355 = vmatpush.bf16.msra.mxu0 %v560
        %2356 = vmatpush.bf16.msra.mxu0 %v559
        %2357 = vmatmul.bf16.gmra.mxu0 %v2347
        %v2358 = vpop.f32.mrf.mxu0
        %v2359 = vadd.f32 0.0, %v2358
        %v2360 = vpop.f32.mrf.mxu0
        %2361 = vdwg.mxu0
        %v2363 = vrot.slane %v2359, 1
        %v2364 = vrot.slane %v2359, 2
        %v2365 = vrot.slane %v2359, 3
        %v2366 = vrot.slane %v2359, 4
        %v2367 = vrot.slane %v2359, 5
        %v2368 = vrot.slane %v2359, 6
        %v2369 = vrot.slane %v2359, 7
        %v2378 = vadd.f32 %v2297, %v2359
        %v2379 = vadd.f32 %v2298, %v2363
        %v2380 = vadd.f32 %v2299, %v2364
        %v2381 = vadd.f32 %v2300, %v2365
        %v2382 = vadd.f32 %v2301, %v2366
        %v2383 = vadd.f32 %v2302, %v2367
        %v2384 = vadd.f32 %v2303, %v2368
        %v2385 = vadd.f32 %v2304, %v2369
        %v2386 = vtanh.pop %v2378
        %v2387 = vtanh.pop %v2379
        %v2388 = vtanh.pop %v2380
        %v2389 = vtanh.pop %v2381
        %v2390 = vtanh.pop %v2382
        %v2391 = vtanh.pop %v2383
        %v2392 = vtanh.pop %v2384
        %v2393 = vtanh.pop %v2385
        %v2394 = vmul.f32 %v2386, %v534
        %v2395 = vmul.f32 %v2387, %v534
        %v2396 = vmul.f32 %v2388, %v534
        %v2397 = vmul.f32 %v2389, %v534
        %v2398 = vmul.f32 %v2390, %v534
        %v2399 = vmul.f32 %v2391, %v534
        %v2400 = vmul.f32 %v2392, %v534
        %v2401 = vmul.f32 %v2393, %v534
        %v2402 = vadd.f32 %v2394, %v535
        %v2403 = vadd.f32 %v2395, %v535
        %v2404 = vadd.f32 %v2396, %v535
        %v2405 = vadd.f32 %v2397, %v535
        %v2406 = vadd.f32 %v2398, %v535
        %v2407 = vadd.f32 %v2399, %v535
        %v2408 = vadd.f32 %v2400, %v535
        %v2409 = vadd.f32 %v2401, %v535
        %v2410 = vmul.f32 %v2402, %v2241
        %v2411 = vmul.f32 %v2403, %v2242
        %v2412 = vmul.f32 %v2404, %v2243
        %v2413 = vmul.f32 %v2405, %v2244
        %v2414 = vmul.f32 %v2406, %v2245
        %v2415 = vmul.f32 %v2407, %v2246
        %v2416 = vmul.f32 %v2408, %v2247
        %v2417 = vmul.f32 %v2409, %v2248
        %2426 = vrot.lane.b32.xlu0 %v2402, 64
        %v2427 = vpop.permute.xlu0 %2426
        %2428 = vrot.lane.b32.xlu0 %v2403, 64
        %v2429 = vpop.permute.xlu0 %2428
        %2430 = vrot.lane.b32.xlu0 %v2404, 64
        %v2431 = vpop.permute.xlu0 %2430
        %2432 = vrot.lane.b32.xlu0 %v2405, 64
        %v2433 = vpop.permute.xlu0 %2432
        %2434 = vrot.lane.b32.xlu0 %v2406, 64
        %v2435 = vpop.permute.xlu0 %2434
        %2436 = vrot.lane.b32.xlu0 %v2407, 64
        %v2437 = vpop.permute.xlu0 %2436
        %2438 = vrot.lane.b32.xlu0 %v2408, 64
        %v2439 = vpop.permute.xlu0 %2438
        %2440 = vrot.lane.b32.xlu0 %v2409, 64
        %v2441 = vpop.permute.xlu0 %2440
        %v2450 = vmul.f32 %v2402, %v2427
        %v2451 = vmul.f32 %v2403, %v2429
        %v2452 = vmul.f32 %v2404, %v2431
        %v2453 = vmul.f32 %v2405, %v2433
        %v2454 = vmul.f32 %v2406, %v2435
        %v2455 = vmul.f32 %v2407, %v2437
        %v2456 = vmul.f32 %v2408, %v2439
        %v2457 = vmul.f32 %v2409, %v2441
        %2466 = vrot.lane.b32.xlu0 %v2450, 32
        %v2467 = vpop.permute.xlu0 %2466
        %2468 = vrot.lane.b32.xlu0 %v2451, 32
        %v2469 = vpop.permute.xlu0 %2468
        %2470 = vrot.lane.b32.xlu0 %v2452, 32
        %v2471 = vpop.permute.xlu0 %2470
        %2472 = vrot.lane.b32.xlu0 %v2453, 32
        %v2473 = vpop.permute.xlu0 %2472
        %2474 = vrot.lane.b32.xlu0 %v2454, 32
        %v2475 = vpop.permute.xlu0 %2474
        %2476 = vrot.lane.b32.xlu0 %v2455, 32
        %v2477 = vpop.permute.xlu0 %2476
        %2478 = vrot.lane.b32.xlu0 %v2456, 32
        %v2479 = vpop.permute.xlu0 %2478
        %2480 = vrot.lane.b32.xlu0 %v2457, 32
        %v2481 = vpop.permute.xlu0 %2480
        %v2490 = vadd.f32 %v2410, %v2467
        %v2491 = vadd.f32 %v2411, %v2469
        %v2492 = vadd.f32 %v2412, %v2471
        %v2493 = vadd.f32 %v2413, %v2473
        %v2494 = vadd.f32 %v2414, %v2475
        %v2495 = vadd.f32 %v2415, %v2477
        %v2496 = vadd.f32 %v2416, %v2479
        %v2497 = vadd.f32 %v2417, %v2481
        %v2498 = vtanh.pop %v2490
        %v2499 = vtanh.pop %v2491
        %v2500 = vtanh.pop %v2492
        %v2501 = vtanh.pop %v2493
        %v2502 = vtanh.pop %v2494
        %v2503 = vtanh.pop %v2495
        %v2504 = vtanh.pop %v2496
        %v2505 = vtanh.pop %v2497
        %2514 = vrot.lane.b32.xlu0 %v2498, 64
        %v2515 = vpop.permute.xlu0 %2514
        %2516 = vrot.lane.b32.xlu0 %v2499, 64
        %v2517 = vpop.permute.xlu0 %2516
        %2518 = vrot.lane.b32.xlu0 %v2500, 64
        %v2519 = vpop.permute.xlu0 %2518
        %2520 = vrot.lane.b32.xlu0 %v2501, 64
        %v2521 = vpop.permute.xlu0 %2520
        %2522 = vrot.lane.b32.xlu0 %v2502, 64
        %v2523 = vpop.permute.xlu0 %2522
        %2524 = vrot.lane.b32.xlu0 %v2503, 64
        %v2525 = vpop.permute.xlu0 %2524
        %2526 = vrot.lane.b32.xlu0 %v2504, 64
        %v2527 = vpop.permute.xlu0 %2526
        %2528 = vrot.lane.b32.xlu0 %v2505, 64
        %v2529 = vpop.permute.xlu0 %2528
        %v2538 = vmul.f32 %v2402, %v2515
        %v2539 = vmul.f32 %v2403, %v2517
        %v2540 = vmul.f32 %v2404, %v2519
        %v2541 = vmul.f32 %v2405, %v2521
        %v2542 = vmul.f32 %v2406, %v2523
        %v2543 = vmul.f32 %v2407, %v2525
        %v2544 = vmul.f32 %v2408, %v2527
        %v2545 = vmul.f32 %v2409, %v2529
        %v2546 = vld [vmem:[#allocation2 + $0x8] sm:$0x1]
        %v2547 = vld [vmem:[#allocation2 + $0x18] sm:$0x1]
        %v2548 = vld [vmem:[#allocation2 + $0x28] sm:$0x1]
        %v2549 = vld [vmem:[#allocation2 + $0x38] sm:$0x1]
        %v2550 = vld [vmem:[#allocation2 + $0x48] sm:$0x1]
        %v2551 = vld [vmem:[#allocation2 + $0x58] sm:$0x1]
        %v2552 = vld [vmem:[#allocation2 + $0x68] sm:$0x1]
        %v2553 = vld [vmem:[#allocation2 + $0x78] sm:$0x1]
        %v2554 = vpack.c.bf16 %v2538, %v2538
        %v2555 = vpack.c.bf16 %v2539, %v2539
        %v2556 = vpack.c.bf16 %v2540, %v2540
        %v2557 = vpack.c.bf16 %v2541, %v2541
        %v2558 = vpack.c.bf16 %v2542, %v2542
        %v2559 = vpack.c.bf16 %v2543, %v2543
        %v2560 = vpack.c.bf16 %v2544, %v2544
        %v2561 = vpack.c.bf16 %v2545, %v2545
        %v2570 = vunpack.c.l.b16 %v2554
        %v2571 = vunpack.c.l.b16 %v2555
        %v2572 = vunpack.c.l.b16 %v2556
        %v2573 = vunpack.c.l.b16 %v2557
        %v2574 = vunpack.c.l.b16 %v2558
        %v2575 = vunpack.c.l.b16 %v2559
        %v2576 = vunpack.c.l.b16 %v2560
        %v2577 = vunpack.c.l.b16 %v2561
        %v2578 = vrot.slane %v2571, 7
        %v2579 = vsel %vm829, %v2578, %v2570
        %v2580 = vrot.slane %v2572, 6
        %v2581 = vsel %vm832, %v2580, %v2579
        %v2582 = vrot.slane %v2573, 5
        %v2583 = vsel %vm835, %v2582, %v2581
        %v2584 = vrot.slane %v2574, 4
        %v2585 = vsel %vm838, %v2584, %v2583
        %v2586 = vrot.slane %v2575, 3
        %v2587 = vsel %vm841, %v2586, %v2585
        %v2588 = vrot.slane %v2576, 2
        %v2589 = vsel %vm844, %v2588, %v2587
        %v2590 = vrot.slane %v2577, 1
        %v2591 = vsel %vm847, %v2590, %v2589
        %v2592 = vpack.c.b16 %v2591, %v2591
        %2593 = vrot.lane.b32.xlu0 %v2592, 32
        %v2594 = vpop.permute.xlu0 %2593
        %v2596 = vsel %vm563, %v2594, 0
        %2598 = vmatpush.bf16.msra.mxu0 0
        %2599 = vmatpush.bf16.msra.mxu0 0
        %2600 = vmatpush.bf16.msra.mxu0 0
        %2601 = vmatpush.bf16.msra.mxu0 0
        %2602 = vmatpush.bf16.msra.mxu0 0
        %2603 = vmatpush.bf16.msra.mxu0 0
        %2604 = vmatpush.bf16.msra.mxu0 %v560
        %2605 = vmatpush.bf16.msra.mxu0 %v559
        %2606 = vmatmul.bf16.gmra.mxu0 %v2596
        %v2607 = vpop.f32.mrf.mxu0
        %v2608 = vadd.f32 0.0, %v2607
        %v2609 = vpop.f32.mrf.mxu0
        %2610 = vdwg.mxu0
        %v2612 = vrot.slane %v2608, 1
        %v2613 = vrot.slane %v2608, 2
        %v2614 = vrot.slane %v2608, 3
        %v2615 = vrot.slane %v2608, 4
        %v2616 = vrot.slane %v2608, 5
        %v2617 = vrot.slane %v2608, 6
        %v2618 = vrot.slane %v2608, 7
        %v2627 = vadd.f32 %v2546, %v2608
        %v2628 = vadd.f32 %v2547, %v2612
        %v2629 = vadd.f32 %v2548, %v2613
        %v2630 = vadd.f32 %v2549, %v2614
        %v2631 = vadd.f32 %v2550, %v2615
        %v2632 = vadd.f32 %v2551, %v2616
        %v2633 = vadd.f32 %v2552, %v2617
        %v2634 = vadd.f32 %v2553, %v2618
        %v2635 = vtanh.pop %v2627
        %v2636 = vtanh.pop %v2628
        %v2637 = vtanh.pop %v2629
        %v2638 = vtanh.pop %v2630
        %v2639 = vtanh.pop %v2631
        %v2640 = vtanh.pop %v2632
        %v2641 = vtanh.pop %v2633
        %v2642 = vtanh.pop %v2634
        %v2643 = vmul.f32 %v2635, %v534
        %v2644 = vmul.f32 %v2636, %v534
        %v2645 = vmul.f32 %v2637, %v534
        %v2646 = vmul.f32 %v2638, %v534
        %v2647 = vmul.f32 %v2639, %v534
        %v2648 = vmul.f32 %v2640, %v534
        %v2649 = vmul.f32 %v2641, %v534
        %v2650 = vmul.f32 %v2642, %v534
        %v2651 = vadd.f32 %v2643, %v535
        %v2652 = vadd.f32 %v2644, %v535
        %v2653 = vadd.f32 %v2645, %v535
        %v2654 = vadd.f32 %v2646, %v535
        %v2655 = vadd.f32 %v2647, %v535
        %v2656 = vadd.f32 %v2648, %v535
        %v2657 = vadd.f32 %v2649, %v535
        %v2658 = vadd.f32 %v2650, %v535
        %v2659 = vmul.f32 %v2651, %v2490
        %v2660 = vmul.f32 %v2652, %v2491
        %v2661 = vmul.f32 %v2653, %v2492
        %v2662 = vmul.f32 %v2654, %v2493
        %v2663 = vmul.f32 %v2655, %v2494
        %v2664 = vmul.f32 %v2656, %v2495
        %v2665 = vmul.f32 %v2657, %v2496
        %v2666 = vmul.f32 %v2658, %v2497
        %2675 = vrot.lane.b32.xlu0 %v2651, 64
        %v2676 = vpop.permute.xlu0 %2675
        %2677 = vrot.lane.b32.xlu0 %v2652, 64
        %v2678 = vpop.permute.xlu0 %2677
        %2679 = vrot.lane.b32.xlu0 %v2653, 64
        %v2680 = vpop.permute.xlu0 %2679
        %2681 = vrot.lane.b32.xlu0 %v2654, 64
        %v2682 = vpop.permute.xlu0 %2681
        %2683 = vrot.lane.b32.xlu0 %v2655, 64
        %v2684 = vpop.permute.xlu0 %2683
        %2685 = vrot.lane.b32.xlu0 %v2656, 64
        %v2686 = vpop.permute.xlu0 %2685
        %2687 = vrot.lane.b32.xlu0 %v2657, 64
        %v2688 = vpop.permute.xlu0 %2687
        %2689 = vrot.lane.b32.xlu0 %v2658, 64
        %v2690 = vpop.permute.xlu0 %2689
        %v2699 = vmul.f32 %v2651, %v2676
        %v2700 = vmul.f32 %v2652, %v2678
        %v2701 = vmul.f32 %v2653, %v2680
        %v2702 = vmul.f32 %v2654, %v2682
        %v2703 = vmul.f32 %v2655, %v2684
        %v2704 = vmul.f32 %v2656, %v2686
        %v2705 = vmul.f32 %v2657, %v2688
        %v2706 = vmul.f32 %v2658, %v2690
        %2715 = vrot.lane.b32.xlu0 %v2699, 32
        %v2716 = vpop.permute.xlu0 %2715
        %2717 = vrot.lane.b32.xlu0 %v2700, 32
        %v2718 = vpop.permute.xlu0 %2717
        %2719 = vrot.lane.b32.xlu0 %v2701, 32
        %v2720 = vpop.permute.xlu0 %2719
        %2721 = vrot.lane.b32.xlu0 %v2702, 32
        %v2722 = vpop.permute.xlu0 %2721
        %2723 = vrot.lane.b32.xlu0 %v2703, 32
        %v2724 = vpop.permute.xlu0 %2723
        %2725 = vrot.lane.b32.xlu0 %v2704, 32
        %v2726 = vpop.permute.xlu0 %2725
        %2727 = vrot.lane.b32.xlu0 %v2705, 32
        %v2728 = vpop.permute.xlu0 %2727
        %2729 = vrot.lane.b32.xlu0 %v2706, 32
        %v2730 = vpop.permute.xlu0 %2729
        %v2739 = vadd.f32 %v2659, %v2716
        %v2740 = vadd.f32 %v2660, %v2718
        %v2741 = vadd.f32 %v2661, %v2720
        %v2742 = vadd.f32 %v2662, %v2722
        %v2743 = vadd.f32 %v2663, %v2724
        %v2744 = vadd.f32 %v2664, %v2726
        %v2745 = vadd.f32 %v2665, %v2728
        %v2746 = vadd.f32 %v2666, %v2730
        %v2747 = vtanh.pop %v2739
        %v2748 = vtanh.pop %v2740
        %v2749 = vtanh.pop %v2741
        %v2750 = vtanh.pop %v2742
        %v2751 = vtanh.pop %v2743
        %v2752 = vtanh.pop %v2744
        %v2753 = vtanh.pop %v2745
        %v2754 = vtanh.pop %v2746
        %2763 = vrot.lane.b32.xlu0 %v2747, 64
        %v2764 = vpop.permute.xlu0 %2763
        %2765 = vrot.lane.b32.xlu0 %v2748, 64
        %v2766 = vpop.permute.xlu0 %2765
        %2767 = vrot.lane.b32.xlu0 %v2749, 64
        %v2768 = vpop.permute.xlu0 %2767
        %2769 = vrot.lane.b32.xlu0 %v2750, 64
        %v2770 = vpop.permute.xlu0 %2769
        %2771 = vrot.lane.b32.xlu0 %v2751, 64
        %v2772 = vpop.permute.xlu0 %2771
        %2773 = vrot.lane.b32.xlu0 %v2752, 64
        %v2774 = vpop.permute.xlu0 %2773
        %2775 = vrot.lane.b32.xlu0 %v2753, 64
        %v2776 = vpop.permute.xlu0 %2775
        %2777 = vrot.lane.b32.xlu0 %v2754, 64
        %v2778 = vpop.permute.xlu0 %2777
        %v2787 = vmul.f32 %v2651, %v2764
        %v2788 = vmul.f32 %v2652, %v2766
        %v2789 = vmul.f32 %v2653, %v2768
        %v2790 = vmul.f32 %v2654, %v2770
        %v2791 = vmul.f32 %v2655, %v2772
        %v2792 = vmul.f32 %v2656, %v2774
        %v2793 = vmul.f32 %v2657, %v2776
        %v2794 = vmul.f32 %v2658, %v2778
        %v2795 = vld [vmem:[#allocation2 + $0x9] sm:$0x1]
        %v2796 = vld [vmem:[#allocation2 + $0x19] sm:$0x1]
        %v2797 = vld [vmem:[#allocation2 + $0x29] sm:$0x1]
        %v2798 = vld [vmem:[#allocation2 + $0x39] sm:$0x1]
        %v2799 = vld [vmem:[#allocation2 + $0x49] sm:$0x1]
        %v2800 = vld [vmem:[#allocation2 + $0x59] sm:$0x1]
        %v2801 = vld [vmem:[#allocation2 + $0x69] sm:$0x1]
        %v2802 = vld [vmem:[#allocation2 + $0x79] sm:$0x1]
        %v2803 = vpack.c.bf16 %v2787, %v2787
        %v2804 = vpack.c.bf16 %v2788, %v2788
        %v2805 = vpack.c.bf16 %v2789, %v2789
        %v2806 = vpack.c.bf16 %v2790, %v2790
        %v2807 = vpack.c.bf16 %v2791, %v2791
        %v2808 = vpack.c.bf16 %v2792, %v2792
        %v2809 = vpack.c.bf16 %v2793, %v2793
        %v2810 = vpack.c.bf16 %v2794, %v2794
        %v2819 = vunpack.c.l.b16 %v2803
        %v2820 = vunpack.c.l.b16 %v2804
        %v2821 = vunpack.c.l.b16 %v2805
        %v2822 = vunpack.c.l.b16 %v2806
        %v2823 = vunpack.c.l.b16 %v2807
        %v2824 = vunpack.c.l.b16 %v2808
        %v2825 = vunpack.c.l.b16 %v2809
        %v2826 = vunpack.c.l.b16 %v2810
        %v2827 = vrot.slane %v2820, 7
        %v2828 = vsel %vm829, %v2827, %v2819
        %v2829 = vrot.slane %v2821, 6
        %v2830 = vsel %vm832, %v2829, %v2828
        %v2831 = vrot.slane %v2822, 5
        %v2832 = vsel %vm835, %v2831, %v2830
        %v2833 = vrot.slane %v2823, 4
        %v2834 = vsel %vm838, %v2833, %v2832
        %v2835 = vrot.slane %v2824, 3
        %v2836 = vsel %vm841, %v2835, %v2834
        %v2837 = vrot.slane %v2825, 2
        %v2838 = vsel %vm844, %v2837, %v2836
        %v2839 = vrot.slane %v2826, 1
        %v2840 = vsel %vm847, %v2839, %v2838
        %v2841 = vpack.c.b16 %v2840, %v2840
        %2842 = vrot.lane.b32.xlu0 %v2841, 32
        %v2843 = vpop.permute.xlu0 %2842
        %v2845 = vsel %vm563, %v2843, 0
        %2847 = vmatpush.bf16.msra.mxu0 0
        %2848 = vmatpush.bf16.msra.mxu0 0
        %2849 = vmatpush.bf16.msra.mxu0 0
        %2850 = vmatpush.bf16.msra.mxu0 0
        %2851 = vmatpush.bf16.msra.mxu0 0
        %2852 = vmatpush.bf16.msra.mxu0 0
        %2853 = vmatpush.bf16.msra.mxu0 %v560
        %2854 = vmatpush.bf16.msra.mxu0 %v559
        %2855 = vmatmul.bf16.gmra.mxu0 %v2845
        %v2856 = vpop.f32.mrf.mxu0
        %v2857 = vadd.f32 0.0, %v2856
        %v2858 = vpop.f32.mrf.mxu0
        %2859 = vdwg.mxu0
        %v2861 = vrot.slane %v2857, 1
        %v2862 = vrot.slane %v2857, 2
        %v2863 = vrot.slane %v2857, 3
        %v2864 = vrot.slane %v2857, 4
        %v2865 = vrot.slane %v2857, 5
        %v2866 = vrot.slane %v2857, 6
        %v2867 = vrot.slane %v2857, 7
        %v2876 = vadd.f32 %v2795, %v2857
        %v2877 = vadd.f32 %v2796, %v2861
        %v2878 = vadd.f32 %v2797, %v2862
        %v2879 = vadd.f32 %v2798, %v2863
        %v2880 = vadd.f32 %v2799, %v2864
        %v2881 = vadd.f32 %v2800, %v2865
        %v2882 = vadd.f32 %v2801, %v2866
        %v2883 = vadd.f32 %v2802, %v2867
        %v2884 = vtanh.pop %v2876
        %v2885 = vtanh.pop %v2877
        %v2886 = vtanh.pop %v2878
        %v2887 = vtanh.pop %v2879
        %v2888 = vtanh.pop %v2880
        %v2889 = vtanh.pop %v2881
        %v2890 = vtanh.pop %v2882
        %v2891 = vtanh.pop %v2883
        %v2892 = vmul.f32 %v2884, %v534
        %v2893 = vmul.f32 %v2885, %v534
        %v2894 = vmul.f32 %v2886, %v534
        %v2895 = vmul.f32 %v2887, %v534
        %v2896 = vmul.f32 %v2888, %v534
        %v2897 = vmul.f32 %v2889, %v534
        %v2898 = vmul.f32 %v2890, %v534
        %v2899 = vmul.f32 %v2891, %v534
        %v2900 = vadd.f32 %v2892, %v535
        %v2901 = vadd.f32 %v2893, %v535
        %v2902 = vadd.f32 %v2894, %v535
        %v2903 = vadd.f32 %v2895, %v535
        %v2904 = vadd.f32 %v2896, %v535
        %v2905 = vadd.f32 %v2897, %v535
        %v2906 = vadd.f32 %v2898, %v535
        %v2907 = vadd.f32 %v2899, %v535
        %v2908 = vmul.f32 %v2900, %v2739
        %v2909 = vmul.f32 %v2901, %v2740
        %v2910 = vmul.f32 %v2902, %v2741
        %v2911 = vmul.f32 %v2903, %v2742
        %v2912 = vmul.f32 %v2904, %v2743
        %v2913 = vmul.f32 %v2905, %v2744
        %v2914 = vmul.f32 %v2906, %v2745
        %v2915 = vmul.f32 %v2907, %v2746
        %2924 = vrot.lane.b32.xlu0 %v2900, 64
        %v2925 = vpop.permute.xlu0 %2924
        %2926 = vrot.lane.b32.xlu0 %v2901, 64
        %v2927 = vpop.permute.xlu0 %2926
        %2928 = vrot.lane.b32.xlu0 %v2902, 64
        %v2929 = vpop.permute.xlu0 %2928
        %2930 = vrot.lane.b32.xlu0 %v2903, 64
        %v2931 = vpop.permute.xlu0 %2930
        %2932 = vrot.lane.b32.xlu0 %v2904, 64
        %v2933 = vpop.permute.xlu0 %2932
        %2934 = vrot.lane.b32.xlu0 %v2905, 64
        %v2935 = vpop.permute.xlu0 %2934
        %2936 = vrot.lane.b32.xlu0 %v2906, 64
        %v2937 = vpop.permute.xlu0 %2936
        %2938 = vrot.lane.b32.xlu0 %v2907, 64
        %v2939 = vpop.permute.xlu0 %2938
        %v2948 = vmul.f32 %v2900, %v2925
        %v2949 = vmul.f32 %v2901, %v2927
        %v2950 = vmul.f32 %v2902, %v2929
        %v2951 = vmul.f32 %v2903, %v2931
        %v2952 = vmul.f32 %v2904, %v2933
        %v2953 = vmul.f32 %v2905, %v2935
        %v2954 = vmul.f32 %v2906, %v2937
        %v2955 = vmul.f32 %v2907, %v2939
        %2964 = vrot.lane.b32.xlu0 %v2948, 32
        %v2965 = vpop.permute.xlu0 %2964
        %2966 = vrot.lane.b32.xlu0 %v2949, 32
        %v2967 = vpop.permute.xlu0 %2966
        %2968 = vrot.lane.b32.xlu0 %v2950, 32
        %v2969 = vpop.permute.xlu0 %2968
        %2970 = vrot.lane.b32.xlu0 %v2951, 32
        %v2971 = vpop.permute.xlu0 %2970
        %2972 = vrot.lane.b32.xlu0 %v2952, 32
        %v2973 = vpop.permute.xlu0 %2972
        %2974 = vrot.lane.b32.xlu0 %v2953, 32
        %v2975 = vpop.permute.xlu0 %2974
        %2976 = vrot.lane.b32.xlu0 %v2954, 32
        %v2977 = vpop.permute.xlu0 %2976
        %2978 = vrot.lane.b32.xlu0 %v2955, 32
        %v2979 = vpop.permute.xlu0 %2978
        %v2988 = vadd.f32 %v2908, %v2965
        %v2989 = vadd.f32 %v2909, %v2967
        %v2990 = vadd.f32 %v2910, %v2969
        %v2991 = vadd.f32 %v2911, %v2971
        %v2992 = vadd.f32 %v2912, %v2973
        %v2993 = vadd.f32 %v2913, %v2975
        %v2994 = vadd.f32 %v2914, %v2977
        %v2995 = vadd.f32 %v2915, %v2979
        %v2996 = vtanh.pop %v2988
        %v2997 = vtanh.pop %v2989
        %v2998 = vtanh.pop %v2990
        %v2999 = vtanh.pop %v2991
        %v3000 = vtanh.pop %v2992
        %v3001 = vtanh.pop %v2993
        %v3002 = vtanh.pop %v2994
        %v3003 = vtanh.pop %v2995
        %3012 = vrot.lane.b32.xlu0 %v2996, 64
        %v3013 = vpop.permute.xlu0 %3012
        %3014 = vrot.lane.b32.xlu0 %v2997, 64
        %v3015 = vpop.permute.xlu0 %3014
        %3016 = vrot.lane.b32.xlu0 %v2998, 64
        %v3017 = vpop.permute.xlu0 %3016
        %3018 = vrot.lane.b32.xlu0 %v2999, 64
        %v3019 = vpop.permute.xlu0 %3018
        %3020 = vrot.lane.b32.xlu0 %v3000, 64
        %v3021 = vpop.permute.xlu0 %3020
        %3022 = vrot.lane.b32.xlu0 %v3001, 64
        %v3023 = vpop.permute.xlu0 %3022
        %3024 = vrot.lane.b32.xlu0 %v3002, 64
        %v3025 = vpop.permute.xlu0 %3024
        %3026 = vrot.lane.b32.xlu0 %v3003, 64
        %v3027 = vpop.permute.xlu0 %3026
        %v3036 = vmul.f32 %v2900, %v3013
        %v3037 = vmul.f32 %v2901, %v3015
        %v3038 = vmul.f32 %v2902, %v3017
        %v3039 = vmul.f32 %v2903, %v3019
        %v3040 = vmul.f32 %v2904, %v3021
        %v3041 = vmul.f32 %v2905, %v3023
        %v3042 = vmul.f32 %v2906, %v3025
        %v3043 = vmul.f32 %v2907, %v3027
        %v3044 = vld [vmem:[#allocation2 + $0xa] sm:$0x1]
        %v3045 = vld [vmem:[#allocation2 + $0x1a] sm:$0x1]
        %v3046 = vld [vmem:[#allocation2 + $0x2a] sm:$0x1]
        %v3047 = vld [vmem:[#allocation2 + $0x3a] sm:$0x1]
        %v3048 = vld [vmem:[#allocation2 + $0x4a] sm:$0x1]
        %v3049 = vld [vmem:[#allocation2 + $0x5a] sm:$0x1]
        %v3050 = vld [vmem:[#allocation2 + $0x6a] sm:$0x1]
        %v3051 = vld [vmem:[#allocation2 + $0x7a] sm:$0x1]
        %v3052 = vpack.c.bf16 %v3036, %v3036
        %v3053 = vpack.c.bf16 %v3037, %v3037
        %v3054 = vpack.c.bf16 %v3038, %v3038
        %v3055 = vpack.c.bf16 %v3039, %v3039
        %v3056 = vpack.c.bf16 %v3040, %v3040
        %v3057 = vpack.c.bf16 %v3041, %v3041
        %v3058 = vpack.c.bf16 %v3042, %v3042
        %v3059 = vpack.c.bf16 %v3043, %v3043
        %v3068 = vunpack.c.l.b16 %v3052
        %v3069 = vunpack.c.l.b16 %v3053
        %v3070 = vunpack.c.l.b16 %v3054
        %v3071 = vunpack.c.l.b16 %v3055
        %v3072 = vunpack.c.l.b16 %v3056
        %v3073 = vunpack.c.l.b16 %v3057
        %v3074 = vunpack.c.l.b16 %v3058
        %v3075 = vunpack.c.l.b16 %v3059
        %v3076 = vrot.slane %v3069, 7
        %v3077 = vsel %vm829, %v3076, %v3068
        %v3078 = vrot.slane %v3070, 6
        %v3079 = vsel %vm832, %v3078, %v3077
        %v3080 = vrot.slane %v3071, 5
        %v3081 = vsel %vm835, %v3080, %v3079
        %v3082 = vrot.slane %v3072, 4
        %v3083 = vsel %vm838, %v3082, %v3081
        %v3084 = vrot.slane %v3073, 3
        %v3085 = vsel %vm841, %v3084, %v3083
        %v3086 = vrot.slane %v3074, 2
        %v3087 = vsel %vm844, %v3086, %v3085
        %v3088 = vrot.slane %v3075, 1
        %v3089 = vsel %vm847, %v3088, %v3087
        %v3090 = vpack.c.b16 %v3089, %v3089
        %3091 = vrot.lane.b32.xlu0 %v3090, 32
        %v3092 = vpop.permute.xlu0 %3091
        %v3094 = vsel %vm563, %v3092, 0
        %3096 = vmatpush.bf16.msra.mxu0 0
        %3097 = vmatpush.bf16.msra.mxu0 0
        %3098 = vmatpush.bf16.msra.mxu0 0
        %3099 = vmatpush.bf16.msra.mxu0 0
        %3100 = vmatpush.bf16.msra.mxu0 0
        %3101 = vmatpush.bf16.msra.mxu0 0
        %3102 = vmatpush.bf16.msra.mxu0 %v560
        %3103 = vmatpush.bf16.msra.mxu0 %v559
        %3104 = vmatmul.bf16.gmra.mxu0 %v3094
        %v3105 = vpop.f32.mrf.mxu0
        %v3106 = vadd.f32 0.0, %v3105
        %v3107 = vpop.f32.mrf.mxu0
        %3108 = vdwg.mxu0
        %v3110 = vrot.slane %v3106, 1
        %v3111 = vrot.slane %v3106, 2
        %v3112 = vrot.slane %v3106, 3
        %v3113 = vrot.slane %v3106, 4
        %v3114 = vrot.slane %v3106, 5
        %v3115 = vrot.slane %v3106, 6
        %v3116 = vrot.slane %v3106, 7
        %v3125 = vadd.f32 %v3044, %v3106
        %v3126 = vadd.f32 %v3045, %v3110
        %v3127 = vadd.f32 %v3046, %v3111
        %v3128 = vadd.f32 %v3047, %v3112
        %v3129 = vadd.f32 %v3048, %v3113
        %v3130 = vadd.f32 %v3049, %v3114
        %v3131 = vadd.f32 %v3050, %v3115
        %v3132 = vadd.f32 %v3051, %v3116
        %v3133 = vtanh.pop %v3125
        %v3134 = vtanh.pop %v3126
        %v3135 = vtanh.pop %v3127
        %v3136 = vtanh.pop %v3128
        %v3137 = vtanh.pop %v3129
        %v3138 = vtanh.pop %v3130
        %v3139 = vtanh.pop %v3131
        %v3140 = vtanh.pop %v3132
        %v3141 = vmul.f32 %v3133, %v534
        %v3142 = vmul.f32 %v3134, %v534
        %v3143 = vmul.f32 %v3135, %v534
        %v3144 = vmul.f32 %v3136, %v534
        %v3145 = vmul.f32 %v3137, %v534
        %v3146 = vmul.f32 %v3138, %v534
        %v3147 = vmul.f32 %v3139, %v534
        %v3148 = vmul.f32 %v3140, %v534
        %v3149 = vadd.f32 %v3141, %v535
        %v3150 = vadd.f32 %v3142, %v535
        %v3151 = vadd.f32 %v3143, %v535
        %v3152 = vadd.f32 %v3144, %v535
        %v3153 = vadd.f32 %v3145, %v535
        %v3154 = vadd.f32 %v3146, %v535
        %v3155 = vadd.f32 %v3147, %v535
        %v3156 = vadd.f32 %v3148, %v535
        %v3157 = vmul.f32 %v3149, %v2988
        %v3158 = vmul.f32 %v3150, %v2989
        %v3159 = vmul.f32 %v3151, %v2990
        %v3160 = vmul.f32 %v3152, %v2991
        %v3161 = vmul.f32 %v3153, %v2992
        %v3162 = vmul.f32 %v3154, %v2993
        %v3163 = vmul.f32 %v3155, %v2994
        %v3164 = vmul.f32 %v3156, %v2995
        %3173 = vrot.lane.b32.xlu0 %v3149, 64
        %v3174 = vpop.permute.xlu0 %3173
        %3175 = vrot.lane.b32.xlu0 %v3150, 64
        %v3176 = vpop.permute.xlu0 %3175
        %3177 = vrot.lane.b32.xlu0 %v3151, 64
        %v3178 = vpop.permute.xlu0 %3177
        %3179 = vrot.lane.b32.xlu0 %v3152, 64
        %v3180 = vpop.permute.xlu0 %3179
        %3181 = vrot.lane.b32.xlu0 %v3153, 64
        %v3182 = vpop.permute.xlu0 %3181
        %3183 = vrot.lane.b32.xlu0 %v3154, 64
        %v3184 = vpop.permute.xlu0 %3183
        %3185 = vrot.lane.b32.xlu0 %v3155, 64
        %v3186 = vpop.permute.xlu0 %3185
        %3187 = vrot.lane.b32.xlu0 %v3156, 64
        %v3188 = vpop.permute.xlu0 %3187
        %v3197 = vmul.f32 %v3149, %v3174
        %v3198 = vmul.f32 %v3150, %v3176
        %v3199 = vmul.f32 %v3151, %v3178
        %v3200 = vmul.f32 %v3152, %v3180
        %v3201 = vmul.f32 %v3153, %v3182
        %v3202 = vmul.f32 %v3154, %v3184
        %v3203 = vmul.f32 %v3155, %v3186
        %v3204 = vmul.f32 %v3156, %v3188
        %3213 = vrot.lane.b32.xlu0 %v3197, 32
        %v3214 = vpop.permute.xlu0 %3213
        %3215 = vrot.lane.b32.xlu0 %v3198, 32
        %v3216 = vpop.permute.xlu0 %3215
        %3217 = vrot.lane.b32.xlu0 %v3199, 32
        %v3218 = vpop.permute.xlu0 %3217
        %3219 = vrot.lane.b32.xlu0 %v3200, 32
        %v3220 = vpop.permute.xlu0 %3219
        %3221 = vrot.lane.b32.xlu0 %v3201, 32
        %v3222 = vpop.permute.xlu0 %3221
        %3223 = vrot.lane.b32.xlu0 %v3202, 32
        %v3224 = vpop.permute.xlu0 %3223
        %3225 = vrot.lane.b32.xlu0 %v3203, 32
        %v3226 = vpop.permute.xlu0 %3225
        %3227 = vrot.lane.b32.xlu0 %v3204, 32
        %v3228 = vpop.permute.xlu0 %3227
        %v3237 = vadd.f32 %v3157, %v3214
        %v3238 = vadd.f32 %v3158, %v3216
        %v3239 = vadd.f32 %v3159, %v3218
        %v3240 = vadd.f32 %v3160, %v3220
        %v3241 = vadd.f32 %v3161, %v3222
        %v3242 = vadd.f32 %v3162, %v3224
        %v3243 = vadd.f32 %v3163, %v3226
        %v3244 = vadd.f32 %v3164, %v3228
        %v3245 = vtanh.pop %v3237
        %v3246 = vtanh.pop %v3238
        %v3247 = vtanh.pop %v3239
        %v3248 = vtanh.pop %v3240
        %v3249 = vtanh.pop %v3241
        %v3250 = vtanh.pop %v3242
        %v3251 = vtanh.pop %v3243
        %v3252 = vtanh.pop %v3244
        %3261 = vrot.lane.b32.xlu0 %v3245, 64
        %v3262 = vpop.permute.xlu0 %3261
        %3263 = vrot.lane.b32.xlu0 %v3246, 64
        %v3264 = vpop.permute.xlu0 %3263
        %3265 = vrot.lane.b32.xlu0 %v3247, 64
        %v3266 = vpop.permute.xlu0 %3265
        %3267 = vrot.lane.b32.xlu0 %v3248, 64
        %v3268 = vpop.permute.xlu0 %3267
        %3269 = vrot.lane.b32.xlu0 %v3249, 64
        %v3270 = vpop.permute.xlu0 %3269
        %3271 = vrot.lane.b32.xlu0 %v3250, 64
        %v3272 = vpop.permute.xlu0 %3271
        %3273 = vrot.lane.b32.xlu0 %v3251, 64
        %v3274 = vpop.permute.xlu0 %3273
        %3275 = vrot.lane.b32.xlu0 %v3252, 64
        %v3276 = vpop.permute.xlu0 %3275
        %v3285 = vmul.f32 %v3149, %v3262
        %v3286 = vmul.f32 %v3150, %v3264
        %v3287 = vmul.f32 %v3151, %v3266
        %v3288 = vmul.f32 %v3152, %v3268
        %v3289 = vmul.f32 %v3153, %v3270
        %v3290 = vmul.f32 %v3154, %v3272
        %v3291 = vmul.f32 %v3155, %v3274
        %v3292 = vmul.f32 %v3156, %v3276
        %v3293 = vld [vmem:[#allocation2 + $0xb] sm:$0x1]
        %v3294 = vld [vmem:[#allocation2 + $0x1b] sm:$0x1]
        %v3295 = vld [vmem:[#allocation2 + $0x2b] sm:$0x1]
        %v3296 = vld [vmem:[#allocation2 + $0x3b] sm:$0x1]
        %v3297 = vld [vmem:[#allocation2 + $0x4b] sm:$0x1]
        %v3298 = vld [vmem:[#allocation2 + $0x5b] sm:$0x1]
        %v3299 = vld [vmem:[#allocation2 + $0x6b] sm:$0x1]
        %v3300 = vld [vmem:[#allocation2 + $0x7b] sm:$0x1]
        %v3301 = vpack.c.bf16 %v3285, %v3285
        %v3302 = vpack.c.bf16 %v3286, %v3286
        %v3303 = vpack.c.bf16 %v3287, %v3287
        %v3304 = vpack.c.bf16 %v3288, %v3288
        %v3305 = vpack.c.bf16 %v3289, %v3289
        %v3306 = vpack.c.bf16 %v3290, %v3290
        %v3307 = vpack.c.bf16 %v3291, %v3291
        %v3308 = vpack.c.bf16 %v3292, %v3292
        %v3317 = vunpack.c.l.b16 %v3301
        %v3318 = vunpack.c.l.b16 %v3302
        %v3319 = vunpack.c.l.b16 %v3303
        %v3320 = vunpack.c.l.b16 %v3304
        %v3321 = vunpack.c.l.b16 %v3305
        %v3322 = vunpack.c.l.b16 %v3306
        %v3323 = vunpack.c.l.b16 %v3307
        %v3324 = vunpack.c.l.b16 %v3308
        %v3325 = vrot.slane %v3318, 7
        %v3326 = vsel %vm829, %v3325, %v3317
        %v3327 = vrot.slane %v3319, 6
        %v3328 = vsel %vm832, %v3327, %v3326
        %v3329 = vrot.slane %v3320, 5
        %v3330 = vsel %vm835, %v3329, %v3328
        %v3331 = vrot.slane %v3321, 4
        %v3332 = vsel %vm838, %v3331, %v3330
        %v3333 = vrot.slane %v3322, 3
        %v3334 = vsel %vm841, %v3333, %v3332
        %v3335 = vrot.slane %v3323, 2
        %v3336 = vsel %vm844, %v3335, %v3334
        %v3337 = vrot.slane %v3324, 1
        %v3338 = vsel %vm847, %v3337, %v3336
        %v3339 = vpack.c.b16 %v3338, %v3338
        %3340 = vrot.lane.b32.xlu0 %v3339, 32
        %v3341 = vpop.permute.xlu0 %3340
        %v3343 = vsel %vm563, %v3341, 0
        %3345 = vmatpush.bf16.msra.mxu0 0
        %3346 = vmatpush.bf16.msra.mxu0 0
        %3347 = vmatpush.bf16.msra.mxu0 0
        %3348 = vmatpush.bf16.msra.mxu0 0
        %3349 = vmatpush.bf16.msra.mxu0 0
        %3350 = vmatpush.bf16.msra.mxu0 0
        %3351 = vmatpush.bf16.msra.mxu0 %v560
        %3352 = vmatpush.bf16.msra.mxu0 %v559
        %3353 = vmatmul.bf16.gmra.mxu0 %v3343
        %v3354 = vpop.f32.mrf.mxu0
        %v3355 = vadd.f32 0.0, %v3354
        %v3356 = vpop.f32.mrf.mxu0
        %3357 = vdwg.mxu0
        %v3359 = vrot.slane %v3355, 1
        %v3360 = vrot.slane %v3355, 2
        %v3361 = vrot.slane %v3355, 3
        %v3362 = vrot.slane %v3355, 4
        %v3363 = vrot.slane %v3355, 5
        %v3364 = vrot.slane %v3355, 6
        %v3365 = vrot.slane %v3355, 7
        %v3374 = vadd.f32 %v3293, %v3355
        %v3375 = vadd.f32 %v3294, %v3359
        %v3376 = vadd.f32 %v3295, %v3360
        %v3377 = vadd.f32 %v3296, %v3361
        %v3378 = vadd.f32 %v3297, %v3362
        %v3379 = vadd.f32 %v3298, %v3363
        %v3380 = vadd.f32 %v3299, %v3364
        %v3381 = vadd.f32 %v3300, %v3365
        %v3382 = vtanh.pop %v3374
        %v3383 = vtanh.pop %v3375
        %v3384 = vtanh.pop %v3376
        %v3385 = vtanh.pop %v3377
        %v3386 = vtanh.pop %v3378
        %v3387 = vtanh.pop %v3379
        %v3388 = vtanh.pop %v3380
        %v3389 = vtanh.pop %v3381
        %v3390 = vmul.f32 %v3382, %v534
        %v3391 = vmul.f32 %v3383, %v534
        %v3392 = vmul.f32 %v3384, %v534
        %v3393 = vmul.f32 %v3385, %v534
        %v3394 = vmul.f32 %v3386, %v534
        %v3395 = vmul.f32 %v3387, %v534
        %v3396 = vmul.f32 %v3388, %v534
        %v3397 = vmul.f32 %v3389, %v534
        %v3398 = vadd.f32 %v3390, %v535
        %v3399 = vadd.f32 %v3391, %v535
        %v3400 = vadd.f32 %v3392, %v535
        %v3401 = vadd.f32 %v3393, %v535
        %v3402 = vadd.f32 %v3394, %v535
        %v3403 = vadd.f32 %v3395, %v535
        %v3404 = vadd.f32 %v3396, %v535
        %v3405 = vadd.f32 %v3397, %v535
        %v3406 = vmul.f32 %v3398, %v3237
        %v3407 = vmul.f32 %v3399, %v3238
        %v3408 = vmul.f32 %v3400, %v3239
        %v3409 = vmul.f32 %v3401, %v3240
        %v3410 = vmul.f32 %v3402, %v3241
        %v3411 = vmul.f32 %v3403, %v3242
        %v3412 = vmul.f32 %v3404, %v3243
        %v3413 = vmul.f32 %v3405, %v3244
        %3422 = vrot.lane.b32.xlu0 %v3398, 64
        %v3423 = vpop.permute.xlu0 %3422
        %3424 = vrot.lane.b32.xlu0 %v3399, 64
        %v3425 = vpop.permute.xlu0 %3424
        %3426 = vrot.lane.b32.xlu0 %v3400, 64
        %v3427 = vpop.permute.xlu0 %3426
        %3428 = vrot.lane.b32.xlu0 %v3401, 64
        %v3429 = vpop.permute.xlu0 %3428
        %3430 = vrot.lane.b32.xlu0 %v3402, 64
        %v3431 = vpop.permute.xlu0 %3430
        %3432 = vrot.lane.b32.xlu0 %v3403, 64
        %v3433 = vpop.permute.xlu0 %3432
        %3434 = vrot.lane.b32.xlu0 %v3404, 64
        %v3435 = vpop.permute.xlu0 %3434
        %3436 = vrot.lane.b32.xlu0 %v3405, 64
        %v3437 = vpop.permute.xlu0 %3436
        %v3446 = vmul.f32 %v3398, %v3423
        %v3447 = vmul.f32 %v3399, %v3425
        %v3448 = vmul.f32 %v3400, %v3427
        %v3449 = vmul.f32 %v3401, %v3429
        %v3450 = vmul.f32 %v3402, %v3431
        %v3451 = vmul.f32 %v3403, %v3433
        %v3452 = vmul.f32 %v3404, %v3435
        %v3453 = vmul.f32 %v3405, %v3437
        %3462 = vrot.lane.b32.xlu0 %v3446, 32
        %v3463 = vpop.permute.xlu0 %3462
        %3464 = vrot.lane.b32.xlu0 %v3447, 32
        %v3465 = vpop.permute.xlu0 %3464
        %3466 = vrot.lane.b32.xlu0 %v3448, 32
        %v3467 = vpop.permute.xlu0 %3466
        %3468 = vrot.lane.b32.xlu0 %v3449, 32
        %v3469 = vpop.permute.xlu0 %3468
        %3470 = vrot.lane.b32.xlu0 %v3450, 32
        %v3471 = vpop.permute.xlu0 %3470
        %3472 = vrot.lane.b32.xlu0 %v3451, 32
        %v3473 = vpop.permute.xlu0 %3472
        %3474 = vrot.lane.b32.xlu0 %v3452, 32
        %v3475 = vpop.permute.xlu0 %3474
        %3476 = vrot.lane.b32.xlu0 %v3453, 32
        %v3477 = vpop.permute.xlu0 %3476
        %v3486 = vadd.f32 %v3406, %v3463
        %v3487 = vadd.f32 %v3407, %v3465
        %v3488 = vadd.f32 %v3408, %v3467
        %v3489 = vadd.f32 %v3409, %v3469
        %v3490 = vadd.f32 %v3410, %v3471
        %v3491 = vadd.f32 %v3411, %v3473
        %v3492 = vadd.f32 %v3412, %v3475
        %v3493 = vadd.f32 %v3413, %v3477
        %v3494 = vtanh.pop %v3486
        %v3495 = vtanh.pop %v3487
        %v3496 = vtanh.pop %v3488
        %v3497 = vtanh.pop %v3489
        %v3498 = vtanh.pop %v3490
        %v3499 = vtanh.pop %v3491
        %v3500 = vtanh.pop %v3492
        %v3501 = vtanh.pop %v3493
        %3510 = vrot.lane.b32.xlu0 %v3494, 64
        %v3511 = vpop.permute.xlu0 %3510
        %3512 = vrot.lane.b32.xlu0 %v3495, 64
        %v3513 = vpop.permute.xlu0 %3512
        %3514 = vrot.lane.b32.xlu0 %v3496, 64
        %v3515 = vpop.permute.xlu0 %3514
        %3516 = vrot.lane.b32.xlu0 %v3497, 64
        %v3517 = vpop.permute.xlu0 %3516
        %3518 = vrot.lane.b32.xlu0 %v3498, 64
        %v3519 = vpop.permute.xlu0 %3518
        %3520 = vrot.lane.b32.xlu0 %v3499, 64
        %v3521 = vpop.permute.xlu0 %3520
        %3522 = vrot.lane.b32.xlu0 %v3500, 64
        %v3523 = vpop.permute.xlu0 %3522
        %3524 = vrot.lane.b32.xlu0 %v3501, 64
        %v3525 = vpop.permute.xlu0 %3524
        %v3534 = vmul.f32 %v3398, %v3511
        %v3535 = vmul.f32 %v3399, %v3513
        %v3536 = vmul.f32 %v3400, %v3515
        %v3537 = vmul.f32 %v3401, %v3517
        %v3538 = vmul.f32 %v3402, %v3519
        %v3539 = vmul.f32 %v3403, %v3521
        %v3540 = vmul.f32 %v3404, %v3523
        %v3541 = vmul.f32 %v3405, %v3525
        %v3542 = vld [vmem:[#allocation2 + $0xc] sm:$0x1]
        %v3543 = vld [vmem:[#allocation2 + $0x1c] sm:$0x1]
        %v3544 = vld [vmem:[#allocation2 + $0x2c] sm:$0x1]
        %v3545 = vld [vmem:[#allocation2 + $0x3c] sm:$0x1]
        %v3546 = vld [vmem:[#allocation2 + $0x4c] sm:$0x1]
        %v3547 = vld [vmem:[#allocation2 + $0x5c] sm:$0x1]
        %v3548 = vld [vmem:[#allocation2 + $0x6c] sm:$0x1]
        %v3549 = vld [vmem:[#allocation2 + $0x7c] sm:$0x1]
        %v3550 = vpack.c.bf16 %v3534, %v3534
        %v3551 = vpack.c.bf16 %v3535, %v3535
        %v3552 = vpack.c.bf16 %v3536, %v3536
        %v3553 = vpack.c.bf16 %v3537, %v3537
        %v3554 = vpack.c.bf16 %v3538, %v3538
        %v3555 = vpack.c.bf16 %v3539, %v3539
        %v3556 = vpack.c.bf16 %v3540, %v3540
        %v3557 = vpack.c.bf16 %v3541, %v3541
        %v3566 = vunpack.c.l.b16 %v3550
        %v3567 = vunpack.c.l.b16 %v3551
        %v3568 = vunpack.c.l.b16 %v3552
        %v3569 = vunpack.c.l.b16 %v3553
        %v3570 = vunpack.c.l.b16 %v3554
        %v3571 = vunpack.c.l.b16 %v3555
        %v3572 = vunpack.c.l.b16 %v3556
        %v3573 = vunpack.c.l.b16 %v3557
        %v3574 = vrot.slane %v3567, 7
        %v3575 = vsel %vm829, %v3574, %v3566
        %v3576 = vrot.slane %v3568, 6
        %v3577 = vsel %vm832, %v3576, %v3575
        %v3578 = vrot.slane %v3569, 5
        %v3579 = vsel %vm835, %v3578, %v3577
        %v3580 = vrot.slane %v3570, 4
        %v3581 = vsel %vm838, %v3580, %v3579
        %v3582 = vrot.slane %v3571, 3
        %v3583 = vsel %vm841, %v3582, %v3581
        %v3584 = vrot.slane %v3572, 2
        %v3585 = vsel %vm844, %v3584, %v3583
        %v3586 = vrot.slane %v3573, 1
        %v3587 = vsel %vm847, %v3586, %v3585
        %v3588 = vpack.c.b16 %v3587, %v3587
        %3589 = vrot.lane.b32.xlu0 %v3588, 32
        %v3590 = vpop.permute.xlu0 %3589
        %v3592 = vsel %vm563, %v3590, 0
        %3594 = vmatpush.bf16.msra.mxu0 0
        %3595 = vmatpush.bf16.msra.mxu0 0
        %3596 = vmatpush.bf16.msra.mxu0 0
        %3597 = vmatpush.bf16.msra.mxu0 0
        %3598 = vmatpush.bf16.msra.mxu0 0
        %3599 = vmatpush.bf16.msra.mxu0 0
        %3600 = vmatpush.bf16.msra.mxu0 %v560
        %3601 = vmatpush.bf16.msra.mxu0 %v559
        %3602 = vmatmul.bf16.gmra.mxu0 %v3592
        %v3603 = vpop.f32.mrf.mxu0
        %v3604 = vadd.f32 0.0, %v3603
        %v3605 = vpop.f32.mrf.mxu0
        %3606 = vdwg.mxu0
        %v3608 = vrot.slane %v3604, 1
        %v3609 = vrot.slane %v3604, 2
        %v3610 = vrot.slane %v3604, 3
        %v3611 = vrot.slane %v3604, 4
        %v3612 = vrot.slane %v3604, 5
        %v3613 = vrot.slane %v3604, 6
        %v3614 = vrot.slane %v3604, 7
        %v3623 = vadd.f32 %v3542, %v3604
        %v3624 = vadd.f32 %v3543, %v3608
        %v3625 = vadd.f32 %v3544, %v3609
        %v3626 = vadd.f32 %v3545, %v3610
        %v3627 = vadd.f32 %v3546, %v3611
        %v3628 = vadd.f32 %v3547, %v3612
        %v3629 = vadd.f32 %v3548, %v3613
        %v3630 = vadd.f32 %v3549, %v3614
        %v3631 = vtanh.pop %v3623
        %v3632 = vtanh.pop %v3624
        %v3633 = vtanh.pop %v3625
        %v3634 = vtanh.pop %v3626
        %v3635 = vtanh.pop %v3627
        %v3636 = vtanh.pop %v3628
        %v3637 = vtanh.pop %v3629
        %v3638 = vtanh.pop %v3630
        %v3639 = vmul.f32 %v3631, %v534
        %v3640 = vmul.f32 %v3632, %v534
        %v3641 = vmul.f32 %v3633, %v534
        %v3642 = vmul.f32 %v3634, %v534
        %v3643 = vmul.f32 %v3635, %v534
        %v3644 = vmul.f32 %v3636, %v534
        %v3645 = vmul.f32 %v3637, %v534
        %v3646 = vmul.f32 %v3638, %v534
        %v3647 = vadd.f32 %v3639, %v535
        %v3648 = vadd.f32 %v3640, %v535
        %v3649 = vadd.f32 %v3641, %v535
        %v3650 = vadd.f32 %v3642, %v535
        %v3651 = vadd.f32 %v3643, %v535
        %v3652 = vadd.f32 %v3644, %v535
        %v3653 = vadd.f32 %v3645, %v535
        %v3654 = vadd.f32 %v3646, %v535
        %v3655 = vmul.f32 %v3647, %v3486
        %v3656 = vmul.f32 %v3648, %v3487
        %v3657 = vmul.f32 %v3649, %v3488
        %v3658 = vmul.f32 %v3650, %v3489
        %v3659 = vmul.f32 %v3651, %v3490
        %v3660 = vmul.f32 %v3652, %v3491
        %v3661 = vmul.f32 %v3653, %v3492
        %v3662 = vmul.f32 %v3654, %v3493
        %3671 = vrot.lane.b32.xlu0 %v3647, 64
        %v3672 = vpop.permute.xlu0 %3671
        %3673 = vrot.lane.b32.xlu0 %v3648, 64
        %v3674 = vpop.permute.xlu0 %3673
        %3675 = vrot.lane.b32.xlu0 %v3649, 64
        %v3676 = vpop.permute.xlu0 %3675
        %3677 = vrot.lane.b32.xlu0 %v3650, 64
        %v3678 = vpop.permute.xlu0 %3677
        %3679 = vrot.lane.b32.xlu0 %v3651, 64
        %v3680 = vpop.permute.xlu0 %3679
        %3681 = vrot.lane.b32.xlu0 %v3652, 64
        %v3682 = vpop.permute.xlu0 %3681
        %3683 = vrot.lane.b32.xlu0 %v3653, 64
        %v3684 = vpop.permute.xlu0 %3683
        %3685 = vrot.lane.b32.xlu0 %v3654, 64
        %v3686 = vpop.permute.xlu0 %3685
        %v3695 = vmul.f32 %v3647, %v3672
        %v3696 = vmul.f32 %v3648, %v3674
        %v3697 = vmul.f32 %v3649, %v3676
        %v3698 = vmul.f32 %v3650, %v3678
        %v3699 = vmul.f32 %v3651, %v3680
        %v3700 = vmul.f32 %v3652, %v3682
        %v3701 = vmul.f32 %v3653, %v3684
        %v3702 = vmul.f32 %v3654, %v3686
        %3711 = vrot.lane.b32.xlu0 %v3695, 32
        %v3712 = vpop.permute.xlu0 %3711
        %3713 = vrot.lane.b32.xlu0 %v3696, 32
        %v3714 = vpop.permute.xlu0 %3713
        %3715 = vrot.lane.b32.xlu0 %v3697, 32
        %v3716 = vpop.permute.xlu0 %3715
        %3717 = vrot.lane.b32.xlu0 %v3698, 32
        %v3718 = vpop.permute.xlu0 %3717
        %3719 = vrot.lane.b32.xlu0 %v3699, 32
        %v3720 = vpop.permute.xlu0 %3719
        %3721 = vrot.lane.b32.xlu0 %v3700, 32
        %v3722 = vpop.permute.xlu0 %3721
        %3723 = vrot.lane.b32.xlu0 %v3701, 32
        %v3724 = vpop.permute.xlu0 %3723
        %3725 = vrot.lane.b32.xlu0 %v3702, 32
        %v3726 = vpop.permute.xlu0 %3725
        %v3735 = vadd.f32 %v3655, %v3712
        %v3736 = vadd.f32 %v3656, %v3714
        %v3737 = vadd.f32 %v3657, %v3716
        %v3738 = vadd.f32 %v3658, %v3718
        %v3739 = vadd.f32 %v3659, %v3720
        %v3740 = vadd.f32 %v3660, %v3722
        %v3741 = vadd.f32 %v3661, %v3724
        %v3742 = vadd.f32 %v3662, %v3726
        %v3743 = vtanh.pop %v3735
        %v3744 = vtanh.pop %v3736
        %v3745 = vtanh.pop %v3737
        %v3746 = vtanh.pop %v3738
        %v3747 = vtanh.pop %v3739
        %v3748 = vtanh.pop %v3740
        %v3749 = vtanh.pop %v3741
        %v3750 = vtanh.pop %v3742
        %3759 = vrot.lane.b32.xlu0 %v3743, 64
        %v3760 = vpop.permute.xlu0 %3759
        %3761 = vrot.lane.b32.xlu0 %v3744, 64
        %v3762 = vpop.permute.xlu0 %3761
        %3763 = vrot.lane.b32.xlu0 %v3745, 64
        %v3764 = vpop.permute.xlu0 %3763
        %3765 = vrot.lane.b32.xlu0 %v3746, 64
        %v3766 = vpop.permute.xlu0 %3765
        %3767 = vrot.lane.b32.xlu0 %v3747, 64
        %v3768 = vpop.permute.xlu0 %3767
        %3769 = vrot.lane.b32.xlu0 %v3748, 64
        %v3770 = vpop.permute.xlu0 %3769
        %3771 = vrot.lane.b32.xlu0 %v3749, 64
        %v3772 = vpop.permute.xlu0 %3771
        %3773 = vrot.lane.b32.xlu0 %v3750, 64
        %v3774 = vpop.permute.xlu0 %3773
        %v3783 = vmul.f32 %v3647, %v3760
        %v3784 = vmul.f32 %v3648, %v3762
        %v3785 = vmul.f32 %v3649, %v3764
        %v3786 = vmul.f32 %v3650, %v3766
        %v3787 = vmul.f32 %v3651, %v3768
        %v3788 = vmul.f32 %v3652, %v3770
        %v3789 = vmul.f32 %v3653, %v3772
        %v3790 = vmul.f32 %v3654, %v3774
        %v3791 = vld [vmem:[#allocation2 + $0xd] sm:$0x1]
        %v3792 = vld [vmem:[#allocation2 + $0x1d] sm:$0x1]
        %v3793 = vld [vmem:[#allocation2 + $0x2d] sm:$0x1]
        %v3794 = vld [vmem:[#allocation2 + $0x3d] sm:$0x1]
        %v3795 = vld [vmem:[#allocation2 + $0x4d] sm:$0x1]
        %v3796 = vld [vmem:[#allocation2 + $0x5d] sm:$0x1]
        %v3797 = vld [vmem:[#allocation2 + $0x6d] sm:$0x1]
        %v3798 = vld [vmem:[#allocation2 + $0x7d] sm:$0x1]
        %v3799 = vpack.c.bf16 %v3783, %v3783
        %v3800 = vpack.c.bf16 %v3784, %v3784
        %v3801 = vpack.c.bf16 %v3785, %v3785
        %v3802 = vpack.c.bf16 %v3786, %v3786
        %v3803 = vpack.c.bf16 %v3787, %v3787
        %v3804 = vpack.c.bf16 %v3788, %v3788
        %v3805 = vpack.c.bf16 %v3789, %v3789
        %v3806 = vpack.c.bf16 %v3790, %v3790
        %v3815 = vunpack.c.l.b16 %v3799
        %v3816 = vunpack.c.l.b16 %v3800
        %v3817 = vunpack.c.l.b16 %v3801
        %v3818 = vunpack.c.l.b16 %v3802
        %v3819 = vunpack.c.l.b16 %v3803
        %v3820 = vunpack.c.l.b16 %v3804
        %v3821 = vunpack.c.l.b16 %v3805
        %v3822 = vunpack.c.l.b16 %v3806
        %v3823 = vrot.slane %v3816, 7
        %v3824 = vsel %vm829, %v3823, %v3815
        %v3825 = vrot.slane %v3817, 6
        %v3826 = vsel %vm832, %v3825, %v3824
        %v3827 = vrot.slane %v3818, 5
        %v3828 = vsel %vm835, %v3827, %v3826
        %v3829 = vrot.slane %v3819, 4
        %v3830 = vsel %vm838, %v3829, %v3828
        %v3831 = vrot.slane %v3820, 3
        %v3832 = vsel %vm841, %v3831, %v3830
        %v3833 = vrot.slane %v3821, 2
        %v3834 = vsel %vm844, %v3833, %v3832
        %v3835 = vrot.slane %v3822, 1
        %v3836 = vsel %vm847, %v3835, %v3834
        %v3837 = vpack.c.b16 %v3836, %v3836
        %3838 = vrot.lane.b32.xlu0 %v3837, 32
        %v3839 = vpop.permute.xlu0 %3838
        %v3841 = vsel %vm563, %v3839, 0
        %3843 = vmatpush.bf16.msra.mxu0 0
        %3844 = vmatpush.bf16.msra.mxu0 0
        %3845 = vmatpush.bf16.msra.mxu0 0
        %3846 = vmatpush.bf16.msra.mxu0 0
        %3847 = vmatpush.bf16.msra.mxu0 0
        %3848 = vmatpush.bf16.msra.mxu0 0
        %3849 = vmatpush.bf16.msra.mxu0 %v560
        %3850 = vmatpush.bf16.msra.mxu0 %v559
        %3851 = vmatmul.bf16.gmra.mxu0 %v3841
        %v3852 = vpop.f32.mrf.mxu0
        %v3853 = vadd.f32 0.0, %v3852
        %v3854 = vpop.f32.mrf.mxu0
        %3855 = vdwg.mxu0
        %v3857 = vrot.slane %v3853, 1
        %v3858 = vrot.slane %v3853, 2
        %v3859 = vrot.slane %v3853, 3
        %v3860 = vrot.slane %v3853, 4
        %v3861 = vrot.slane %v3853, 5
        %v3862 = vrot.slane %v3853, 6
        %v3863 = vrot.slane %v3853, 7
        %v3872 = vadd.f32 %v3791, %v3853
        %v3873 = vadd.f32 %v3792, %v3857
        %v3874 = vadd.f32 %v3793, %v3858
        %v3875 = vadd.f32 %v3794, %v3859
        %v3876 = vadd.f32 %v3795, %v3860
        %v3877 = vadd.f32 %v3796, %v3861
        %v3878 = vadd.f32 %v3797, %v3862
        %v3879 = vadd.f32 %v3798, %v3863
        %v3880 = vtanh.pop %v3872
        %v3881 = vtanh.pop %v3873
        %v3882 = vtanh.pop %v3874
        %v3883 = vtanh.pop %v3875
        %v3884 = vtanh.pop %v3876
        %v3885 = vtanh.pop %v3877
        %v3886 = vtanh.pop %v3878
        %v3887 = vtanh.pop %v3879
        %v3888 = vmul.f32 %v3880, %v534
        %v3889 = vmul.f32 %v3881, %v534
        %v3890 = vmul.f32 %v3882, %v534
        %v3891 = vmul.f32 %v3883, %v534
        %v3892 = vmul.f32 %v3884, %v534
        %v3893 = vmul.f32 %v3885, %v534
        %v3894 = vmul.f32 %v3886, %v534
        %v3895 = vmul.f32 %v3887, %v534
        %v3896 = vadd.f32 %v3888, %v535
        %v3897 = vadd.f32 %v3889, %v535
        %v3898 = vadd.f32 %v3890, %v535
        %v3899 = vadd.f32 %v3891, %v535
        %v3900 = vadd.f32 %v3892, %v535
        %v3901 = vadd.f32 %v3893, %v535
        %v3902 = vadd.f32 %v3894, %v535
        %v3903 = vadd.f32 %v3895, %v535
        %v3904 = vmul.f32 %v3896, %v3735
        %v3905 = vmul.f32 %v3897, %v3736
        %v3906 = vmul.f32 %v3898, %v3737
        %v3907 = vmul.f32 %v3899, %v3738
        %v3908 = vmul.f32 %v3900, %v3739
        %v3909 = vmul.f32 %v3901, %v3740
        %v3910 = vmul.f32 %v3902, %v3741
        %v3911 = vmul.f32 %v3903, %v3742
        %3920 = vrot.lane.b32.xlu0 %v3896, 64
        %v3921 = vpop.permute.xlu0 %3920
        %3922 = vrot.lane.b32.xlu0 %v3897, 64
        %v3923 = vpop.permute.xlu0 %3922
        %3924 = vrot.lane.b32.xlu0 %v3898, 64
        %v3925 = vpop.permute.xlu0 %3924
        %3926 = vrot.lane.b32.xlu0 %v3899, 64
        %v3927 = vpop.permute.xlu0 %3926
        %3928 = vrot.lane.b32.xlu0 %v3900, 64
        %v3929 = vpop.permute.xlu0 %3928
        %3930 = vrot.lane.b32.xlu0 %v3901, 64
        %v3931 = vpop.permute.xlu0 %3930
        %3932 = vrot.lane.b32.xlu0 %v3902, 64
        %v3933 = vpop.permute.xlu0 %3932
        %3934 = vrot.lane.b32.xlu0 %v3903, 64
        %v3935 = vpop.permute.xlu0 %3934
        %v3944 = vmul.f32 %v3896, %v3921
        %v3945 = vmul.f32 %v3897, %v3923
        %v3946 = vmul.f32 %v3898, %v3925
        %v3947 = vmul.f32 %v3899, %v3927
        %v3948 = vmul.f32 %v3900, %v3929
        %v3949 = vmul.f32 %v3901, %v3931
        %v3950 = vmul.f32 %v3902, %v3933
        %v3951 = vmul.f32 %v3903, %v3935
        %3960 = vrot.lane.b32.xlu0 %v3944, 32
        %v3961 = vpop.permute.xlu0 %3960
        %3962 = vrot.lane.b32.xlu0 %v3945, 32
        %v3963 = vpop.permute.xlu0 %3962
        %3964 = vrot.lane.b32.xlu0 %v3946, 32
        %v3965 = vpop.permute.xlu0 %3964
        %3966 = vrot.lane.b32.xlu0 %v3947, 32
        %v3967 = vpop.permute.xlu0 %3966
        %3968 = vrot.lane.b32.xlu0 %v3948, 32
        %v3969 = vpop.permute.xlu0 %3968
        %3970 = vrot.lane.b32.xlu0 %v3949, 32
        %v3971 = vpop.permute.xlu0 %3970
        %3972 = vrot.lane.b32.xlu0 %v3950, 32
        %v3973 = vpop.permute.xlu0 %3972
        %3974 = vrot.lane.b32.xlu0 %v3951, 32
        %v3975 = vpop.permute.xlu0 %3974
        %v3984 = vadd.f32 %v3904, %v3961
        %v3985 = vadd.f32 %v3905, %v3963
        %v3986 = vadd.f32 %v3906, %v3965
        %v3987 = vadd.f32 %v3907, %v3967
        %v3988 = vadd.f32 %v3908, %v3969
        %v3989 = vadd.f32 %v3909, %v3971
        %v3990 = vadd.f32 %v3910, %v3973
        %v3991 = vadd.f32 %v3911, %v3975
        %v3992 = vtanh.pop %v3984
        %v3993 = vtanh.pop %v3985
        %v3994 = vtanh.pop %v3986
        %v3995 = vtanh.pop %v3987
        %v3996 = vtanh.pop %v3988
        %v3997 = vtanh.pop %v3989
        %v3998 = vtanh.pop %v3990
        %v3999 = vtanh.pop %v3991
        %4008 = vrot.lane.b32.xlu0 %v3992, 64
        %v4009 = vpop.permute.xlu0 %4008
        %4010 = vrot.lane.b32.xlu0 %v3993, 64
        %v4011 = vpop.permute.xlu0 %4010
        %4012 = vrot.lane.b32.xlu0 %v3994, 64
        %v4013 = vpop.permute.xlu0 %4012
        %4014 = vrot.lane.b32.xlu0 %v3995, 64
        %v4015 = vpop.permute.xlu0 %4014
        %4016 = vrot.lane.b32.xlu0 %v3996, 64
        %v4017 = vpop.permute.xlu0 %4016
        %4018 = vrot.lane.b32.xlu0 %v3997, 64
        %v4019 = vpop.permute.xlu0 %4018
        %4020 = vrot.lane.b32.xlu0 %v3998, 64
        %v4021 = vpop.permute.xlu0 %4020
        %4022 = vrot.lane.b32.xlu0 %v3999, 64
        %v4023 = vpop.permute.xlu0 %4022
        %v4032 = vmul.f32 %v3896, %v4009
        %v4033 = vmul.f32 %v3897, %v4011
        %v4034 = vmul.f32 %v3898, %v4013
        %v4035 = vmul.f32 %v3899, %v4015
        %v4036 = vmul.f32 %v3900, %v4017
        %v4037 = vmul.f32 %v3901, %v4019
        %v4038 = vmul.f32 %v3902, %v4021
        %v4039 = vmul.f32 %v3903, %v4023
        %v4040 = vld [vmem:[#allocation2 + $0xe] sm:$0x1]
        %v4041 = vld [vmem:[#allocation2 + $0x1e] sm:$0x1]
        %v4042 = vld [vmem:[#allocation2 + $0x2e] sm:$0x1]
        %v4043 = vld [vmem:[#allocation2 + $0x3e] sm:$0x1]
        %v4044 = vld [vmem:[#allocation2 + $0x4e] sm:$0x1]
        %v4045 = vld [vmem:[#allocation2 + $0x5e] sm:$0x1]
        %v4046 = vld [vmem:[#allocation2 + $0x6e] sm:$0x1]
        %v4047 = vld [vmem:[#allocation2 + $0x7e] sm:$0x1]
        %v4048 = vpack.c.bf16 %v4032, %v4032
        %v4049 = vpack.c.bf16 %v4033, %v4033
        %v4050 = vpack.c.bf16 %v4034, %v4034
        %v4051 = vpack.c.bf16 %v4035, %v4035
        %v4052 = vpack.c.bf16 %v4036, %v4036
        %v4053 = vpack.c.bf16 %v4037, %v4037
        %v4054 = vpack.c.bf16 %v4038, %v4038
        %v4055 = vpack.c.bf16 %v4039, %v4039
        %v4064 = vunpack.c.l.b16 %v4048
        %v4065 = vunpack.c.l.b16 %v4049
        %v4066 = vunpack.c.l.b16 %v4050
        %v4067 = vunpack.c.l.b16 %v4051
        %v4068 = vunpack.c.l.b16 %v4052
        %v4069 = vunpack.c.l.b16 %v4053
        %v4070 = vunpack.c.l.b16 %v4054
        %v4071 = vunpack.c.l.b16 %v4055
        %v4072 = vrot.slane %v4065, 7
        %v4073 = vsel %vm829, %v4072, %v4064
        %v4074 = vrot.slane %v4066, 6
        %v4075 = vsel %vm832, %v4074, %v4073
        %v4076 = vrot.slane %v4067, 5
        %v4077 = vsel %vm835, %v4076, %v4075
        %v4078 = vrot.slane %v4068, 4
        %v4079 = vsel %vm838, %v4078, %v4077
        %v4080 = vrot.slane %v4069, 3
        %v4081 = vsel %vm841, %v4080, %v4079
        %v4082 = vrot.slane %v4070, 2
        %v4083 = vsel %vm844, %v4082, %v4081
        %v4084 = vrot.slane %v4071, 1
        %v4085 = vsel %vm847, %v4084, %v4083
        %v4086 = vpack.c.b16 %v4085, %v4085
        %4087 = vrot.lane.b32.xlu0 %v4086, 32
        %v4088 = vpop.permute.xlu0 %4087
        %v4090 = vsel %vm563, %v4088, 0
        %4092 = vmatpush.bf16.msra.mxu0 0
        %4093 = vmatpush.bf16.msra.mxu0 0
        %4094 = vmatpush.bf16.msra.mxu0 0
        %4095 = vmatpush.bf16.msra.mxu0 0
        %4096 = vmatpush.bf16.msra.mxu0 0
        %4097 = vmatpush.bf16.msra.mxu0 0
        %4098 = vmatpush.bf16.msra.mxu0 %v560
        %4099 = vmatpush.bf16.msra.mxu0 %v559
        %4100 = vmatmul.bf16.gmra.mxu0 %v4090
        %v4101 = vpop.f32.mrf.mxu0
        %v4102 = vadd.f32 0.0, %v4101
        %v4103 = vpop.f32.mrf.mxu0
        %4104 = vdwg.mxu0
        %v4106 = vrot.slane %v4102, 1
        %v4107 = vrot.slane %v4102, 2
        %v4108 = vrot.slane %v4102, 3
        %v4109 = vrot.slane %v4102, 4
        %v4110 = vrot.slane %v4102, 5
        %v4111 = vrot.slane %v4102, 6
        %v4112 = vrot.slane %v4102, 7
        %v4121 = vadd.f32 %v4040, %v4102
        %v4122 = vadd.f32 %v4041, %v4106
        %v4123 = vadd.f32 %v4042, %v4107
        %v4124 = vadd.f32 %v4043, %v4108
        %v4125 = vadd.f32 %v4044, %v4109
        %v4126 = vadd.f32 %v4045, %v4110
        %v4127 = vadd.f32 %v4046, %v4111
        %v4128 = vadd.f32 %v4047, %v4112
        %v4129 = vtanh.pop %v4121
        %v4130 = vtanh.pop %v4122
        %v4131 = vtanh.pop %v4123
        %v4132 = vtanh.pop %v4124
        %v4133 = vtanh.pop %v4125
        %v4134 = vtanh.pop %v4126
        %v4135 = vtanh.pop %v4127
        %v4136 = vtanh.pop %v4128
        %v4137 = vmul.f32 %v4129, %v534
        %v4138 = vmul.f32 %v4130, %v534
        %v4139 = vmul.f32 %v4131, %v534
        %v4140 = vmul.f32 %v4132, %v534
        %v4141 = vmul.f32 %v4133, %v534
        %v4142 = vmul.f32 %v4134, %v534
        %v4143 = vmul.f32 %v4135, %v534
        %v4144 = vmul.f32 %v4136, %v534
        %v4145 = vadd.f32 %v4137, %v535
        %v4146 = vadd.f32 %v4138, %v535
        %v4147 = vadd.f32 %v4139, %v535
        %v4148 = vadd.f32 %v4140, %v535
        %v4149 = vadd.f32 %v4141, %v535
        %v4150 = vadd.f32 %v4142, %v535
        %v4151 = vadd.f32 %v4143, %v535
        %v4152 = vadd.f32 %v4144, %v535
        %v4153 = vmul.f32 %v4145, %v3984
        %v4154 = vmul.f32 %v4146, %v3985
        %v4155 = vmul.f32 %v4147, %v3986
        %v4156 = vmul.f32 %v4148, %v3987
        %v4157 = vmul.f32 %v4149, %v3988
        %v4158 = vmul.f32 %v4150, %v3989
        %v4159 = vmul.f32 %v4151, %v3990
        %v4160 = vmul.f32 %v4152, %v3991
        %4169 = vrot.lane.b32.xlu0 %v4145, 64
        %v4170 = vpop.permute.xlu0 %4169
        %4171 = vrot.lane.b32.xlu0 %v4146, 64
        %v4172 = vpop.permute.xlu0 %4171
        %4173 = vrot.lane.b32.xlu0 %v4147, 64
        %v4174 = vpop.permute.xlu0 %4173
        %4175 = vrot.lane.b32.xlu0 %v4148, 64
        %v4176 = vpop.permute.xlu0 %4175
        %4177 = vrot.lane.b32.xlu0 %v4149, 64
        %v4178 = vpop.permute.xlu0 %4177
        %4179 = vrot.lane.b32.xlu0 %v4150, 64
        %v4180 = vpop.permute.xlu0 %4179
        %4181 = vrot.lane.b32.xlu0 %v4151, 64
        %v4182 = vpop.permute.xlu0 %4181
        %4183 = vrot.lane.b32.xlu0 %v4152, 64
        %v4184 = vpop.permute.xlu0 %4183
        %v4193 = vmul.f32 %v4145, %v4170
        %v4194 = vmul.f32 %v4146, %v4172
        %v4195 = vmul.f32 %v4147, %v4174
        %v4196 = vmul.f32 %v4148, %v4176
        %v4197 = vmul.f32 %v4149, %v4178
        %v4198 = vmul.f32 %v4150, %v4180
        %v4199 = vmul.f32 %v4151, %v4182
        %v4200 = vmul.f32 %v4152, %v4184
        %4209 = vrot.lane.b32.xlu0 %v4193, 32
        %v4210 = vpop.permute.xlu0 %4209
        %4211 = vrot.lane.b32.xlu0 %v4194, 32
        %v4212 = vpop.permute.xlu0 %4211
        %4213 = vrot.lane.b32.xlu0 %v4195, 32
        %v4214 = vpop.permute.xlu0 %4213
        %4215 = vrot.lane.b32.xlu0 %v4196, 32
        %v4216 = vpop.permute.xlu0 %4215
        %4217 = vrot.lane.b32.xlu0 %v4197, 32
        %v4218 = vpop.permute.xlu0 %4217
        %4219 = vrot.lane.b32.xlu0 %v4198, 32
        %v4220 = vpop.permute.xlu0 %4219
        %4221 = vrot.lane.b32.xlu0 %v4199, 32
        %v4222 = vpop.permute.xlu0 %4221
        %4223 = vrot.lane.b32.xlu0 %v4200, 32
        %v4224 = vpop.permute.xlu0 %4223
        %v4233 = vadd.f32 %v4153, %v4210
        %v4234 = vadd.f32 %v4154, %v4212
        %v4235 = vadd.f32 %v4155, %v4214
        %v4236 = vadd.f32 %v4156, %v4216
        %v4237 = vadd.f32 %v4157, %v4218
        %v4238 = vadd.f32 %v4158, %v4220
        %v4239 = vadd.f32 %v4159, %v4222
        %v4240 = vadd.f32 %v4160, %v4224
        %v4241 = vtanh.pop %v4233
        %v4242 = vtanh.pop %v4234
        %v4243 = vtanh.pop %v4235
        %v4244 = vtanh.pop %v4236
        %v4245 = vtanh.pop %v4237
        %v4246 = vtanh.pop %v4238
        %v4247 = vtanh.pop %v4239
        %v4248 = vtanh.pop %v4240
        %4257 = vrot.lane.b32.xlu0 %v4241, 64
        %v4258 = vpop.permute.xlu0 %4257
        %4259 = vrot.lane.b32.xlu0 %v4242, 64
        %v4260 = vpop.permute.xlu0 %4259
        %4261 = vrot.lane.b32.xlu0 %v4243, 64
        %v4262 = vpop.permute.xlu0 %4261
        %4263 = vrot.lane.b32.xlu0 %v4244, 64
        %v4264 = vpop.permute.xlu0 %4263
        %4265 = vrot.lane.b32.xlu0 %v4245, 64
        %v4266 = vpop.permute.xlu0 %4265
        %4267 = vrot.lane.b32.xlu0 %v4246, 64
        %v4268 = vpop.permute.xlu0 %4267
        %4269 = vrot.lane.b32.xlu0 %v4247, 64
        %v4270 = vpop.permute.xlu0 %4269
        %4271 = vrot.lane.b32.xlu0 %v4248, 64
        %v4272 = vpop.permute.xlu0 %4271
        %v4281 = vmul.f32 %v4145, %v4258
        %v4282 = vmul.f32 %v4146, %v4260
        %v4283 = vmul.f32 %v4147, %v4262
        %v4284 = vmul.f32 %v4148, %v4264
        %v4285 = vmul.f32 %v4149, %v4266
        %v4286 = vmul.f32 %v4150, %v4268
        %v4287 = vmul.f32 %v4151, %v4270
        %v4288 = vmul.f32 %v4152, %v4272
        %v4289 = vld [vmem:[#allocation2 + $0xf] sm:$0x1]
        %v4290 = vld [vmem:[#allocation2 + $0x1f] sm:$0x1]
        %v4291 = vld [vmem:[#allocation2 + $0x2f] sm:$0x1]
        %v4292 = vld [vmem:[#allocation2 + $0x3f] sm:$0x1]
        %v4293 = vld [vmem:[#allocation2 + $0x4f] sm:$0x1]
        %v4294 = vld [vmem:[#allocation2 + $0x5f] sm:$0x1]
        %v4295 = vld [vmem:[#allocation2 + $0x6f] sm:$0x1]
        %v4296 = vld [vmem:[#allocation2 + $0x7f] sm:$0x1]
        %v4297 = vpack.c.bf16 %v4281, %v4281
        %v4298 = vpack.c.bf16 %v4282, %v4282
        %v4299 = vpack.c.bf16 %v4283, %v4283
        %v4300 = vpack.c.bf16 %v4284, %v4284
        %v4301 = vpack.c.bf16 %v4285, %v4285
        %v4302 = vpack.c.bf16 %v4286, %v4286
        %v4303 = vpack.c.bf16 %v4287, %v4287
        %v4304 = vpack.c.bf16 %v4288, %v4288
        %v4313 = vunpack.c.l.b16 %v4297
        %v4314 = vunpack.c.l.b16 %v4298
        %v4315 = vunpack.c.l.b16 %v4299
        %v4316 = vunpack.c.l.b16 %v4300
        %v4317 = vunpack.c.l.b16 %v4301
        %v4318 = vunpack.c.l.b16 %v4302
        %v4319 = vunpack.c.l.b16 %v4303
        %v4320 = vunpack.c.l.b16 %v4304
        %v4321 = vrot.slane %v4314, 7
        %v4322 = vsel %vm829, %v4321, %v4313
        %v4323 = vrot.slane %v4315, 6
        %v4324 = vsel %vm832, %v4323, %v4322
        %v4325 = vrot.slane %v4316, 5
        %v4326 = vsel %vm835, %v4325, %v4324
        %v4327 = vrot.slane %v4317, 4
        %v4328 = vsel %vm838, %v4327, %v4326
        %v4329 = vrot.slane %v4318, 3
        %v4330 = vsel %vm841, %v4329, %v4328
        %v4331 = vrot.slane %v4319, 2
        %v4332 = vsel %vm844, %v4331, %v4330
        %v4333 = vrot.slane %v4320, 1
        %v4334 = vsel %vm847, %v4333, %v4332
        %v4335 = vpack.c.b16 %v4334, %v4334
        %4336 = vrot.lane.b32.xlu0 %v4335, 32
        %v4337 = vpop.permute.xlu0 %4336
        %v4339 = vsel %vm563, %v4337, 0
        %4341 = vmatpush.bf16.msra.mxu0 0
        %4342 = vmatpush.bf16.msra.mxu0 0
        %4343 = vmatpush.bf16.msra.mxu0 0
        %4344 = vmatpush.bf16.msra.mxu0 0
        %4345 = vmatpush.bf16.msra.mxu0 0
        %4346 = vmatpush.bf16.msra.mxu0 0
        %4347 = vmatpush.bf16.msra.mxu0 %v560
        %4348 = vmatpush.bf16.msra.mxu0 %v559
        %4349 = vmatmul.bf16.gmra.mxu0 %v4339
        %v4350 = vpop.f32.mrf.mxu0
        %v4351 = vadd.f32 0.0, %v4350
        %v4352 = vpop.f32.mrf.mxu0
        %4353 = vdwg.mxu0
        %v4355 = vrot.slane %v4351, 1
        %v4356 = vrot.slane %v4351, 2
        %v4357 = vrot.slane %v4351, 3
        %v4358 = vrot.slane %v4351, 4
        %v4359 = vrot.slane %v4351, 5
        %v4360 = vrot.slane %v4351, 6
        %v4361 = vrot.slane %v4351, 7
        %v4370 = vadd.f32 %v4289, %v4351
        %v4371 = vadd.f32 %v4290, %v4355
        %v4372 = vadd.f32 %v4291, %v4356
        %v4373 = vadd.f32 %v4292, %v4357
        %v4374 = vadd.f32 %v4293, %v4358
        %v4375 = vadd.f32 %v4294, %v4359
        %v4376 = vadd.f32 %v4295, %v4360
        %v4377 = vadd.f32 %v4296, %v4361
        %v4378 = vtanh.pop %v4370
        %v4379 = vtanh.pop %v4371
        %v4380 = vtanh.pop %v4372
        %v4381 = vtanh.pop %v4373
        %v4382 = vtanh.pop %v4374
        %v4383 = vtanh.pop %v4375
        %v4384 = vtanh.pop %v4376
        %v4385 = vtanh.pop %v4377
        %v4386 = vmul.f32 %v4378, %v534
        %v4387 = vmul.f32 %v4379, %v534
        %v4388 = vmul.f32 %v4380, %v534
        %v4389 = vmul.f32 %v4381, %v534
        %v4390 = vmul.f32 %v4382, %v534
        %v4391 = vmul.f32 %v4383, %v534
        %v4392 = vmul.f32 %v4384, %v534
        %v4393 = vmul.f32 %v4385, %v534
        %v4394 = vadd.f32 %v4386, %v535
        %v4395 = vadd.f32 %v4387, %v535
        %v4396 = vadd.f32 %v4388, %v535
        %v4397 = vadd.f32 %v4389, %v535
        %v4398 = vadd.f32 %v4390, %v535
        %v4399 = vadd.f32 %v4391, %v535
        %v4400 = vadd.f32 %v4392, %v535
        %v4401 = vadd.f32 %v4393, %v535
        %v4402 = vmul.f32 %v4394, %v4233
        %v4403 = vmul.f32 %v4395, %v4234
        %v4404 = vmul.f32 %v4396, %v4235
        %v4405 = vmul.f32 %v4397, %v4236
        %v4406 = vmul.f32 %v4398, %v4237
        %v4407 = vmul.f32 %v4399, %v4238
        %v4408 = vmul.f32 %v4400, %v4239
        %v4409 = vmul.f32 %v4401, %v4240
        %4418 = vrot.lane.b32.xlu0 %v4394, 64
        %v4419 = vpop.permute.xlu0 %4418
        %4420 = vrot.lane.b32.xlu0 %v4395, 64
        %v4421 = vpop.permute.xlu0 %4420
        %4422 = vrot.lane.b32.xlu0 %v4396, 64
        %v4423 = vpop.permute.xlu0 %4422
        %4424 = vrot.lane.b32.xlu0 %v4397, 64
        %v4425 = vpop.permute.xlu0 %4424
        %4426 = vrot.lane.b32.xlu0 %v4398, 64
        %v4427 = vpop.permute.xlu0 %4426
        %4428 = vrot.lane.b32.xlu0 %v4399, 64
        %v4429 = vpop.permute.xlu0 %4428
        %4430 = vrot.lane.b32.xlu0 %v4400, 64
        %v4431 = vpop.permute.xlu0 %4430
        %4432 = vrot.lane.b32.xlu0 %v4401, 64
        %v4433 = vpop.permute.xlu0 %4432
        %v4442 = vmul.f32 %v4394, %v4419
        %v4443 = vmul.f32 %v4395, %v4421
        %v4444 = vmul.f32 %v4396, %v4423
        %v4445 = vmul.f32 %v4397, %v4425
        %v4446 = vmul.f32 %v4398, %v4427
        %v4447 = vmul.f32 %v4399, %v4429
        %v4448 = vmul.f32 %v4400, %v4431
        %v4449 = vmul.f32 %v4401, %v4433
        %4458 = vrot.lane.b32.xlu0 %v4442, 32
        %v4459 = vpop.permute.xlu0 %4458
        %4460 = vrot.lane.b32.xlu0 %v4443, 32
        %v4461 = vpop.permute.xlu0 %4460
        %4462 = vrot.lane.b32.xlu0 %v4444, 32
        %v4463 = vpop.permute.xlu0 %4462
        %4464 = vrot.lane.b32.xlu0 %v4445, 32
        %v4465 = vpop.permute.xlu0 %4464
        %4466 = vrot.lane.b32.xlu0 %v4446, 32
        %v4467 = vpop.permute.xlu0 %4466
        %4468 = vrot.lane.b32.xlu0 %v4447, 32
        %v4469 = vpop.permute.xlu0 %4468
        %4470 = vrot.lane.b32.xlu0 %v4448, 32
        %v4471 = vpop.permute.xlu0 %4470
        %4472 = vrot.lane.b32.xlu0 %v4449, 32
        %v4473 = vpop.permute.xlu0 %4472
        %v4482 = vadd.f32 %v4402, %v4459
        %v4483 = vadd.f32 %v4403, %v4461
        %v4484 = vadd.f32 %v4404, %v4463
        %v4485 = vadd.f32 %v4405, %v4465
        %v4486 = vadd.f32 %v4406, %v4467
        %v4487 = vadd.f32 %v4407, %v4469
        %v4488 = vadd.f32 %v4408, %v4471
        %v4489 = vadd.f32 %v4409, %v4473
        %v4490 = vtanh.pop %v4482
        %v4491 = vtanh.pop %v4483
        %v4492 = vtanh.pop %v4484
        %v4493 = vtanh.pop %v4485
        %v4494 = vtanh.pop %v4486
        %v4495 = vtanh.pop %v4487
        %v4496 = vtanh.pop %v4488
        %v4497 = vtanh.pop %v4489
        %4506 = vrot.lane.b32.xlu0 %v4490, 64
        %v4507 = vpop.permute.xlu0 %4506
        %4508 = vrot.lane.b32.xlu0 %v4491, 64
        %v4509 = vpop.permute.xlu0 %4508
        %4510 = vrot.lane.b32.xlu0 %v4492, 64
        %v4511 = vpop.permute.xlu0 %4510
        %4512 = vrot.lane.b32.xlu0 %v4493, 64
        %v4513 = vpop.permute.xlu0 %4512
        %4514 = vrot.lane.b32.xlu0 %v4494, 64
        %v4515 = vpop.permute.xlu0 %4514
        %4516 = vrot.lane.b32.xlu0 %v4495, 64
        %v4517 = vpop.permute.xlu0 %4516
        %4518 = vrot.lane.b32.xlu0 %v4496, 64
        %v4519 = vpop.permute.xlu0 %4518
        %4520 = vrot.lane.b32.xlu0 %v4497, 64
        %v4521 = vpop.permute.xlu0 %4520
        %v4530 = vmul.f32 %v4394, %v4507
        %v4531 = vmul.f32 %v4395, %v4509
        %v4532 = vmul.f32 %v4396, %v4511
        %v4533 = vmul.f32 %v4397, %v4513
        %v4534 = vmul.f32 %v4398, %v4515
        %v4535 = vmul.f32 %v4399, %v4517
        %v4536 = vmul.f32 %v4400, %v4519
        %v4537 = vmul.f32 %v4401, %v4521
        %v4546 = vrot.slane %v4531, 7
        %v4547 = vsel %vm829, %v4546, %v4530
        %v4548 = vrot.slane %v4532, 6
        %v4549 = vsel %vm832, %v4548, %v4547
        %v4550 = vrot.slane %v4533, 5
        %v4551 = vsel %vm835, %v4550, %v4549
        %v4552 = vrot.slane %v4534, 4
        %v4553 = vsel %vm838, %v4552, %v4551
        %v4554 = vrot.slane %v4535, 3
        %v4555 = vsel %vm841, %v4554, %v4553
        %v4556 = vrot.slane %v4536, 2
        %v4557 = vsel %vm844, %v4556, %v4555
        %v4558 = vrot.slane %v4537, 1
        %v4559 = vsel %vm847, %v4558, %v4557
        %4560 = vrot.lane.b32.xlu0 %v4559, 32
        %v4561 = vpop.permute.xlu0 %4560
        %4563 = vst.msk [vmem:[#allocation3] sm:$0xff] %vm563, %v4561
        %v4572 = vrot.slane %v4483, 7
        %v4573 = vsel %vm829, %v4572, %v4482
        %v4574 = vrot.slane %v4484, 6
        %v4575 = vsel %vm832, %v4574, %v4573
        %v4576 = vrot.slane %v4485, 5
        %v4577 = vsel %vm835, %v4576, %v4575
        %v4578 = vrot.slane %v4486, 4
        %v4579 = vsel %vm838, %v4578, %v4577
        %v4580 = vrot.slane %v4487, 3
        %v4581 = vsel %vm841, %v4580, %v4579
        %v4582 = vrot.slane %v4488, 2
        %v4583 = vsel %vm844, %v4582, %v4581
        %v4584 = vrot.slane %v4489, 1
        %v4585 = vsel %vm847, %v4584, %v4583
        %4586 = vrot.lane.b32.xlu0 %v4585, 96
        %v4587 = vpop.permute.xlu0 %4586
        %4589 = vst.msk [vmem:[#allocation4] sm:$0xff] %vm563, %v4587
        %p4590 = scmp.eq.s32.totalorder %s23, 1
        // Predicated region
        $region90: #{tpu_custom_call.1} parent=80 // pred_check
          %p4591 = pneg %p4590
        $region91: #{tpu_custom_call.1} parent=80 // pred_check_branch
          %4593 = sbr.rel (%p4591) target = $region93
        $region92: #{tpu_custom_call.1} parent=80 // pred_region
          %v4594 = vpack.c.bf16 %v4530, %v4530
          %v4595 = vpack.c.bf16 %v4531, %v4531
          %v4596 = vpack.c.bf16 %v4532, %v4532
          %v4597 = vpack.c.bf16 %v4533, %v4533
          %v4598 = vpack.c.bf16 %v4534, %v4534
          %v4599 = vpack.c.bf16 %v4535, %v4535
          %v4600 = vpack.c.bf16 %v4536, %v4536
          %v4601 = vpack.c.bf16 %v4537, %v4537
          %v4602 = vld [vmem:[%s4] sm:$0xf]
          %v4603 = vld [vmem:[%s4 + $0x4] sm:$0xf]
          %v4604 = vld [vmem:[%s4 + $0x8] sm:$0xf]
          %v4605 = vld [vmem:[%s4 + $0xc] sm:$0xf]
          %v4606 = vld [vmem:[%s5] sm:$0x1]
          %v4608 = vperm.slane %v4606, 0
          %v4618 = vunpack.c.l.b16 %v4594
          %v4619 = vunpack.c.l.b16 %v4595
          %v4620 = vunpack.c.l.b16 %v4596
          %v4621 = vunpack.c.l.b16 %v4597
          %v4622 = vunpack.c.l.b16 %v4598
          %v4623 = vunpack.c.l.b16 %v4599
          %v4624 = vunpack.c.l.b16 %v4600
          %v4625 = vunpack.c.l.b16 %v4601
          %v4626 = vrot.slane %v4619, 7
          %v4627 = vsel %vm829, %v4626, %v4618
          %v4628 = vrot.slane %v4620, 6
          %v4629 = vsel %vm832, %v4628, %v4627
          %v4630 = vrot.slane %v4621, 5
          %v4631 = vsel %vm835, %v4630, %v4629
          %v4632 = vrot.slane %v4622, 4
          %v4633 = vsel %vm838, %v4632, %v4631
          %v4634 = vrot.slane %v4623, 3
          %v4635 = vsel %vm841, %v4634, %v4633
          %v4636 = vrot.slane %v4624, 2
          %v4637 = vsel %vm844, %v4636, %v4635
          %v4638 = vrot.slane %v4625, 1
          %v4639 = vsel %vm847, %v4638, %v4637
          %v4640 = vpack.c.b16 %v4639, %v4639
          %4641 = vrot.lane.b32.xlu0 %v4640, 32
          %v4642 = vpop.permute.xlu0 %4641
          %v4647 = vunpack.c.l.b16 %v4602
          %v4648 = vunpack.c.l.b16 %v4603
          %v4649 = vunpack.c.l.b16 %v4604
          %v4650 = vunpack.c.l.b16 %v4605
          %v4651 = vpack.c.b16 %v4648, %v4647
          %v4652 = vpack.c.b16 %v4650, %v4649
          %v4656 = vsel %vm563, %v4642, 0
          %4658 = vmatpush.bf16.msra.mxu0 0
          %4659 = vmatpush.bf16.msra.mxu0 0
          %4660 = vmatpush.bf16.msra.mxu0 0
          %4661 = vmatpush.bf16.msra.mxu0 0
          %4662 = vmatpush.bf16.msra.mxu0 0
          %4663 = vmatpush.bf16.msra.mxu0 0
          %4664 = vmatpush.bf16.msra.mxu0 %v4652
          %4665 = vmatpush.bf16.msra.mxu0 %v4651
          %4666 = vmatmul.bf16.gmra.mxu0 %v4656
          %v4667 = vpop.f32.mrf.mxu0
          %v4668 = vadd.f32 %v4608, %v4667
          %v4669 = vpop.f32.mrf.mxu0
          %4670 = vdwg.mxu0
          %4671 = vst [vmem:[#allocation6] sm:$0xff] %v4668
        $region93: #{tpu_custom_call.1} parent=80 // pred_fallthru
          _
        // Predicated region
        $region94: #{tpu_custom_call.1} parent=80 // pred_check
          %p4672 = pneg %p181
        $region95: #{tpu_custom_call.1} parent=80 // pred_check_branch
          %4674 = sbr.rel (%p4672) target = $region97
        $region96: #{tpu_custom_call.1} parent=80 // pred_region
          %4676 = vsyncadd [#allocation7], 0
          %s4677 = smul.addr %s22, 8
          %s4678 = scalar_lea.hbm %s6, %s4677
          %s4680 = sshll.u32 [#allocation6], 4
          %s4681 = int_to_ptr.vmem [resolvable:$true] %s4680
          %s4682 = sshll.u32 %s4678, 4
          %s4683 = int_to_ptr.hbm [resolvable:$true] %s4682
          %4685 = dma.vmem_to_hbm [thread:$0]  %s4681, 128, %s4683, [#allocation7]
        $region97: #{tpu_custom_call.1} parent=80 // pred_fallthru
          _
        // Predicated region
        $region98: #{tpu_custom_call.1} parent=80 // pred_check
          %p4686 = pneg %p181
        $region99: #{tpu_custom_call.1} parent=80 // pred_check_branch
          %4688 = sbr.rel (%p4686) target = $region101
        $region100: #{tpu_custom_call.1} parent=80 // pred_region
          %4690 = dma.done [#allocation7], 128
        $region101: #{tpu_custom_call.1} parent=80 // pred_fallthru
          _
      $region81: #{tpu_custom_call.1} parent=5 // pred_fallthru
        _
      %p4691 = scmp.le.s32.totalorder 2, %s13
      // Predicated region
      $region102: #{tpu_custom_call.1} parent=5 // pred_check
        %p4692 = pneg %p4691
      $region103: #{tpu_custom_call.1} parent=5 // pred_check_branch
        %4694 = sbr.rel (%p4692) target = $region105
      $region104: #{tpu_custom_call.1} parent=5 // pred_region
        %s4695 = ssub.s32 %s13, 2
      $region105: #{tpu_custom_call.1} parent=5 // pred_fallthru
        _
    $region6: #{tpu_custom_call.1} parent=1 // loop_footer
      %s17 = sadd.s32 1, %s13
    $region7: #{tpu_custom_call.1} parent=1 // loop_footer_branch
      %12 = sbr.rel target = $region3
    $region8: #{tpu_custom_call.1} parent=1 // loop_exit
      _
    %4696 = vsyncpa [#allocation7], 1
    %s4697 = scalar_lea.sflag [#allocation7], 1
    %4698 = vsyncpa %s4697, 1

</llo_original>
